<compile_context>
chip_gen: v5e
topology: v5e:2x2
jax: 0.10.0
libtpu: 0.0.40
codegen_flags: <defaults>
</compile_context>

<pallas_src>
import functools

import jax
import jax.numpy as jnp
from jax.experimental import pallas as pl
from jax.experimental.pallas import tpu as pltpu

_BN_EPS = 1e-5
_LANE = 128
_SUB_F32 = 8
_SUB_BF16 = 16


# --------------------------------------------------------------------------- #
# helpers (all padding / transposition / BN folding happens ONCE, pre-jit)
# --------------------------------------------------------------------------- #
def _rup(a, m):
    return -(-a // m) * m


def _pad2(x, rows, cols, dtype=jnp.float32):
    x = jnp.asarray(x, jnp.float32)
    r, c = x.shape
    return jnp.pad(x, ((0, rows - r), (0, cols - c))).astype(dtype)


def _pad_row(v, cols, dtype=jnp.float32):
    v = jnp.asarray(v, jnp.float32).reshape(1, -1)
    return jnp.pad(v, ((0, 0), (0, cols - v.shape[1]))).astype(dtype)


def _full_spec(shape):
    nd = len(shape)
    return pl.BlockSpec(tuple(shape), lambda i, _nd=nd: (0,) * _nd)


_CPARAMS = pltpu.CompilerParams(dimension_semantics=("arbitrary",))


# --------------------------------------------------------------------------- #
# the single fused kernel
# --------------------------------------------------------------------------- #
def _make_fused_kernel(num_gcn, pred_relu, C):
    """Whole TTmerNet forward in one kernel body.

    Ref order (inputs): A, x0, S1, S2,
      per GCN layer:   W(bf16), b, scale, shift,
      per pooling blk: bn0s, bn0t, bn1s, bn1t, attW(bf16), asrc, adst, abias,
                       Wcomb(bf16 [C,4C] = attW|Whh_r|Whh_z|Whh_n), Wih(bf16),
                       bih, bhh, bn2s, bn2t,
      per pred layer:  W(bf16), b.
    Last ref is the output.
    """

    def kernel(*refs):
        o_ref = refs[-1]
        it = iter(refs[:-1])
        nxt = lambda: next(it)

        A_ref, x_ref, S1_ref, S2_ref = nxt(), nxt(), nxt(), nxt()

        # ---------------- graph embedder: ReLU(BN(A @ (h W + b))) ----------
        A = A_ref[...]                                  # f32 [NP, NP]
        h = x_ref[...]                                  # f32 [NP, INP]
        for _ in range(num_gcn):
            W = nxt()[...]                              # bf16 [Cin, Cout]
            b = nxt()[...]
            s = nxt()[...]
            t = nxt()[...]
            xw = jnp.dot(h.astype(jnp.bfloat16), W,
                         preferred_element_type=jnp.float32) + b
            ax = jnp.dot(A, xw, preferred_element_type=jnp.float32)
            h = jnp.maximum(ax * s + t, 0.0)

        # ---------------- attention pooling (shared by tt / mol) -----------
        def pooling(h_src, S):
            bn0s, bn0t = nxt()[...], nxt()[...]
            bn1s, bn1t = nxt()[...], nxt()[...]
            attW = nxt()[...]                           # bf16 [C, C]
            asrc, adst, abias = nxt()[...], nxt()[...], nxt()[...]
            Wcomb = nxt()[...]                          # bf16 [C, 4C]
            Wih = nxt()[...]                            # bf16 [C, 3C]
            bih, bhh = nxt()[...], nxt()[...]
            bn2s, bn2t = nxt()[...], nxt()[...]

            hh = h_src * bn0s + bn0t                                     # BN0
            pooled = jnp.maximum(                                        # add_pool + ReLU
                jnp.dot(S, hh, preferred_element_type=jnp.float32), 0.0)
            pooled = pooled * bn1s + bn1t                                # BN1

            # GATConv (single head, shared src/dst lin, no self-loops,
            # negative_slope=0.01).  Attention dropout 0.01 is a no-op (eval).
            hs = jnp.dot(hh.astype(jnp.bfloat16), attW,
                         preferred_element_type=jnp.float32)             # [NS, C]
            # single MXU launch for everything pooled feeds: [attW | Whh(r,z,n)]
            comb = jnp.dot(pooled.astype(jnp.bfloat16), Wcomb,
                           preferred_element_type=jnp.float32)           # [ND, 4C]
            hd = comb[:, :C]
            gh = comb[:, C:] + bhh                                       # [ND, 3C]

            a_d = jnp.sum(hd * adst, axis=-1, keepdims=True)             # [ND, 1]
            a_s = jnp.dot(asrc, hs.T,
                          preferred_element_type=jnp.float32)            # [1, NS]
            scores = a_d + a_s                                           # [ND, NS]
            scores = jnp.where(scores > 0.0, scores, 0.01 * scores)      # LeakyReLU
            masked = jnp.where(S > 0.0, scores, -1e30)                   # edges only
            m = jnp.max(masked, axis=-1, keepdims=True)
            p = jnp.exp(masked - m) * S                                  # segment softmax
            denom = jnp.maximum(jnp.sum(p, axis=-1, keepdims=True), 1e-30)
            alpha = p * pl.reciprocal(denom, approx=True)

            gat = jnp.dot(alpha, hs, preferred_element_type=jnp.float32) + abias
            # ELU (clamp dead branch so exp never overflows); Dropout(0.001) no-op.
            gat = jnp.where(gat > 0.0, gat, jnp.exp(jnp.minimum(gat, 0.0)) - 1.0)

            # GRUCell(input=gat, hidden=pooled); gates (r, z, n), PyTorch layout.
            gi = jnp.dot(gat.astype(jnp.bfloat16), Wih,
                         preferred_element_type=jnp.float32) + bih       # [ND, 3C]
            r = jax.nn.sigmoid(gi[:, :C] + gh[:, :C])
            z = jax.nn.sigmoid(gi[:, C:2 * C] + gh[:, C:2 * C])
            n = jnp.tanh(gi[:, 2 * C:] + r * gh[:, 2 * C:])
            hnew = (1.0 - z) * n + z * pooled

            hnew = jnp.maximum(hnew, 0.0)                                # ReLU
            return hnew * bn2s + bn2t                                    # BN2

        tt = pooling(h, S1_ref[...])                     # [TP, C]
        mol = pooling(tt, S2_ref[...])                   # [MP, C]

        # ---------------- predictor MLP ------------------------------------
        hp = mol
        for relu in pred_relu:
            W = nxt()[...]                               # bf16 [Cin, Cout]
            b = nxt()[...]
            hp = jnp.dot(hp.astype(jnp.bfloat16), W,
                         preferred_element_type=jnp.float32) + b
            if relu:
                hp = jnp.maximum(hp, 0.0)
        o_ref[...] = hp

    return kernel


# --------------------------------------------------------------------------- #
# forward wrapper: exactly ONE pallas_call + a final slice
# --------------------------------------------------------------------------- #
def ttmernet_forward(prep, x0, A, S1, S2, *, pred_relu, num_mol):
    operands = [A, x0, S1, S2]
    for lyr in prep["gcn"]:
        operands += [lyr["W"], lyr["b"], lyr["scale"], lyr["shift"]]
    for blk in (prep["tt"], prep["mol"]):
        operands += [blk["bn0s"], blk["bn0t"], blk["bn1s"], blk["bn1t"],
                     blk["attW"], blk["asrc"], blk["adst"], blk["abias"],
                     blk["Wcomb"], blk["Wih"], blk["bih"], blk["bhh"],
                     blk["bn2s"], blk["bn2t"]]
    for lyr in prep["pred"]:
        operands += [lyr["W"], lyr["b"]]

    MP = S2.shape[0]
    C = prep["tt"]["attW"].shape[1]                  # padded hidden (128)
    OUTP = prep["pred"][-1]["W"].shape[1]            # padded output (128)

    kern = _make_fused_kernel(len(prep["gcn"]), tuple(pred_relu), C)
    y = pl.pallas_call(
        kern,
        out_shape=jax.ShapeDtypeStruct((MP, OUTP), jnp.float32),
        grid=(1,),
        in_specs=[_full_spec(op.shape) for op in operands],
        out_specs=_full_spec((MP, OUTP)),
        compiler_params=_CPARAMS,
    )(*operands)
    return y[:num_mol, :1]


# --------------------------------------------------------------------------- #
# parameter initialization (PyTorch layouts, mirrors module __init__)
# --------------------------------------------------------------------------- #
def _glorot(key, shape):
    fan_in, fan_out = shape[0], shape[1]
    std = (2.0 / (fan_in + fan_out)) ** 0.5
    return std * jax.random.normal(key, shape, jnp.float32)


def _bn_params(c):
    return dict(gamma=jnp.ones((c,), jnp.float32),
                beta=jnp.zeros((c,), jnp.float32),
                mean=jnp.zeros((c,), jnp.float32),
                var=jnp.ones((c,), jnp.float32))


def init_params(key, in_dim, hid):
    keys = iter(jax.random.split(key, 32))
    nxt = lambda: next(keys)

    gcn = []
    for ci, co in [(in_dim, hid), (hid, hid)]:
        gcn.append(dict(W=_glorot(nxt(), (ci, co)),
                        b=jnp.zeros((co,), jnp.float32),
                        bn=_bn_params(co)))

    def pooling_params():
        C = hid
        return dict(
            bn0=_bn_params(C), bn1=_bn_params(C), bn2=_bn_params(C),
            att_W=_glorot(nxt(), (C, C)),              # shared lin (int in_channels)
            att_src=0.1 * jax.random.normal(nxt(), (C,), jnp.float32),
            att_dst=0.1 * jax.random.normal(nxt(), (C,), jnp.float32),
            att_bias=jnp.zeros((C,), jnp.float32),
            gru_Wih=_glorot(nxt(), (3 * C, C)),        # PyTorch GRUCell layout
            gru_Whh=_glorot(nxt(), (3 * C, C)),
            gru_bih=jnp.zeros((3 * C,), jnp.float32),
            gru_bhh=jnp.zeros((3 * C,), jnp.float32),
        )

    pred = []
    for ci, co, relu in [(hid, 16, True), (16, 1, False)]:
        pred.append(dict(W=_glorot(nxt(), (co, ci)),   # nn.Linear [out, in]
                         b=jnp.full((co,), 0.01, jnp.float32),
                         relu=relu))

    return dict(gcn=gcn, tt=pooling_params(), mol=pooling_params(), pred=pred)


# --------------------------------------------------------------------------- #
# one-time preprocessing: fold BN, transpose, pad (lane dims -> 128,
# sublane dims -> 8/16), pre-cast weights to bf16
# --------------------------------------------------------------------------- #
def prepare_params(params, in_dim, hid):
    INP = _rup(in_dim, _LANE)
    HP = _rup(hid, _LANE)
    BF = jnp.bfloat16

    def bn_fold(bn, cp):
        scale = bn["gamma"] / jnp.sqrt(bn["var"] + _BN_EPS)
        shift = bn["beta"] - bn["mean"] * scale
        return _pad_row(scale, cp), _pad_row(shift, cp)

    gcn_p, cin_p = [], INP
    for lyr in params["gcn"]:
        co = lyr["W"].shape[1]
        cop = _rup(co, _LANE)
        s, t = bn_fold(lyr["bn"], cop)
        gcn_p.append(dict(W=_pad2(lyr["W"], cin_p, cop, BF),
                          b=_pad_row(lyr["b"], cop), scale=s, shift=t))
        cin_p = cop

    def prep_pool(p):
        C = hid
        bn0s, bn0t = bn_fold(p["bn0"], HP)
        bn1s, bn1t = bn_fold(p["bn1"], HP)
        bn2s, bn2t = bn_fold(p["bn2"], HP)

        attW = _pad2(p["att_W"], HP, HP)               # [HP, HP] f32 (cast below)

        def gru_gates(W):   # [3C, C] (r,z,n) -> list of transposed padded [HP, HP]
            Wt = W.T
            return [_pad2(Wt[:, g * C:(g + 1) * C], HP, HP) for g in range(3)]

        def gru_b(b):       # [3C] -> per-gate padded [1, 3*HP]
            return jnp.concatenate(
                [_pad_row(b[g * C:(g + 1) * C], HP) for g in range(3)], axis=1)

        whh = gru_gates(p["gru_Whh"])
        wih = gru_gates(p["gru_Wih"])
        # one wide matrix so `pooled` needs a single MXU launch
        Wcomb = jnp.concatenate([attW] + whh, axis=1).astype(BF)     # [HP, 4HP]
        Wih = jnp.concatenate(wih, axis=1).astype(BF)                # [HP, 3HP]

        return dict(bn0s=bn0s, bn0t=bn0t, bn1s=bn1s, bn1t=bn1t,
                    bn2s=bn2s, bn2t=bn2t,
                    attW=attW.astype(BF),
                    asrc=_pad_row(p["att_src"], HP),
                    adst=_pad_row(p["att_dst"], HP),
                    abias=_pad_row(p["att_bias"], HP),
                    Wcomb=Wcomb, Wih=Wih,
                    bih=gru_b(p["gru_bih"]), bhh=gru_b(p["gru_bhh"]))

    pred_p, pred_relu, cin_p = [], [], HP
    for lyr in params["pred"]:
        co = lyr["W"].shape[0]
        cop = _rup(co, _LANE)
        pred_p.append(dict(W=_pad2(lyr["W"].T, cin_p, cop, BF),   # [in, out] bf16
                           b=_pad_row(lyr["b"], cop)))
        pred_relu.append(bool(lyr["relu"]))
        cin_p = cop

    prep = dict(gcn=gcn_p, tt=prep_pool(params["tt"]),
                mol=prep_pool(params["mol"]), pred=pred_p)
    return prep, tuple(pred_relu)


def prepare_inputs(node_attr, tilde_A, tt_node_batch, tt_graph_batch,
                   num_tt, num_mol, in_dim):
    N = node_attr.shape[0]
    INP = _rup(in_dim, _LANE)
    NP = _rup(N, _SUB_BF16)                     # nodes: sublane-only padding
    TP = _rup(num_tt, _SUB_BF16)                # tt graphs: sublane-only padding
    MP = max(_rup(num_mol, _SUB_F32), _SUB_F32)
    x0 = _pad2(node_attr, NP, INP)
    A = _pad2(tilde_A, NP, NP)                  # dense tilde_A (sparse densified)
    S1 = _pad2(jax.nn.one_hot(tt_node_batch, num_tt, dtype=jnp.float32).T, TP, NP)
    S2 = _pad2(jax.nn.one_hot(tt_graph_batch, num_mol, dtype=jnp.float32).T, MP, TP)
    return x0, A, S1, S2


# --------------------------------------------------------------------------- #
# main
# --------------------------------------------------------------------------- #
if __name__ == "__main__":
    N_NODES, N_TT, N_MOL = 24, 8, 2
    IN_DIM, HID = 16, 32

    key = jax.random.PRNGKey(0)
    k_par, k_feat = jax.random.split(key)

    params = init_params(k_par, IN_DIM, HID)
    node_attr = jax.random.normal(k_feat, (N_NODES, IN_DIM), jnp.float32)

    # deterministic normalized adjacency: ring graph + self-loops, D^-1/2 A D^-1/2
    idx = jnp.arange(N_NODES)
    A = (jnp.eye(N_NODES)
         + jnp.eye(N_NODES)[(idx + 1) % N_NODES]
         + jnp.eye(N_NODES)[(idx - 1) % N_NODES]).astype(jnp.float32)
    deg = A.sum(axis=1)
    d_inv_sqrt = 1.0 / jnp.sqrt(deg)
    tilde_A = A * d_inv_sqrt[:, None] * d_inv_sqrt[None, :]

    # batch assignments (nodes -> tt graphs, tt graphs -> molecules)
    tt_node_batch = jnp.repeat(jnp.arange(N_TT), N_NODES // N_TT)
    tt_graph_batch = jnp.repeat(jnp.arange(N_MOL), N_TT // N_MOL)

    # one-time prep (padding / transposes / BN folding / bf16 casts)
    prep, pred_relu = prepare_params(params, IN_DIM, HID)
    x0p, Ap, S1p, S2p = prepare_inputs(node_attr, tilde_A, tt_node_batch,
                                       tt_graph_batch, N_TT, N_MOL, IN_DIM)

    fwd = jax.jit(functools.partial(ttmernet_forward,
                                    pred_relu=pred_relu, num_mol=N_MOL))
    y = jax.block_until_ready(fwd(prep, x0p, Ap, S1p, S2p))

    assert y.shape == (N_MOL, 1)
    assert bool(jnp.all(jnp.isfinite(y)))
    print("KERNEL_OK")
</pallas_src>

<mosaic_0001>
module attributes {stable_mosaic.version = 11 : i64} {
  func.func @kernel(%arg0: i32, %arg1: memref<32x32xf32, #tpu.memory_space<vmem>>, %arg2: memref<32x128xf32, #tpu.memory_space<vmem>>, %arg3: memref<16x32xf32, #tpu.memory_space<vmem>>, %arg4: memref<8x16xf32, #tpu.memory_space<vmem>>, %arg5: memref<128x128xbf16, #tpu.memory_space<vmem>>, %arg6: memref<1x128xf32, #tpu.memory_space<vmem>>, %arg7: memref<1x128xf32, #tpu.memory_space<vmem>>, %arg8: memref<1x128xf32, #tpu.memory_space<vmem>>, %arg9: memref<128x128xbf16, #tpu.memory_space<vmem>>, %arg10: memref<1x128xf32, #tpu.memory_space<vmem>>, %arg11: memref<1x128xf32, #tpu.memory_space<vmem>>, %arg12: memref<1x128xf32, #tpu.memory_space<vmem>>, %arg13: memref<1x128xf32, #tpu.memory_space<vmem>>, %arg14: memref<1x128xf32, #tpu.memory_space<vmem>>, %arg15: memref<1x128xf32, #tpu.memory_space<vmem>>, %arg16: memref<1x128xf32, #tpu.memory_space<vmem>>, %arg17: memref<128x128xbf16, #tpu.memory_space<vmem>>, %arg18: memref<1x128xf32, #tpu.memory_space<vmem>>, %arg19: memref<1x128xf32, #tpu.memory_space<vmem>>, %arg20: memref<1x128xf32, #tpu.memory_space<vmem>>, %arg21: memref<128x512xbf16, #tpu.memory_space<vmem>>, %arg22: memref<128x384xbf16, #tpu.memory_space<vmem>>, %arg23: memref<1x384xf32, #tpu.memory_space<vmem>>, %arg24: memref<1x384xf32, #tpu.memory_space<vmem>>, %arg25: memref<1x128xf32, #tpu.memory_space<vmem>>, %arg26: memref<1x128xf32, #tpu.memory_space<vmem>>, %arg27: memref<1x128xf32, #tpu.memory_space<vmem>>, %arg28: memref<1x128xf32, #tpu.memory_space<vmem>>, %arg29: memref<1x128xf32, #tpu.memory_space<vmem>>, %arg30: memref<1x128xf32, #tpu.memory_space<vmem>>, %arg31: memref<128x128xbf16, #tpu.memory_space<vmem>>, %arg32: memref<1x128xf32, #tpu.memory_space<vmem>>, %arg33: memref<1x128xf32, #tpu.memory_space<vmem>>, %arg34: memref<1x128xf32, #tpu.memory_space<vmem>>, %arg35: memref<128x512xbf16, #tpu.memory_space<vmem>>, %arg36: memref<128x384xbf16, #tpu.memory_space<vmem>>, %arg37: memref<1x384xf32, #tpu.memory_space<vmem>>, %arg38: memref<1x384xf32, #tpu.memory_space<vmem>>, %arg39: memref<1x128xf32, #tpu.memory_space<vmem>>, %arg40: memref<1x128xf32, #tpu.memory_space<vmem>>, %arg41: memref<128x128xbf16, #tpu.memory_space<vmem>>, %arg42: memref<1x128xf32, #tpu.memory_space<vmem>>, %arg43: memref<128x128xbf16, #tpu.memory_space<vmem>>, %arg44: memref<1x128xf32, #tpu.memory_space<vmem>>, %arg45: memref<8x128xf32, #tpu.memory_space<vmem>>) attributes {dimension_semantics = [#tpu.dimension_semantics<arbitrary>], iteration_bounds = array<i64: 1>, scalar_prefetch = 0 : i64, scratch_operands = 0 : i64, tpu.core_type = #tpu.core_type<tc>, window_params = [{pipeline_mode = #tpu.pipeline_mode<synchronous>, transform_indices = @transform_0, window_bounds = array<i64: 32, 32>}, {pipeline_mode = #tpu.pipeline_mode<synchronous>, transform_indices = @transform_1, window_bounds = array<i64: 32, 128>}, {pipeline_mode = #tpu.pipeline_mode<synchronous>, transform_indices = @transform_2, window_bounds = array<i64: 16, 32>}, {pipeline_mode = #tpu.pipeline_mode<synchronous>, transform_indices = @transform_3, window_bounds = array<i64: 8, 16>}, {pipeline_mode = #tpu.pipeline_mode<synchronous>, transform_indices = @transform_4, window_bounds = array<i64: 128, 128>}, {pipeline_mode = #tpu.pipeline_mode<synchronous>, transform_indices = @transform_5, window_bounds = array<i64: 1, 128>}, {pipeline_mode = #tpu.pipeline_mode<synchronous>, transform_indices = @transform_6, window_bounds = array<i64: 1, 128>}, {pipeline_mode = #tpu.pipeline_mode<synchronous>, transform_indices = @transform_7, window_bounds = array<i64: 1, 128>}, {pipeline_mode = #tpu.pipeline_mode<synchronous>, transform_indices = @transform_8, window_bounds = array<i64: 128, 128>}, {pipeline_mode = #tpu.pipeline_mode<synchronous>, transform_indices = @transform_9, window_bounds = array<i64: 1, 128>}, {pipeline_mode = #tpu.pipeline_mode<synchronous>, transform_indices = @transform_10, window_bounds = array<i64: 1, 128>}, {pipeline_mode = #tpu.pipeline_mode<synchronous>, transform_indices = @transform_11, window_bounds = array<i64: 1, 128>}, {pipeline_mode = #tpu.pipeline_mode<synchronous>, transform_indices = @transform_12, window_bounds = array<i64: 1, 128>}, {pipeline_mode = #tpu.pipeline_mode<synchronous>, transform_indices = @transform_13, window_bounds = array<i64: 1, 128>}, {pipeline_mode = #tpu.pipeline_mode<synchronous>, transform_indices = @transform_14, window_bounds = array<i64: 1, 128>}, {pipeline_mode = #tpu.pipeline_mode<synchronous>, transform_indices = @transform_15, window_bounds = array<i64: 1, 128>}, {pipeline_mode = #tpu.pipeline_mode<synchronous>, transform_indices = @transform_16, window_bounds = array<i64: 128, 128>}, {pipeline_mode = #tpu.pipeline_mode<synchronous>, transform_indices = @transform_17, window_bounds = array<i64: 1, 128>}, {pipeline_mode = #tpu.pipeline_mode<synchronous>, transform_indices = @transform_18, window_bounds = array<i64: 1, 128>}, {pipeline_mode = #tpu.pipeline_mode<synchronous>, transform_indices = @transform_19, window_bounds = array<i64: 1, 128>}, {pipeline_mode = #tpu.pipeline_mode<synchronous>, transform_indices = @transform_20, window_bounds = array<i64: 128, 512>}, {pipeline_mode = #tpu.pipeline_mode<synchronous>, transform_indices = @transform_21, window_bounds = array<i64: 128, 384>}, {pipeline_mode = #tpu.pipeline_mode<synchronous>, transform_indices = @transform_22, window_bounds = array<i64: 1, 384>}, {pipeline_mode = #tpu.pipeline_mode<synchronous>, transform_indices = @transform_23, window_bounds = array<i64: 1, 384>}, {pipeline_mode = #tpu.pipeline_mode<synchronous>, transform_indices = @transform_24, window_bounds = array<i64: 1, 128>}, {pipeline_mode = #tpu.pipeline_mode<synchronous>, transform_indices = @transform_25, window_bounds = array<i64: 1, 128>}, {pipeline_mode = #tpu.pipeline_mode<synchronous>, transform_indices = @transform_26, window_bounds = array<i64: 1, 128>}, {pipeline_mode = #tpu.pipeline_mode<synchronous>, transform_indices = @transform_27, window_bounds = array<i64: 1, 128>}, {pipeline_mode = #tpu.pipeline_mode<synchronous>, transform_indices = @transform_28, window_bounds = array<i64: 1, 128>}, {pipeline_mode = #tpu.pipeline_mode<synchronous>, transform_indices = @transform_29, window_bounds = array<i64: 1, 128>}, {pipeline_mode = #tpu.pipeline_mode<synchronous>, transform_indices = @transform_30, window_bounds = array<i64: 128, 128>}, {pipeline_mode = #tpu.pipeline_mode<synchronous>, transform_indices = @transform_31, window_bounds = array<i64: 1, 128>}, {pipeline_mode = #tpu.pipeline_mode<synchronous>, transform_indices = @transform_32, window_bounds = array<i64: 1, 128>}, {pipeline_mode = #tpu.pipeline_mode<synchronous>, transform_indices = @transform_33, window_bounds = array<i64: 1, 128>}, {pipeline_mode = #tpu.pipeline_mode<synchronous>, transform_indices = @transform_34, window_bounds = array<i64: 128, 512>}, {pipeline_mode = #tpu.pipeline_mode<synchronous>, transform_indices = @transform_35, window_bounds = array<i64: 128, 384>}, {pipeline_mode = #tpu.pipeline_mode<synchronous>, transform_indices = @transform_36, window_bounds = array<i64: 1, 384>}, {pipeline_mode = #tpu.pipeline_mode<synchronous>, transform_indices = @transform_37, window_bounds = array<i64: 1, 384>}, {pipeline_mode = #tpu.pipeline_mode<synchronous>, transform_indices = @transform_38, window_bounds = array<i64: 1, 128>}, {pipeline_mode = #tpu.pipeline_mode<synchronous>, transform_indices = @transform_39, window_bounds = array<i64: 1, 128>}, {pipeline_mode = #tpu.pipeline_mode<synchronous>, transform_indices = @transform_40, window_bounds = array<i64: 128, 128>}, {pipeline_mode = #tpu.pipeline_mode<synchronous>, transform_indices = @transform_41, window_bounds = array<i64: 1, 128>}, {pipeline_mode = #tpu.pipeline_mode<synchronous>, transform_indices = @transform_42, window_bounds = array<i64: 128, 128>}, {pipeline_mode = #tpu.pipeline_mode<synchronous>, transform_indices = @transform_43, window_bounds = array<i64: 1, 128>}, {pipeline_mode = #tpu.pipeline_mode<synchronous>, transform_indices = @transform_44, window_bounds = array<i64: 8, 128>}]} {
    %c0 = arith.constant 0 : index
    %c0_0 = arith.constant 0 : index
    %0 = vector.load %arg1[%c0, %c0_0] : memref<32x32xf32, #tpu.memory_space<vmem>>, vector<32x32xf32>
    %c0_1 = arith.constant 0 : index
    %c0_2 = arith.constant 0 : index
    %1 = vector.load %arg2[%c0_1, %c0_2] : memref<32x128xf32, #tpu.memory_space<vmem>>, vector<32x128xf32>
    %c0_3 = arith.constant 0 : index
    %c0_4 = arith.constant 0 : index
    %2 = vector.load %arg5[%c0_3, %c0_4] : memref<128x128xbf16, #tpu.memory_space<vmem>>, vector<128x128xbf16>
    %c0_5 = arith.constant 0 : index
    %c0_6 = arith.constant 0 : index
    %3 = vector.load %arg6[%c0_5, %c0_6] : memref<1x128xf32, #tpu.memory_space<vmem>>, vector<1x128xf32>
    %c0_7 = arith.constant 0 : index
    %c0_8 = arith.constant 0 : index
    %4 = vector.load %arg7[%c0_7, %c0_8] : memref<1x128xf32, #tpu.memory_space<vmem>>, vector<1x128xf32>
    %c0_9 = arith.constant 0 : index
    %c0_10 = arith.constant 0 : index
    %5 = vector.load %arg8[%c0_9, %c0_10] : memref<1x128xf32, #tpu.memory_space<vmem>>, vector<1x128xf32>
    %6 = arith.truncf %1 : vector<32x128xf32> to vector<32x128xbf16>
    %cst = arith.constant dense<0.000000e+00> : vector<32x128xf32>
    %7 = tpu.matmul %6, %2, %cst {dimension_numbers = #tpu.dot_dimension_numbers<[1], [0], [0], [1], [0, 0, 1, 1], [], []>} : vector<32x128xbf16>, vector<128x128xbf16>, vector<32x128xf32> -> vector<32x128xf32>
    %8 = vector.broadcast %3 : vector<1x128xf32> to vector<32x128xf32>
    %9 = arith.addf %7, %8 : vector<32x128xf32>
    %cst_11 = arith.constant dense<0.000000e+00> : vector<32x128xf32>
    %10 = tpu.matmul %0, %9, %cst_11 {dimension_numbers = #tpu.dot_dimension_numbers<[1], [0], [0], [1], [0, 0, 1, 1], [], []>} : vector<32x32xf32>, vector<32x128xf32>, vector<32x128xf32> -> vector<32x128xf32>
    %11 = vector.broadcast %4 : vector<1x128xf32> to vector<32x128xf32>
    %12 = arith.mulf %10, %11 : vector<32x128xf32>
    %13 = vector.broadcast %5 : vector<1x128xf32> to vector<32x128xf32>
    %14 = arith.addf %12, %13 : vector<32x128xf32>
    %cst_12 = arith.constant 0.000000e+00 : f32
    %15 = vector.broadcast %cst_12 : f32 to vector<32x128xf32>
    %16 = arith.maximumf %14, %15 : vector<32x128xf32>
    %c0_13 = arith.constant 0 : index
    %c0_14 = arith.constant 0 : index
    %17 = vector.load %arg9[%c0_13, %c0_14] : memref<128x128xbf16, #tpu.memory_space<vmem>>, vector<128x128xbf16>
    %c0_15 = arith.constant 0 : index
    %c0_16 = arith.constant 0 : index
    %18 = vector.load %arg10[%c0_15, %c0_16] : memref<1x128xf32, #tpu.memory_space<vmem>>, vector<1x128xf32>
    %c0_17 = arith.constant 0 : index
    %c0_18 = arith.constant 0 : index
    %19 = vector.load %arg11[%c0_17, %c0_18] : memref<1x128xf32, #tpu.memory_space<vmem>>, vector<1x128xf32>
    %c0_19 = arith.constant 0 : index
    %c0_20 = arith.constant 0 : index
    %20 = vector.load %arg12[%c0_19, %c0_20] : memref<1x128xf32, #tpu.memory_space<vmem>>, vector<1x128xf32>
    %21 = arith.truncf %16 : vector<32x128xf32> to vector<32x128xbf16>
    %cst_21 = arith.constant dense<0.000000e+00> : vector<32x128xf32>
    %22 = tpu.matmul %21, %17, %cst_21 {dimension_numbers = #tpu.dot_dimension_numbers<[1], [0], [0], [1], [0, 0, 1, 1], [], []>} : vector<32x128xbf16>, vector<128x128xbf16>, vector<32x128xf32> -> vector<32x128xf32>
    %23 = vector.broadcast %18 : vector<1x128xf32> to vector<32x128xf32>
    %24 = arith.addf %22, %23 : vector<32x128xf32>
    %cst_22 = arith.constant dense<0.000000e+00> : vector<32x128xf32>
    %25 = tpu.matmul %0, %24, %cst_22 {dimension_numbers = #tpu.dot_dimension_numbers<[1], [0], [0], [1], [0, 0, 1, 1], [], []>} : vector<32x32xf32>, vector<32x128xf32>, vector<32x128xf32> -> vector<32x128xf32>
    %26 = vector.broadcast %19 : vector<1x128xf32> to vector<32x128xf32>
    %27 = arith.mulf %25, %26 : vector<32x128xf32>
    %28 = vector.broadcast %20 : vector<1x128xf32> to vector<32x128xf32>
    %29 = arith.addf %27, %28 : vector<32x128xf32>
    %cst_23 = arith.constant 0.000000e+00 : f32
    %30 = vector.broadcast %cst_23 : f32 to vector<32x128xf32>
    %31 = arith.maximumf %29, %30 : vector<32x128xf32>
    %c0_24 = arith.constant 0 : index
    %c0_25 = arith.constant 0 : index
    %32 = vector.load %arg3[%c0_24, %c0_25] : memref<16x32xf32, #tpu.memory_space<vmem>>, vector<16x32xf32>
    %c0_26 = arith.constant 0 : index
    %c0_27 = arith.constant 0 : index
    %33 = vector.load %arg13[%c0_26, %c0_27] : memref<1x128xf32, #tpu.memory_space<vmem>>, vector<1x128xf32>
    %c0_28 = arith.constant 0 : index
    %c0_29 = arith.constant 0 : index
    %34 = vector.load %arg14[%c0_28, %c0_29] : memref<1x128xf32, #tpu.memory_space<vmem>>, vector<1x128xf32>
    %c0_30 = arith.constant 0 : index
    %c0_31 = arith.constant 0 : index
    %35 = vector.load %arg15[%c0_30, %c0_31] : memref<1x128xf32, #tpu.memory_space<vmem>>, vector<1x128xf32>
    %c0_32 = arith.constant 0 : index
    %c0_33 = arith.constant 0 : index
    %36 = vector.load %arg16[%c0_32, %c0_33] : memref<1x128xf32, #tpu.memory_space<vmem>>, vector<1x128xf32>
    %c0_34 = arith.constant 0 : index
    %c0_35 = arith.constant 0 : index
    %37 = vector.load %arg17[%c0_34, %c0_35] : memref<128x128xbf16, #tpu.memory_space<vmem>>, vector<128x128xbf16>
    %c0_36 = arith.constant 0 : index
    %c0_37 = arith.constant 0 : index
    %38 = vector.load %arg18[%c0_36, %c0_37] : memref<1x128xf32, #tpu.memory_space<vmem>>, vector<1x128xf32>
    %c0_38 = arith.constant 0 : index
    %c0_39 = arith.constant 0 : index
    %39 = vector.load %arg19[%c0_38, %c0_39] : memref<1x128xf32, #tpu.memory_space<vmem>>, vector<1x128xf32>
    %c0_40 = arith.constant 0 : index
    %c0_41 = arith.constant 0 : index
    %40 = vector.load %arg20[%c0_40, %c0_41] : memref<1x128xf32, #tpu.memory_space<vmem>>, vector<1x128xf32>
    %c0_42 = arith.constant 0 : index
    %c0_43 = arith.constant 0 : index
    %41 = vector.load %arg21[%c0_42, %c0_43] : memref<128x512xbf16, #tpu.memory_space<vmem>>, vector<128x512xbf16>
    %c0_44 = arith.constant 0 : index
    %c0_45 = arith.constant 0 : index
    %42 = vector.load %arg22[%c0_44, %c0_45] : memref<128x384xbf16, #tpu.memory_space<vmem>>, vector<128x384xbf16>
    %c0_46 = arith.constant 0 : index
    %c0_47 = arith.constant 0 : index
    %43 = vector.load %arg23[%c0_46, %c0_47] : memref<1x384xf32, #tpu.memory_space<vmem>>, vector<1x384xf32>
    %c0_48 = arith.constant 0 : index
    %c0_49 = arith.constant 0 : index
    %44 = vector.load %arg24[%c0_48, %c0_49] : memref<1x384xf32, #tpu.memory_space<vmem>>, vector<1x384xf32>
    %c0_50 = arith.constant 0 : index
    %c0_51 = arith.constant 0 : index
    %45 = vector.load %arg25[%c0_50, %c0_51] : memref<1x128xf32, #tpu.memory_space<vmem>>, vector<1x128xf32>
    %c0_52 = arith.constant 0 : index
    %c0_53 = arith.constant 0 : index
    %46 = vector.load %arg26[%c0_52, %c0_53] : memref<1x128xf32, #tpu.memory_space<vmem>>, vector<1x128xf32>
    %47 = vector.broadcast %33 : vector<1x128xf32> to vector<32x128xf32>
    %48 = arith.mulf %31, %47 : vector<32x128xf32>
    %49 = vector.broadcast %34 : vector<1x128xf32> to vector<32x128xf32>
    %50 = arith.addf %48, %49 : vector<32x128xf32>
    %cst_54 = arith.constant dense<0.000000e+00> : vector<16x128xf32>
    %51 = tpu.matmul %32, %50, %cst_54 {dimension_numbers = #tpu.dot_dimension_numbers<[1], [0], [0], [1], [0, 0, 1, 1], [], []>} : vector<16x32xf32>, vector<32x128xf32>, vector<16x128xf32> -> vector<16x128xf32>
    %cst_55 = arith.constant 0.000000e+00 : f32
    %52 = vector.broadcast %cst_55 : f32 to vector<16x128xf32>
    %53 = arith.maximumf %51, %52 : vector<16x128xf32>
    %54 = vector.broadcast %35 : vector<1x128xf32> to vector<16x128xf32>
    %55 = arith.mulf %53, %54 : vector<16x128xf32>
    %56 = vector.broadcast %36 : vector<1x128xf32> to vector<16x128xf32>
    %57 = arith.addf %55, %56 : vector<16x128xf32>
    %58 = arith.truncf %50 : vector<32x128xf32> to vector<32x128xbf16>
    %cst_56 = arith.constant dense<0.000000e+00> : vector<32x128xf32>
    %59 = tpu.matmul %58, %37, %cst_56 {dimension_numbers = #tpu.dot_dimension_numbers<[1], [0], [0], [1], [0, 0, 1, 1], [], []>} : vector<32x128xbf16>, vector<128x128xbf16>, vector<32x128xf32> -> vector<32x128xf32>
    %60 = arith.truncf %57 : vector<16x128xf32> to vector<16x128xbf16>
    %cst_57 = arith.constant dense<0.000000e+00> : vector<16x512xf32>
    %61 = tpu.matmul %60, %41, %cst_57 {dimension_numbers = #tpu.dot_dimension_numbers<[1], [0], [0], [1], [0, 0, 1, 1], [], []>} : vector<16x128xbf16>, vector<128x512xbf16>, vector<16x512xf32> -> vector<16x512xf32>
    %62 = vector.extract_strided_slice %61 {offsets = [0, 0], sizes = [16, 128], strides = [1, 1]} : vector<16x512xf32> to vector<16x128xf32>
    %63 = vector.extract_strided_slice %61 {offsets = [0, 128], sizes = [16, 384], strides = [1, 1]} : vector<16x512xf32> to vector<16x384xf32>
    %64 = vector.broadcast %44 : vector<1x384xf32> to vector<16x384xf32>
    %65 = arith.addf %63, %64 : vector<16x384xf32>
    %66 = vector.broadcast %39 : vector<1x128xf32> to vector<16x128xf32>
    %67 = arith.mulf %62, %66 : vector<16x128xf32>
    %cst_58 = arith.constant dense<0.000000e+00> : vector<16xf32>
    %68 = vector.multi_reduction <add>, %67, %cst_58 [1] : vector<16x128xf32> to vector<16xf32>
    %69 = vector.shape_cast %68 : vector<16xf32> to vector<16x1xf32>
    %70 = tpu.transpose %59, [1, 0] : vector<32x128xf32> -> vector<128x32xf32>
    %cst_59 = arith.constant dense<0.000000e+00> : vector<1x32xf32>
    %71 = tpu.matmul %38, %70, %cst_59 {dimension_numbers = #tpu.dot_dimension_numbers<[1], [0], [0], [1], [0, 0, 1, 1], [], []>} : vector<1x128xf32>, vector<128x32xf32>, vector<1x32xf32> -> vector<1x32xf32>
    %72 = vector.broadcast %69 : vector<16x1xf32> to vector<16x32xf32>
    %73 = vector.broadcast %71 : vector<1x32xf32> to vector<16x32xf32>
    %74 = arith.addf %72, %73 : vector<16x32xf32>
    %cst_60 = arith.constant 0.000000e+00 : f32
    %75 = vector.broadcast %cst_60 : f32 to vector<16x32xf32>
    %76 = arith.cmpf ogt, %74, %75 : vector<16x32xf32>
    %cst_61 = arith.constant 0.00999999977 : f32
    %77 = vector.broadcast %cst_61 : f32 to vector<16x32xf32>
    %78 = arith.mulf %77, %74 : vector<16x32xf32>
    %79 = arith.select %76, %74, %78 : vector<16x32xi1>, vector<16x32xf32>
    %cst_62 = arith.constant 0.000000e+00 : f32
    %80 = vector.broadcast %cst_62 : f32 to vector<16x32xf32>
    %81 = arith.cmpf ogt, %32, %80 : vector<16x32xf32>
    %cst_63 = arith.constant -1.000000e+30 : f32
    %82 = vector.broadcast %cst_63 : f32 to vector<16x32xf32>
    %83 = arith.select %81, %79, %82 : vector<16x32xi1>, vector<16x32xf32>
    %cst_64 = arith.constant dense<0xFF800000> : vector<16xf32>
    %84 = vector.multi_reduction <maximumf>, %83, %cst_64 [1] : vector<16x32xf32> to vector<16xf32>
    %85 = vector.shape_cast %84 : vector<16xf32> to vector<16x1xf32>
    %86 = vector.broadcast %85 : vector<16x1xf32> to vector<16x32xf32>
    %87 = arith.subf %83, %86 : vector<16x32xf32>
    %88 = math.exp %87 : vector<16x32xf32>
    %89 = arith.mulf %88, %32 : vector<16x32xf32>
    %cst_65 = arith.constant dense<0.000000e+00> : vector<16xf32>
    %90 = vector.multi_reduction <add>, %89, %cst_65 [1] : vector<16x32xf32> to vector<16xf32>
    %91 = vector.shape_cast %90 : vector<16xf32> to vector<16x1xf32>
    %cst_66 = arith.constant 1.000000e-30 : f32
    %92 = vector.broadcast %cst_66 : f32 to vector<16x1xf32>
    %93 = arith.maximumf %91, %92 : vector<16x1xf32>
    %94 = tpu.reciprocal %93 {approx = true} : vector<16x1xf32> -> vector<16x1xf32>
    %95 = vector.broadcast %94 : vector<16x1xf32> to vector<16x32xf32>
    %96 = arith.mulf %89, %95 : vector<16x32xf32>
    %cst_67 = arith.constant dense<0.000000e+00> : vector<16x128xf32>
    %97 = tpu.matmul %96, %59, %cst_67 {dimension_numbers = #tpu.dot_dimension_numbers<[1], [0], [0], [1], [0, 0, 1, 1], [], []>} : vector<16x32xf32>, vector<32x128xf32>, vector<16x128xf32> -> vector<16x128xf32>
    %98 = vector.broadcast %40 : vector<1x128xf32> to vector<16x128xf32>
    %99 = arith.addf %97, %98 : vector<16x128xf32>
    %cst_68 = arith.constant 0.000000e+00 : f32
    %100 = vector.broadcast %cst_68 : f32 to vector<16x128xf32>
    %101 = arith.cmpf ogt, %99, %100 : vector<16x128xf32>
    %cst_69 = arith.constant 0.000000e+00 : f32
    %102 = vector.broadcast %cst_69 : f32 to vector<16x128xf32>
    %103 = arith.minimumf %99, %102 : vector<16x128xf32>
    %104 = math.exp %103 : vector<16x128xf32>
    %cst_70 = arith.constant 1.000000e+00 : f32
    %105 = vector.broadcast %cst_70 : f32 to vector<16x128xf32>
    %106 = arith.subf %104, %105 : vector<16x128xf32>
    %107 = arith.select %101, %99, %106 : vector<16x128xi1>, vector<16x128xf32>
    %108 = arith.truncf %107 : vector<16x128xf32> to vector<16x128xbf16>
    %cst_71 = arith.constant dense<0.000000e+00> : vector<16x384xf32>
    %109 = tpu.matmul %108, %42, %cst_71 {dimension_numbers = #tpu.dot_dimension_numbers<[1], [0], [0], [1], [0, 0, 1, 1], [], []>} : vector<16x128xbf16>, vector<128x384xbf16>, vector<16x384xf32> -> vector<16x384xf32>
    %110 = vector.broadcast %43 : vector<1x384xf32> to vector<16x384xf32>
    %111 = arith.addf %109, %110 : vector<16x384xf32>
    %112 = vector.extract_strided_slice %111 {offsets = [0, 0], sizes = [16, 128], strides = [1, 1]} : vector<16x384xf32> to vector<16x128xf32>
    %113 = vector.extract_strided_slice %65 {offsets = [0, 0], sizes = [16, 128], strides = [1, 1]} : vector<16x384xf32> to vector<16x128xf32>
    %114 = arith.addf %112, %113 : vector<16x128xf32>
    %115 = arith.negf %114 : vector<16x128xf32>
    %116 = math.exp %115 : vector<16x128xf32>
    %cst_72 = arith.constant 1.000000e+00 : f32
    %117 = vector.broadcast %cst_72 : f32 to vector<16x128xf32>
    %118 = arith.addf %117, %116 : vector<16x128xf32>
    %119 = arith.divf %117, %118 : vector<16x128xf32>
    %120 = vector.extract_strided_slice %111 {offsets = [0, 128], sizes = [16, 128], strides = [1, 1]} : vector<16x384xf32> to vector<16x128xf32>
    %121 = vector.extract_strided_slice %65 {offsets = [0, 128], sizes = [16, 128], strides = [1, 1]} : vector<16x384xf32> to vector<16x128xf32>
    %122 = arith.addf %120, %121 : vector<16x128xf32>
    %123 = arith.negf %122 : vector<16x128xf32>
    %124 = math.exp %123 : vector<16x128xf32>
    %cst_73 = arith.constant 1.000000e+00 : f32
    %125 = vector.broadcast %cst_73 : f32 to vector<16x128xf32>
    %126 = arith.addf %125, %124 : vector<16x128xf32>
    %127 = arith.divf %125, %126 : vector<16x128xf32>
    %128 = vector.extract_strided_slice %111 {offsets = [0, 256], sizes = [16, 128], strides = [1, 1]} : vector<16x384xf32> to vector<16x128xf32>
    %129 = vector.extract_strided_slice %65 {offsets = [0, 256], sizes = [16, 128], strides = [1, 1]} : vector<16x384xf32> to vector<16x128xf32>
    %130 = arith.mulf %119, %129 : vector<16x128xf32>
    %131 = arith.addf %128, %130 : vector<16x128xf32>
    %132 = math.tanh %131 : vector<16x128xf32>
    %cst_74 = arith.constant 1.000000e+00 : f32
    %133 = vector.broadcast %cst_74 : f32 to vector<16x128xf32>
    %134 = arith.subf %133, %127 : vector<16x128xf32>
    %135 = arith.mulf %134, %132 : vector<16x128xf32>
    %136 = arith.mulf %127, %57 : vector<16x128xf32>
    %137 = arith.addf %135, %136 : vector<16x128xf32>
    %cst_75 = arith.constant 0.000000e+00 : f32
    %138 = vector.broadcast %cst_75 : f32 to vector<16x128xf32>
    %139 = arith.maximumf %137, %138 : vector<16x128xf32>
    %140 = vector.broadcast %45 : vector<1x128xf32> to vector<16x128xf32>
    %141 = arith.mulf %139, %140 : vector<16x128xf32>
    %142 = vector.broadcast %46 : vector<1x128xf32> to vector<16x128xf32>
    %143 = arith.addf %141, %142 : vector<16x128xf32>
    %c0_76 = arith.constant 0 : index
    %c0_77 = arith.constant 0 : index
    %144 = vector.load %arg4[%c0_76, %c0_77] : memref<8x16xf32, #tpu.memory_space<vmem>>, vector<8x16xf32>
    %c0_78 = arith.constant 0 : index
    %c0_79 = arith.constant 0 : index
    %145 = vector.load %arg27[%c0_78, %c0_79] : memref<1x128xf32, #tpu.memory_space<vmem>>, vector<1x128xf32>
    %c0_80 = arith.constant 0 : index
    %c0_81 = arith.constant 0 : index
    %146 = vector.load %arg28[%c0_80, %c0_81] : memref<1x128xf32, #tpu.memory_space<vmem>>, vector<1x128xf32>
    %c0_82 = arith.constant 0 : index
    %c0_83 = arith.constant 0 : index
    %147 = vector.load %arg29[%c0_82, %c0_83] : memref<1x128xf32, #tpu.memory_space<vmem>>, vector<1x128xf32>
    %c0_84 = arith.constant 0 : index
    %c0_85 = arith.constant 0 : index
    %148 = vector.load %arg30[%c0_84, %c0_85] : memref<1x128xf32, #tpu.memory_space<vmem>>, vector<1x128xf32>
    %c0_86 = arith.constant 0 : index
    %c0_87 = arith.constant 0 : index
    %149 = vector.load %arg31[%c0_86, %c0_87] : memref<128x128xbf16, #tpu.memory_space<vmem>>, vector<128x128xbf16>
    %c0_88 = arith.constant 0 : index
    %c0_89 = arith.constant 0 : index
    %150 = vector.load %arg32[%c0_88, %c0_89] : memref<1x128xf32, #tpu.memory_space<vmem>>, vector<1x128xf32>
    %c0_90 = arith.constant 0 : index
    %c0_91 = arith.constant 0 : index
    %151 = vector.load %arg33[%c0_90, %c0_91] : memref<1x128xf32, #tpu.memory_space<vmem>>, vector<1x128xf32>
    %c0_92 = arith.constant 0 : index
    %c0_93 = arith.constant 0 : index
    %152 = vector.load %arg34[%c0_92, %c0_93] : memref<1x128xf32, #tpu.memory_space<vmem>>, vector<1x128xf32>
    %c0_94 = arith.constant 0 : index
    %c0_95 = arith.constant 0 : index
    %153 = vector.load %arg35[%c0_94, %c0_95] : memref<128x512xbf16, #tpu.memory_space<vmem>>, vector<128x512xbf16>
    %c0_96 = arith.constant 0 : index
    %c0_97 = arith.constant 0 : index
    %154 = vector.load %arg36[%c0_96, %c0_97] : memref<128x384xbf16, #tpu.memory_space<vmem>>, vector<128x384xbf16>
    %c0_98 = arith.constant 0 : index
    %c0_99 = arith.constant 0 : index
    %155 = vector.load %arg37[%c0_98, %c0_99] : memref<1x384xf32, #tpu.memory_space<vmem>>, vector<1x384xf32>
    %c0_100 = arith.constant 0 : index
    %c0_101 = arith.constant 0 : index
    %156 = vector.load %arg38[%c0_100, %c0_101] : memref<1x384xf32, #tpu.memory_space<vmem>>, vector<1x384xf32>
    %c0_102 = arith.constant 0 : index
    %c0_103 = arith.constant 0 : index
    %157 = vector.load %arg39[%c0_102, %c0_103] : memref<1x128xf32, #tpu.memory_space<vmem>>, vector<1x128xf32>
    %c0_104 = arith.constant 0 : index
    %c0_105 = arith.constant 0 : index
    %158 = vector.load %arg40[%c0_104, %c0_105] : memref<1x128xf32, #tpu.memory_space<vmem>>, vector<1x128xf32>
    %159 = vector.broadcast %145 : vector<1x128xf32> to vector<16x128xf32>
    %160 = arith.mulf %143, %159 : vector<16x128xf32>
    %161 = vector.broadcast %146 : vector<1x128xf32> to vector<16x128xf32>
    %162 = arith.addf %160, %161 : vector<16x128xf32>
    %cst_106 = arith.constant dense<0.000000e+00> : vector<8x128xf32>
    %163 = tpu.matmul %144, %162, %cst_106 {dimension_numbers = #tpu.dot_dimension_numbers<[1], [0], [0], [1], [0, 0, 1, 1], [], []>} : vector<8x16xf32>, vector<16x128xf32>, vector<8x128xf32> -> vector<8x128xf32>
    %cst_107 = arith.constant 0.000000e+00 : f32
    %164 = vector.broadcast %cst_107 : f32 to vector<8x128xf32>
    %165 = arith.maximumf %163, %164 : vector<8x128xf32>
    %166 = vector.broadcast %147 : vector<1x128xf32> to vector<8x128xf32>
    %167 = arith.mulf %165, %166 : vector<8x128xf32>
    %168 = vector.broadcast %148 : vector<1x128xf32> to vector<8x128xf32>
    %169 = arith.addf %167, %168 : vector<8x128xf32>
    %170 = arith.truncf %162 : vector<16x128xf32> to vector<16x128xbf16>
    %cst_108 = arith.constant dense<0.000000e+00> : vector<16x128xf32>
    %171 = tpu.matmul %170, %149, %cst_108 {dimension_numbers = #tpu.dot_dimension_numbers<[1], [0], [0], [1], [0, 0, 1, 1], [], []>} : vector<16x128xbf16>, vector<128x128xbf16>, vector<16x128xf32> -> vector<16x128xf32>
    %172 = arith.truncf %169 : vector<8x128xf32> to vector<8x128xbf16>
    %cst_109 = arith.constant dense<0.000000e+00> : vector<8x512xf32>
    %173 = tpu.matmul %172, %153, %cst_109 {dimension_numbers = #tpu.dot_dimension_numbers<[1], [0], [0], [1], [0, 0, 1, 1], [], []>} : vector<8x128xbf16>, vector<128x512xbf16>, vector<8x512xf32> -> vector<8x512xf32>
    %174 = vector.extract_strided_slice %173 {offsets = [0, 0], sizes = [8, 128], strides = [1, 1]} : vector<8x512xf32> to vector<8x128xf32>
    %175 = vector.extract_strided_slice %173 {offsets = [0, 128], sizes = [8, 384], strides = [1, 1]} : vector<8x512xf32> to vector<8x384xf32>
    %176 = vector.broadcast %156 : vector<1x384xf32> to vector<8x384xf32>
    %177 = arith.addf %175, %176 : vector<8x384xf32>
    %178 = vector.broadcast %151 : vector<1x128xf32> to vector<8x128xf32>
    %179 = arith.mulf %174, %178 : vector<8x128xf32>
    %cst_110 = arith.constant dense<0.000000e+00> : vector<8xf32>
    %180 = vector.multi_reduction <add>, %179, %cst_110 [1] : vector<8x128xf32> to vector<8xf32>
    %181 = vector.shape_cast %180 : vector<8xf32> to vector<8x1xf32>
    %182 = tpu.transpose %171, [1, 0] : vector<16x128xf32> -> vector<128x16xf32>
    %cst_111 = arith.constant dense<0.000000e+00> : vector<1x16xf32>
    %183 = tpu.matmul %150, %182, %cst_111 {dimension_numbers = #tpu.dot_dimension_numbers<[1], [0], [0], [1], [0, 0, 1, 1], [], []>} : vector<1x128xf32>, vector<128x16xf32>, vector<1x16xf32> -> vector<1x16xf32>
    %184 = vector.broadcast %181 : vector<8x1xf32> to vector<8x16xf32>
    %185 = vector.broadcast %183 : vector<1x16xf32> to vector<8x16xf32>
    %186 = arith.addf %184, %185 : vector<8x16xf32>
    %cst_112 = arith.constant 0.000000e+00 : f32
    %187 = vector.broadcast %cst_112 : f32 to vector<8x16xf32>
    %188 = arith.cmpf ogt, %186, %187 : vector<8x16xf32>
    %cst_113 = arith.constant 0.00999999977 : f32
    %189 = vector.broadcast %cst_113 : f32 to vector<8x16xf32>
    %190 = arith.mulf %189, %186 : vector<8x16xf32>
    %191 = arith.select %188, %186, %190 : vector<8x16xi1>, vector<8x16xf32>
    %cst_114 = arith.constant 0.000000e+00 : f32
    %192 = vector.broadcast %cst_114 : f32 to vector<8x16xf32>
    %193 = arith.cmpf ogt, %144, %192 : vector<8x16xf32>
    %cst_115 = arith.constant -1.000000e+30 : f32
    %194 = vector.broadcast %cst_115 : f32 to vector<8x16xf32>
    %195 = arith.select %193, %191, %194 : vector<8x16xi1>, vector<8x16xf32>
    %cst_116 = arith.constant dense<0xFF800000> : vector<8xf32>
    %196 = vector.multi_reduction <maximumf>, %195, %cst_116 [1] : vector<8x16xf32> to vector<8xf32>
    %197 = vector.shape_cast %196 : vector<8xf32> to vector<8x1xf32>
    %198 = vector.broadcast %197 : vector<8x1xf32> to vector<8x16xf32>
    %199 = arith.subf %195, %198 : vector<8x16xf32>
    %200 = math.exp %199 : vector<8x16xf32>
    %201 = arith.mulf %200, %144 : vector<8x16xf32>
    %cst_117 = arith.constant dense<0.000000e+00> : vector<8xf32>
    %202 = vector.multi_reduction <add>, %201, %cst_117 [1] : vector<8x16xf32> to vector<8xf32>
    %203 = vector.shape_cast %202 : vector<8xf32> to vector<8x1xf32>
    %cst_118 = arith.constant 1.000000e-30 : f32
    %204 = vector.broadcast %cst_118 : f32 to vector<8x1xf32>
    %205 = arith.maximumf %203, %204 : vector<8x1xf32>
    %206 = tpu.reciprocal %205 {approx = true} : vector<8x1xf32> -> vector<8x1xf32>
    %207 = vector.broadcast %206 : vector<8x1xf32> to vector<8x16xf32>
    %208 = arith.mulf %201, %207 : vector<8x16xf32>
    %cst_119 = arith.constant dense<0.000000e+00> : vector<8x128xf32>
    %209 = tpu.matmul %208, %171, %cst_119 {dimension_numbers = #tpu.dot_dimension_numbers<[1], [0], [0], [1], [0, 0, 1, 1], [], []>} : vector<8x16xf32>, vector<16x128xf32>, vector<8x128xf32> -> vector<8x128xf32>
    %210 = vector.broadcast %152 : vector<1x128xf32> to vector<8x128xf32>
    %211 = arith.addf %209, %210 : vector<8x128xf32>
    %cst_120 = arith.constant 0.000000e+00 : f32
    %212 = vector.broadcast %cst_120 : f32 to vector<8x128xf32>
    %213 = arith.cmpf ogt, %211, %212 : vector<8x128xf32>
    %cst_121 = arith.constant 0.000000e+00 : f32
    %214 = vector.broadcast %cst_121 : f32 to vector<8x128xf32>
    %215 = arith.minimumf %211, %214 : vector<8x128xf32>
    %216 = math.exp %215 : vector<8x128xf32>
    %cst_122 = arith.constant 1.000000e+00 : f32
    %217 = vector.broadcast %cst_122 : f32 to vector<8x128xf32>
    %218 = arith.subf %216, %217 : vector<8x128xf32>
    %219 = arith.select %213, %211, %218 : vector<8x128xi1>, vector<8x128xf32>
    %220 = arith.truncf %219 : vector<8x128xf32> to vector<8x128xbf16>
    %cst_123 = arith.constant dense<0.000000e+00> : vector<8x384xf32>
    %221 = tpu.matmul %220, %154, %cst_123 {dimension_numbers = #tpu.dot_dimension_numbers<[1], [0], [0], [1], [0, 0, 1, 1], [], []>} : vector<8x128xbf16>, vector<128x384xbf16>, vector<8x384xf32> -> vector<8x384xf32>
    %222 = vector.broadcast %155 : vector<1x384xf32> to vector<8x384xf32>
    %223 = arith.addf %221, %222 : vector<8x384xf32>
    %224 = vector.extract_strided_slice %223 {offsets = [0, 0], sizes = [8, 128], strides = [1, 1]} : vector<8x384xf32> to vector<8x128xf32>
    %225 = vector.extract_strided_slice %177 {offsets = [0, 0], sizes = [8, 128], strides = [1, 1]} : vector<8x384xf32> to vector<8x128xf32>
    %226 = arith.addf %224, %225 : vector<8x128xf32>
    %227 = arith.negf %226 : vector<8x128xf32>
    %228 = math.exp %227 : vector<8x128xf32>
    %cst_124 = arith.constant 1.000000e+00 : f32
    %229 = vector.broadcast %cst_124 : f32 to vector<8x128xf32>
    %230 = arith.addf %229, %228 : vector<8x128xf32>
    %231 = arith.divf %229, %230 : vector<8x128xf32>
    %232 = vector.extract_strided_slice %223 {offsets = [0, 128], sizes = [8, 128], strides = [1, 1]} : vector<8x384xf32> to vector<8x128xf32>
    %233 = vector.extract_strided_slice %177 {offsets = [0, 128], sizes = [8, 128], strides = [1, 1]} : vector<8x384xf32> to vector<8x128xf32>
    %234 = arith.addf %232, %233 : vector<8x128xf32>
    %235 = arith.negf %234 : vector<8x128xf32>
    %236 = math.exp %235 : vector<8x128xf32>
    %cst_125 = arith.constant 1.000000e+00 : f32
    %237 = vector.broadcast %cst_125 : f32 to vector<8x128xf32>
    %238 = arith.addf %237, %236 : vector<8x128xf32>
    %239 = arith.divf %237, %238 : vector<8x128xf32>
    %240 = vector.extract_strided_slice %223 {offsets = [0, 256], sizes = [8, 128], strides = [1, 1]} : vector<8x384xf32> to vector<8x128xf32>
    %241 = vector.extract_strided_slice %177 {offsets = [0, 256], sizes = [8, 128], strides = [1, 1]} : vector<8x384xf32> to vector<8x128xf32>
    %242 = arith.mulf %231, %241 : vector<8x128xf32>
    %243 = arith.addf %240, %242 : vector<8x128xf32>
    %244 = math.tanh %243 : vector<8x128xf32>
    %cst_126 = arith.constant 1.000000e+00 : f32
    %245 = vector.broadcast %cst_126 : f32 to vector<8x128xf32>
    %246 = arith.subf %245, %239 : vector<8x128xf32>
    %247 = arith.mulf %246, %244 : vector<8x128xf32>
    %248 = arith.mulf %239, %169 : vector<8x128xf32>
    %249 = arith.addf %247, %248 : vector<8x128xf32>
    %cst_127 = arith.constant 0.000000e+00 : f32
    %250 = vector.broadcast %cst_127 : f32 to vector<8x128xf32>
    %251 = arith.maximumf %249, %250 : vector<8x128xf32>
    %252 = vector.broadcast %157 : vector<1x128xf32> to vector<8x128xf32>
    %253 = arith.mulf %251, %252 : vector<8x128xf32>
    %254 = vector.broadcast %158 : vector<1x128xf32> to vector<8x128xf32>
    %255 = arith.addf %253, %254 : vector<8x128xf32>
    %c0_128 = arith.constant 0 : index
    %c0_129 = arith.constant 0 : index
    %256 = vector.load %arg41[%c0_128, %c0_129] : memref<128x128xbf16, #tpu.memory_space<vmem>>, vector<128x128xbf16>
    %c0_130 = arith.constant 0 : index
    %c0_131 = arith.constant 0 : index
    %257 = vector.load %arg42[%c0_130, %c0_131] : memref<1x128xf32, #tpu.memory_space<vmem>>, vector<1x128xf32>
    %258 = arith.truncf %255 : vector<8x128xf32> to vector<8x128xbf16>
    %cst_132 = arith.constant dense<0.000000e+00> : vector<8x128xf32>
    %259 = tpu.matmul %258, %256, %cst_132 {dimension_numbers = #tpu.dot_dimension_numbers<[1], [0], [0], [1], [0, 0, 1, 1], [], []>} : vector<8x128xbf16>, vector<128x128xbf16>, vector<8x128xf32> -> vector<8x128xf32>
    %260 = vector.broadcast %257 : vector<1x128xf32> to vector<8x128xf32>
    %261 = arith.addf %259, %260 : vector<8x128xf32>
    %cst_133 = arith.constant 0.000000e+00 : f32
    %262 = vector.broadcast %cst_133 : f32 to vector<8x128xf32>
    %263 = arith.maximumf %261, %262 : vector<8x128xf32>
    %c0_134 = arith.constant 0 : index
    %c0_135 = arith.constant 0 : index
    %264 = vector.load %arg43[%c0_134, %c0_135] : memref<128x128xbf16, #tpu.memory_space<vmem>>, vector<128x128xbf16>
    %c0_136 = arith.constant 0 : index
    %c0_137 = arith.constant 0 : index
    %265 = vector.load %arg44[%c0_136, %c0_137] : memref<1x128xf32, #tpu.memory_space<vmem>>, vector<1x128xf32>
    %266 = arith.truncf %263 : vector<8x128xf32> to vector<8x128xbf16>
    %cst_138 = arith.constant dense<0.000000e+00> : vector<8x128xf32>
    %267 = tpu.matmul %266, %264, %cst_138 {dimension_numbers = #tpu.dot_dimension_numbers<[1], [0], [0], [1], [0, 0, 1, 1], [], []>} : vector<8x128xbf16>, vector<128x128xbf16>, vector<8x128xf32> -> vector<8x128xf32>
    %268 = vector.broadcast %265 : vector<1x128xf32> to vector<8x128xf32>
    %269 = arith.addf %267, %268 : vector<8x128xf32>
    %c0_139 = arith.constant 0 : index
    %c0_140 = arith.constant 0 : index
    %270 = vector.load %arg45[%c0_139, %c0_140] : memref<8x128xf32, #tpu.memory_space<vmem>>, vector<8x128xf32>
    tpu.vector_store %arg45[%c0_139, %c0_140], %269 {strides = array<i32>} : memref<8x128xf32, #tpu.memory_space<vmem>>, vector<8x128xf32>,
    return
  }
  func.func @transform_0(%arg0: i32) -> (i32, i32) {
    %c0_i32 = arith.constant 0 : i32
    %c0_i32_0 = arith.constant 0 : i32
    %c0_i32_1 = arith.constant 0 : i32
    return %c0_i32, %c0_i32_0 : i32, i32
  }
  func.func @transform_1(%arg0: i32) -> (i32, i32) {
    %c0_i32 = arith.constant 0 : i32
    %c0_i32_0 = arith.constant 0 : i32
    %c0_i32_1 = arith.constant 0 : i32
    return %c0_i32, %c0_i32_0 : i32, i32
  }
  func.func @transform_2(%arg0: i32) -> (i32, i32) {
    %c0_i32 = arith.constant 0 : i32
    %c0_i32_0 = arith.constant 0 : i32
    %c0_i32_1 = arith.constant 0 : i32
    return %c0_i32, %c0_i32_0 : i32, i32
  }
  func.func @transform_3(%arg0: i32) -> (i32, i32) {
    %c0_i32 = arith.constant 0 : i32
    %c0_i32_0 = arith.constant 0 : i32
    %c0_i32_1 = arith.constant 0 : i32
    return %c0_i32, %c0_i32_0 : i32, i32
  }
  func.func @transform_4(%arg0: i32) -> (i32, i32) {
    %c0_i32 = arith.constant 0 : i32
    %c0_i32_0 = arith.constant 0 : i32
    %c0_i32_1 = arith.constant 0 : i32
    return %c0_i32, %c0_i32_0 : i32, i32
  }
  func.func @transform_5(%arg0: i32) -> (i32, i32) {
    %c0_i32 = arith.constant 0 : i32
    %c0_i32_0 = arith.constant 0 : i32
    %c0_i32_1 = arith.constant 0 : i32
    return %c0_i32, %c0_i32_0 : i32, i32
  }
  func.func @transform_6(%arg0: i32) -> (i32, i32) {
    %c0_i32 = arith.constant 0 : i32
    %c0_i32_0 = arith.constant 0 : i32
    %c0_i32_1 = arith.constant 0 : i32
    return %c0_i32, %c0_i32_0 : i32, i32
  }
  func.func @transform_7(%arg0: i32) -> (i32, i32) {
    %c0_i32 = arith.constant 0 : i32
    %c0_i32_0 = arith.constant 0 : i32
    %c0_i32_1 = arith.constant 0 : i32
    return %c0_i32, %c0_i32_0 : i32, i32
  }
  func.func @transform_8(%arg0: i32) -> (i32, i32) {
    %c0_i32 = arith.constant 0 : i32
    %c0_i32_0 = arith.constant 0 : i32
    %c0_i32_1 = arith.constant 0 : i32
    return %c0_i32, %c0_i32_0 : i32, i32
  }
  func.func @transform_9(%arg0: i32) -> (i32, i32) {
    %c0_i32 = arith.constant 0 : i32
    %c0_i32_0 = arith.constant 0 : i32
    %c0_i32_1 = arith.constant 0 : i32
    return %c0_i32, %c0_i32_0 : i32, i32
  }
  func.func @transform_10(%arg0: i32) -> (i32, i32) {
    %c0_i32 = arith.constant 0 : i32
    %c0_i32_0 = arith.constant 0 : i32
    %c0_i32_1 = arith.constant 0 : i32
    return %c0_i32, %c0_i32_0 : i32, i32
  }
  func.func @transform_11(%arg0: i32) -> (i32, i32) {
    %c0_i32 = arith.constant 0 : i32
    %c0_i32_0 = arith.constant 0 : i32
    %c0_i32_1 = arith.constant 0 : i32
    return %c0_i32, %c0_i32_0 : i32, i32
  }
  func.func @transform_12(%arg0: i32) -> (i32, i32) {
    %c0_i32 = arith.constant 0 : i32
    %c0_i32_0 = arith.constant 0 : i32
    %c0_i32_1 = arith.constant 0 : i32
    return %c0_i32, %c0_i32_0 : i32, i32
  }
  func.func @transform_13(%arg0: i32) -> (i32, i32) {
    %c0_i32 = arith.constant 0 : i32
    %c0_i32_0 = arith.constant 0 : i32
    %c0_i32_1 = arith.constant 0 : i32
    return %c0_i32, %c0_i32_0 : i32, i32
  }
  func.func @transform_14(%arg0: i32) -> (i32, i32) {
    %c0_i32 = arith.constant 0 : i32
    %c0_i32_0 = arith.constant 0 : i32
    %c0_i32_1 = arith.constant 0 : i32
    return %c0_i32, %c0_i32_0 : i32, i32
  }
  func.func @transform_15(%arg0: i32) -> (i32, i32) {
    %c0_i32 = arith.constant 0 : i32
    %c0_i32_0 = arith.constant 0 : i32
    %c0_i32_1 = arith.constant 0 : i32
    return %c0_i32, %c0_i32_0 : i32, i32
  }
  func.func @transform_16(%arg0: i32) -> (i32, i32) {
    %c0_i32 = arith.constant 0 : i32
    %c0_i32_0 = arith.constant 0 : i32
    %c0_i32_1 = arith.constant 0 : i32
    return %c0_i32, %c0_i32_0 : i32, i32
  }
  func.func @transform_17(%arg0: i32) -> (i32, i32) {
    %c0_i32 = arith.constant 0 : i32
    %c0_i32_0 = arith.constant 0 : i32
    %c0_i32_1 = arith.constant 0 : i32
    return %c0_i32, %c0_i32_0 : i32, i32
  }
  func.func @transform_18(%arg0: i32) -> (i32, i32) {
    %c0_i32 = arith.constant 0 : i32
    %c0_i32_0 = arith.constant 0 : i32
    %c0_i32_1 = arith.constant 0 : i32
    return %c0_i32, %c0_i32_0 : i32, i32
  }
  func.func @transform_19(%arg0: i32) -> (i32, i32) {
    %c0_i32 = arith.constant 0 : i32
    %c0_i32_0 = arith.constant 0 : i32
    %c0_i32_1 = arith.constant 0 : i32
    return %c0_i32, %c0_i32_0 : i32, i32
  }
  func.func @transform_20(%arg0: i32) -> (i32, i32) {
    %c0_i32 = arith.constant 0 : i32
    %c0_i32_0 = arith.constant 0 : i32
    %c0_i32_1 = arith.constant 0 : i32
    return %c0_i32, %c0_i32_0 : i32, i32
  }
  func.func @transform_21(%arg0: i32) -> (i32, i32) {
    %c0_i32 = arith.constant 0 : i32
    %c0_i32_0 = arith.constant 0 : i32
    %c0_i32_1 = arith.constant 0 : i32
    return %c0_i32, %c0_i32_0 : i32, i32
  }
  func.func @transform_22(%arg0: i32) -> (i32, i32) {
    %c0_i32 = arith.constant 0 : i32
    %c0_i32_0 = arith.constant 0 : i32
    %c0_i32_1 = arith.constant 0 : i32
    return %c0_i32, %c0_i32_0 : i32, i32
  }
  func.func @transform_23(%arg0: i32) -> (i32, i32) {
    %c0_i32 = arith.constant 0 : i32
    %c0_i32_0 = arith.constant 0 : i32
    %c0_i32_1 = arith.constant 0 : i32
    return %c0_i32, %c0_i32_0 : i32, i32
  }
  func.func @transform_24(%arg0: i32) -> (i32, i32) {
    %c0_i32 = arith.constant 0 : i32
    %c0_i32_0 = arith.constant 0 : i32
    %c0_i32_1 = arith.constant 0 : i32
    return %c0_i32, %c0_i32_0 : i32, i32
  }
  func.func @transform_25(%arg0: i32) -> (i32, i32) {
    %c0_i32 = arith.constant 0 : i32
    %c0_i32_0 = arith.constant 0 : i32
    %c0_i32_1 = arith.constant 0 : i32
    return %c0_i32, %c0_i32_0 : i32, i32
  }
  func.func @transform_26(%arg0: i32) -> (i32, i32) {
    %c0_i32 = arith.constant 0 : i32
    %c0_i32_0 = arith.constant 0 : i32
    %c0_i32_1 = arith.constant 0 : i32
    return %c0_i32, %c0_i32_0 : i32, i32
  }
  func.func @transform_27(%arg0: i32) -> (i32, i32) {
    %c0_i32 = arith.constant 0 : i32
    %c0_i32_0 = arith.constant 0 : i32
    %c0_i32_1 = arith.constant 0 : i32
    return %c0_i32, %c0_i32_0 : i32, i32
  }
  func.func @transform_28(%arg0: i32) -> (i32, i32) {
    %c0_i32 = arith.constant 0 : i32
    %c0_i32_0 = arith.constant 0 : i32
    %c0_i32_1 = arith.constant 0 : i32
    return %c0_i32, %c0_i32_0 : i32, i32
  }
  func.func @transform_29(%arg0: i32) -> (i32, i32) {
    %c0_i32 = arith.constant 0 : i32
    %c0_i32_0 = arith.constant 0 : i32
    %c0_i32_1 = arith.constant 0 : i32
    return %c0_i32, %c0_i32_0 : i32, i32
  }
  func.func @transform_30(%arg0: i32) -> (i32, i32) {
    %c0_i32 = arith.constant 0 : i32
    %c0_i32_0 = arith.constant 0 : i32
    %c0_i32_1 = arith.constant 0 : i32
    return %c0_i32, %c0_i32_0 : i32, i32
  }
  func.func @transform_31(%arg0: i32) -> (i32, i32) {
    %c0_i32 = arith.constant 0 : i32
    %c0_i32_0 = arith.constant 0 : i32
    %c0_i32_1 = arith.constant 0 : i32
    return %c0_i32, %c0_i32_0 : i32, i32
  }
  func.func @transform_32(%arg0: i32) -> (i32, i32) {
    %c0_i32 = arith.constant 0 : i32
    %c0_i32_0 = arith.constant 0 : i32
    %c0_i32_1 = arith.constant 0 : i32
    return %c0_i32, %c0_i32_0 : i32, i32
  }
  func.func @transform_33(%arg0: i32) -> (i32, i32) {
    %c0_i32 = arith.constant 0 : i32
    %c0_i32_0 = arith.constant 0 : i32
    %c0_i32_1 = arith.constant 0 : i32
    return %c0_i32, %c0_i32_0 : i32, i32
  }
  func.func @transform_34(%arg0: i32) -> (i32, i32) {
    %c0_i32 = arith.constant 0 : i32
    %c0_i32_0 = arith.constant 0 : i32
    %c0_i32_1 = arith.constant 0 : i32
    return %c0_i32, %c0_i32_0 : i32, i32
  }
  func.func @transform_35(%arg0: i32) -> (i32, i32) {
    %c0_i32 = arith.constant 0 : i32
    %c0_i32_0 = arith.constant 0 : i32
    %c0_i32_1 = arith.constant 0 : i32
    return %c0_i32, %c0_i32_0 : i32, i32
  }
  func.func @transform_36(%arg0: i32) -> (i32, i32) {
    %c0_i32 = arith.constant 0 : i32
    %c0_i32_0 = arith.constant 0 : i32
    %c0_i32_1 = arith.constant 0 : i32
    return %c0_i32, %c0_i32_0 : i32, i32
  }
  func.func @transform_37(%arg0: i32) -> (i32, i32) {
    %c0_i32 = arith.constant 0 : i32
    %c0_i32_0 = arith.constant 0 : i32
    %c0_i32_1 = arith.constant 0 : i32
    return %c0_i32, %c0_i32_0 : i32, i32
  }
  func.func @transform_38(%arg0: i32) -> (i32, i32) {
    %c0_i32 = arith.constant 0 : i32
    %c0_i32_0 = arith.constant 0 : i32
    %c0_i32_1 = arith.constant 0 : i32
    return %c0_i32, %c0_i32_0 : i32, i32
  }
  func.func @transform_39(%arg0: i32) -> (i32, i32) {
    %c0_i32 = arith.constant 0 : i32
    %c0_i32_0 = arith.constant 0 : i32
    %c0_i32_1 = arith.constant 0 : i32
    return %c0_i32, %c0_i32_0 : i32, i32
  }
  func.func @transform_40(%arg0: i32) -> (i32, i32) {
    %c0_i32 = arith.constant 0 : i32
    %c0_i32_0 = arith.constant 0 : i32
    %c0_i32_1 = arith.constant 0 : i32
    return %c0_i32, %c0_i32_0 : i32, i32
  }
  func.func @transform_41(%arg0: i32) -> (i32, i32) {
    %c0_i32 = arith.constant 0 : i32
    %c0_i32_0 = arith.constant 0 : i32
    %c0_i32_1 = arith.constant 0 : i32
    return %c0_i32, %c0_i32_0 : i32, i32
  }
  func.func @transform_42(%arg0: i32) -> (i32, i32) {
    %c0_i32 = arith.constant 0 : i32
    %c0_i32_0 = arith.constant 0 : i32
    %c0_i32_1 = arith.constant 0 : i32
    return %c0_i32, %c0_i32_0 : i32, i32
  }
  func.func @transform_43(%arg0: i32) -> (i32, i32) {
    %c0_i32 = arith.constant 0 : i32
    %c0_i32_0 = arith.constant 0 : i32
    %c0_i32_1 = arith.constant 0 : i32
    return %c0_i32, %c0_i32_0 : i32, i32
  }
  func.func @transform_44(%arg0: i32) -> (i32, i32) {
    %c0_i32 = arith.constant 0 : i32
    %c0_i32_0 = arith.constant 0 : i32
    %c0_i32_1 = arith.constant 0 : i32
    return %c0_i32, %c0_i32_0 : i32, i32
  }
}

</mosaic_0001>

<llo_original>
// kernel: ttmernet_forward.1
$region0: #{ttmernet_forward.1}
  #allocation0 [shape = 'u32[]', space=smem, size = 0x4, offset = 0x4, fixed_abs, tag = 'smem constant byte address 0x4 - core index']
  #allocation1 [shape = 'u32[72,128]{1,0:T(1,128)}', space=vmem, size = 0x9000, scoped, tag = 'internal scratch']
  %s0 = inlined_call_operand.smem [shape: u32[45], index: -1, kind: input, shape index: {}]
  %s1 = sld [smem:[%s0]]
  %s2 = scalar_lea.smem %s0, 1
  %s3 = sld [smem:[%s2]]
  %s4 = scalar_lea.smem %s0, 2
  %s5 = sld [smem:[%s4]]
  %s6 = scalar_lea.smem %s0, 3
  %s7 = sld [smem:[%s6]]
  %s8 = scalar_lea.smem %s0, 4
  %s9 = sld [smem:[%s8]]
  %s10 = scalar_lea.smem %s0, 5
  %s11 = sld [smem:[%s10]]
  %s12 = scalar_lea.smem %s0, 6
  %s13 = sld [smem:[%s12]]
  %s14 = scalar_lea.smem %s0, 7
  %s15 = sld [smem:[%s14]]
  %s16 = scalar_lea.smem %s0, 8
  %s17 = sld [smem:[%s16]]
  %s18 = scalar_lea.smem %s0, 9
  %s19 = sld [smem:[%s18]]
  %s20 = scalar_lea.smem %s0, 10
  %s21 = sld [smem:[%s20]]
  %s22 = scalar_lea.smem %s0, 11
  %s23 = sld [smem:[%s22]]
  %s24 = scalar_lea.smem %s0, 12
  %s25 = sld [smem:[%s24]]
  %s26 = scalar_lea.smem %s0, 13
  %s27 = sld [smem:[%s26]]
  %s28 = scalar_lea.smem %s0, 14
  %s29 = sld [smem:[%s28]]
  %s30 = scalar_lea.smem %s0, 15
  %s31 = sld [smem:[%s30]]
  %s32 = scalar_lea.smem %s0, 16
  %s33 = sld [smem:[%s32]]
  %s34 = scalar_lea.smem %s0, 17
  %s35 = sld [smem:[%s34]]
  %s36 = scalar_lea.smem %s0, 18
  %s37 = sld [smem:[%s36]]
  %s38 = scalar_lea.smem %s0, 19
  %s39 = sld [smem:[%s38]]
  %s40 = scalar_lea.smem %s0, 20
  %s41 = sld [smem:[%s40]]
  %s42 = scalar_lea.smem %s0, 21
  %s43 = sld [smem:[%s42]]
  %s44 = scalar_lea.smem %s0, 22
  %s45 = sld [smem:[%s44]]
  %s46 = scalar_lea.smem %s0, 23
  %s47 = sld [smem:[%s46]]
  %s48 = scalar_lea.smem %s0, 24
  %s49 = sld [smem:[%s48]]
  %s50 = scalar_lea.smem %s0, 25
  %s51 = sld [smem:[%s50]]
  %s52 = scalar_lea.smem %s0, 26
  %s53 = sld [smem:[%s52]]
  %s54 = scalar_lea.smem %s0, 27
  %s55 = sld [smem:[%s54]]
  %s56 = scalar_lea.smem %s0, 28
  %s57 = sld [smem:[%s56]]
  %s58 = scalar_lea.smem %s0, 29
  %s59 = sld [smem:[%s58]]
  %s60 = scalar_lea.smem %s0, 30
  %s61 = sld [smem:[%s60]]
  %s62 = scalar_lea.smem %s0, 31
  %s63 = sld [smem:[%s62]]
  %s64 = scalar_lea.smem %s0, 32
  %s65 = sld [smem:[%s64]]
  %s66 = scalar_lea.smem %s0, 33
  %s67 = sld [smem:[%s66]]
  %s68 = scalar_lea.smem %s0, 34
  %s69 = sld [smem:[%s68]]
  %s70 = scalar_lea.smem %s0, 35
  %s71 = sld [smem:[%s70]]
  %s72 = scalar_lea.smem %s0, 36
  %s73 = sld [smem:[%s72]]
  %s74 = scalar_lea.smem %s0, 37
  %s75 = sld [smem:[%s74]]
  %s76 = scalar_lea.smem %s0, 38
  %s77 = sld [smem:[%s76]]
  %s78 = scalar_lea.smem %s0, 39
  %s79 = sld [smem:[%s78]]
  %s80 = scalar_lea.smem %s0, 40
  %s81 = sld [smem:[%s80]]
  %s82 = scalar_lea.smem %s0, 41
  %s83 = sld [smem:[%s82]]
  %s84 = scalar_lea.smem %s0, 42
  %s85 = sld [smem:[%s84]]
  %s86 = scalar_lea.smem %s0, 43
  %s87 = sld [smem:[%s86]]
  %s88 = scalar_lea.smem %s0, 44
  %s89 = sld [smem:[%s88]]
  %s90 = sld [smem:[#allocation0]]
  $region354: #{ttmernet_forward.1} parent=0
    _
  %s92 = ssub.s32 1, %s90
  %s93 = scalar_select 0, %s92, %s90
  $region1: #{ttmernet_forward.1} parent=0
    #allocation2 [shape = 'u8[16384]{0}', space=vmem, size = 0x4000, scoped, tag = 'input window, operand 1, single buffered']
    #allocation3 [shape = 's32[1]{0}', space=sflag, size = 0x4, scoped, tag = 'scoped memory for ttmernet_forward.1']
    #allocation4 [shape = 'u8[8192]{0}', space=vmem, size = 0x2000, scoped, tag = 'input window, operand 2, single buffered']
    #allocation5 [shape = 's32[1]{0}', space=sflag, size = 0x4, scoped, tag = 'scoped memory for ttmernet_forward.1']
    #allocation6 [shape = 'u8[32768]{0}', space=vmem, size = 0x8000, scoped, tag = 'input window, operand 4, single buffered']
    #allocation7 [shape = 'u8[512]{0}', space=vmem, size = 0x400, scoped, tag = 'input window, operand 5, single buffered']
    #allocation8 [shape = 's32[1]{0}', space=sflag, size = 0x4, scoped, tag = 'scoped memory for ttmernet_forward.1']
    #allocation9 [shape = 'u8[512]{0}', space=vmem, size = 0x400, scoped, tag = 'input window, operand 6, single buffered']
    #allocation10 [shape = 'u8[512]{0}', space=vmem, size = 0x400, scoped, tag = 'input window, operand 7, single buffered']
    #allocation11 [shape = 's32[1]{0}', space=sflag, size = 0x4, scoped, tag = 'scoped memory for ttmernet_forward.1']
    #allocation12 [shape = 'u8[32768]{0}', space=vmem, size = 0x8000, scoped, tag = 'input window, operand 8, single buffered']
    #allocation13 [shape = 'u8[512]{0}', space=vmem, size = 0x400, scoped, tag = 'input window, operand 9, single buffered']
    #allocation14 [shape = 's32[1]{0}', space=sflag, size = 0x4, scoped, tag = 'scoped memory for ttmernet_forward.1']
    #allocation15 [shape = 'u8[512]{0}', space=vmem, size = 0x400, scoped, tag = 'input window, operand 10, single buffered']
    #allocation16 [shape = 'u8[512]{0}', space=vmem, size = 0x400, scoped, tag = 'input window, operand 11, single buffered']
    #allocation17 [shape = 's32[1]{0}', space=sflag, size = 0x4, scoped, tag = 'scoped memory for ttmernet_forward.1']
    #allocation18 [shape = 'u8[512]{0}', space=vmem, size = 0x400, scoped, tag = 'input window, operand 12, single buffered']
    #allocation19 [shape = 'u8[512]{0}', space=vmem, size = 0x400, scoped, tag = 'input window, operand 13, single buffered']
    #allocation20 [shape = 's32[1]{0}', space=sflag, size = 0x4, scoped, tag = 'scoped memory for ttmernet_forward.1']
    #allocation21 [shape = 'u8[512]{0}', space=vmem, size = 0x400, scoped, tag = 'input window, operand 14, single buffered']
    #allocation22 [shape = 'u8[512]{0}', space=vmem, size = 0x400, scoped, tag = 'input window, operand 15, single buffered']
    #allocation23 [shape = 's32[1]{0}', space=sflag, size = 0x4, scoped, tag = 'scoped memory for ttmernet_forward.1']
    #allocation24 [shape = 'u8[32768]{0}', space=vmem, size = 0x8000, scoped, tag = 'input window, operand 16, single buffered']
    #allocation25 [shape = 'u8[512]{0}', space=vmem, size = 0x400, scoped, tag = 'input window, operand 17, single buffered']
    #allocation26 [shape = 's32[1]{0}', space=sflag, size = 0x4, scoped, tag = 'scoped memory for ttmernet_forward.1']
    #allocation27 [shape = 'u8[512]{0}', space=vmem, size = 0x400, scoped, tag = 'input window, operand 18, single buffered']
    #allocation28 [shape = 'u8[512]{0}', space=vmem, size = 0x400, scoped, tag = 'input window, operand 19, single buffered']
    #allocation29 [shape = 's32[1]{0}', space=sflag, size = 0x4, scoped, tag = 'scoped memory for ttmernet_forward.1']
    #allocation30 [shape = 'u8[131072]{0}', space=vmem, size = 0x20000, scoped, tag = 'input window, operand 20, single buffered']
    #allocation31 [shape = 'u8[98304]{0}', space=vmem, size = 0x18000, scoped, tag = 'input window, operand 21, single buffered']
    #allocation32 [shape = 's32[1]{0}', space=sflag, size = 0x4, scoped, tag = 'scoped memory for ttmernet_forward.1']
    #allocation33 [shape = 'u8[1536]{0}', space=vmem, size = 0x800, scoped, tag = 'input window, operand 22, single buffered']
    #allocation34 [shape = 'u8[1536]{0}', space=vmem, size = 0x800, scoped, tag = 'input window, operand 23, single buffered']
    #allocation35 [shape = 's32[1]{0}', space=sflag, size = 0x4, scoped, tag = 'scoped memory for ttmernet_forward.1']
    #allocation36 [shape = 'u8[512]{0}', space=vmem, size = 0x400, scoped, tag = 'input window, operand 24, single buffered']
    #allocation37 [shape = 'u8[512]{0}', space=vmem, size = 0x400, scoped, tag = 'input window, operand 25, single buffered']
    #allocation38 [shape = 's32[1]{0}', space=sflag, size = 0x4, scoped, tag = 'scoped memory for ttmernet_forward.1']
    #allocation39 [shape = 'u8[512]{0}', space=vmem, size = 0x400, scoped, tag = 'input window, operand 26, single buffered']
    #allocation40 [shape = 'u8[512]{0}', space=vmem, size = 0x400, scoped, tag = 'input window, operand 27, single buffered']
    #allocation41 [shape = 's32[1]{0}', space=sflag, size = 0x4, scoped, tag = 'scoped memory for ttmernet_forward.1']
    #allocation42 [shape = 'u8[512]{0}', space=vmem, size = 0x400, scoped, tag = 'input window, operand 28, single buffered']
    #allocation43 [shape = 'u8[512]{0}', space=vmem, size = 0x400, scoped, tag = 'input window, operand 29, single buffered']
    #allocation44 [shape = 's32[1]{0}', space=sflag, size = 0x4, scoped, tag = 'scoped memory for ttmernet_forward.1']
    #allocation45 [shape = 'u8[32768]{0}', space=vmem, size = 0x8000, scoped, tag = 'input window, operand 30, single buffered']
    #allocation46 [shape = 'u8[512]{0}', space=vmem, size = 0x400, scoped, tag = 'input window, operand 31, single buffered']
    #allocation47 [shape = 's32[1]{0}', space=sflag, size = 0x4, scoped, tag = 'scoped memory for ttmernet_forward.1']
    #allocation48 [shape = 'u8[512]{0}', space=vmem, size = 0x400, scoped, tag = 'input window, operand 32, single buffered']
    #allocation49 [shape = 'u8[512]{0}', space=vmem, size = 0x400, scoped, tag = 'input window, operand 33, single buffered']
    #allocation50 [shape = 's32[1]{0}', space=sflag, size = 0x4, scoped, tag = 'scoped memory for ttmernet_forward.1']
    #allocation51 [shape = 'u8[131072]{0}', space=vmem, size = 0x20000, scoped, tag = 'input window, operand 34, single buffered']
    #allocation52 [shape = 'u8[98304]{0}', space=vmem, size = 0x18000, scoped, tag = 'input window, operand 35, single buffered']
    #allocation53 [shape = 's32[1]{0}', space=sflag, size = 0x4, scoped, tag = 'scoped memory for ttmernet_forward.1']
    #allocation54 [shape = 'u8[1536]{0}', space=vmem, size = 0x800, scoped, tag = 'input window, operand 36, single buffered']
    #allocation55 [shape = 'u8[1536]{0}', space=vmem, size = 0x800, scoped, tag = 'input window, operand 37, single buffered']
    #allocation56 [shape = 's32[1]{0}', space=sflag, size = 0x4, scoped, tag = 'scoped memory for ttmernet_forward.1']
    #allocation57 [shape = 'u8[512]{0}', space=vmem, size = 0x400, scoped, tag = 'input window, operand 38, single buffered']
    #allocation58 [shape = 'u8[512]{0}', space=vmem, size = 0x400, scoped, tag = 'input window, operand 39, single buffered']
    #allocation59 [shape = 's32[1]{0}', space=sflag, size = 0x4, scoped, tag = 'scoped memory for ttmernet_forward.1']
    #allocation60 [shape = 'u8[32768]{0}', space=vmem, size = 0x8000, scoped, tag = 'input window, operand 40, single buffered']
    #allocation61 [shape = 'u8[512]{0}', space=vmem, size = 0x400, scoped, tag = 'input window, operand 41, single buffered']
    #allocation62 [shape = 's32[1]{0}', space=sflag, size = 0x4, scoped, tag = 'scoped memory for ttmernet_forward.1']
    #allocation63 [shape = 'u8[32768]{0}', space=vmem, size = 0x8000, scoped, tag = 'input window, operand 42, single buffered']
    #allocation64 [shape = 'u8[512]{0}', space=vmem, size = 0x400, scoped, tag = 'input window, operand 43, single buffered']
    #allocation65 [shape = 's32[1]{0}', space=sflag, size = 0x4, scoped, tag = 'scoped memory for ttmernet_forward.1']
    %94 = vsyncpa [#allocation3], 0
    %95 = vsyncpa [#allocation5], 0
    %96 = vsyncpa [#allocation8], 0
    %97 = vsyncpa [#allocation11], 0
    %98 = vsyncpa [#allocation14], 0
    %99 = vsyncpa [#allocation17], 0
    %100 = vsyncpa [#allocation20], 0
    %101 = vsyncpa [#allocation23], 0
    %102 = vsyncpa [#allocation26], 0
    %103 = vsyncpa [#allocation29], 0
    %104 = vsyncpa [#allocation32], 0
    %105 = vsyncpa [#allocation35], 0
    %106 = vsyncpa [#allocation38], 0
    %107 = vsyncpa [#allocation41], 0
    %108 = vsyncpa [#allocation44], 0
    %109 = vsyncpa [#allocation47], 0
    %110 = vsyncpa [#allocation50], 0
    %111 = vsyncpa [#allocation53], 0
    %112 = vsyncpa [#allocation56], 0
    %113 = vsyncpa [#allocation59], 0
    %114 = vsyncpa [#allocation62], 0
    %115 = vsyncpa [#allocation65], 0
    // Predicated region
    $region2: #{ttmernet_forward.1} parent=1 // pred_check
      _
    $region3: #{ttmernet_forward.1} parent=1 // pred_check_branch
      %117 = sbr.rel (0) target = $region5
    $region4: #{ttmernet_forward.1} parent=1 // pred_region
      _
    $region5: #{ttmernet_forward.1} parent=1 // pred_fallthru
      _
    // Predicated region
    $region6: #{ttmernet_forward.1} parent=1 // pred_check
      _
    $region7: #{ttmernet_forward.1} parent=1 // pred_check_branch
      %119 = sbr.rel (0) target = $region9
    $region8: #{ttmernet_forward.1} parent=1 // pred_region
      %121 = vsyncadd [#allocation3], 0
      %s122 = sshll.u32 %s3, 4
      %s123 = int_to_ptr.hbm [resolvable:$true] %s122
      %s124 = sshll.u32 [#allocation2], 4
      %s125 = int_to_ptr.vmem [resolvable:$true] %s124
      %130 = dma.hbm_to_vmem [thread:$0]  %s123, 512, %s125, [#allocation3], 128, 128, 8
    $region9: #{ttmernet_forward.1} parent=1 // pred_fallthru
      _
    // Predicated region
    $region10: #{ttmernet_forward.1} parent=1 // pred_check
      _
    $region11: #{ttmernet_forward.1} parent=1 // pred_check_branch
      %132 = sbr.rel (0) target = $region13
    $region12: #{ttmernet_forward.1} parent=1 // pred_region
      %134 = vsyncadd [#allocation5], 0
      %s135 = sshll.u32 %s5, 4
      %s136 = int_to_ptr.hbm [resolvable:$true] %s135
      %s137 = sshll.u32 [#allocation4], 4
      %s138 = int_to_ptr.vmem [resolvable:$true] %s137
      %143 = dma.hbm_to_vmem [thread:$0]  %s136, 256, %s138, [#allocation5], 128, 128, 8
    $region13: #{ttmernet_forward.1} parent=1 // pred_fallthru
      _
    // Predicated region
    $region14: #{ttmernet_forward.1} parent=1 // pred_check
      _
    $region15: #{ttmernet_forward.1} parent=1 // pred_check_branch
      %145 = sbr.rel (0) target = $region17
    $region16: #{ttmernet_forward.1} parent=1 // pred_region
      _
    $region17: #{ttmernet_forward.1} parent=1 // pred_fallthru
      _
    // Predicated region
    $region18: #{ttmernet_forward.1} parent=1 // pred_check
      _
    $region19: #{ttmernet_forward.1} parent=1 // pred_check_branch
      %147 = sbr.rel (0) target = $region21
    $region20: #{ttmernet_forward.1} parent=1 // pred_region
      %149 = vsyncadd [#allocation5], 0
      %s150 = sshll.u32 %s9, 4
      %s151 = int_to_ptr.hbm [resolvable:$true] %s150
      %s152 = sshll.u32 [#allocation6], 4
      %s153 = int_to_ptr.vmem [resolvable:$true] %s152
      %158 = dma.hbm_to_vmem [thread:$0]  %s151, 1024, %s153, [#allocation5], 64, 64, 4
    $region21: #{ttmernet_forward.1} parent=1 // pred_fallthru
      _
    // Predicated region
    $region22: #{ttmernet_forward.1} parent=1 // pred_check
      _
    $region23: #{ttmernet_forward.1} parent=1 // pred_check_branch
      %160 = sbr.rel (0) target = $region25
    $region24: #{ttmernet_forward.1} parent=1 // pred_region
      %162 = vsyncadd [#allocation8], 0
      %s164 = sshll.u32 %s11, 4
      %s165 = int_to_ptr.hbm [resolvable:$true] %s164
      %s166 = sshll.u32 [#allocation7], 4
      %s167 = int_to_ptr.vmem [resolvable:$true] %s166
      %169 = dma.hbm_to_vmem [thread:$0]  %s165, 16, %s167, [#allocation8]
    $region25: #{ttmernet_forward.1} parent=1 // pred_fallthru
      _
    // Predicated region
    $region26: #{ttmernet_forward.1} parent=1 // pred_check
      _
    $region27: #{ttmernet_forward.1} parent=1 // pred_check_branch
      %171 = sbr.rel (0) target = $region29
    $region28: #{ttmernet_forward.1} parent=1 // pred_region
      %173 = vsyncadd [#allocation8], 0
      %s175 = sshll.u32 %s13, 4
      %s176 = int_to_ptr.hbm [resolvable:$true] %s175
      %s177 = sshll.u32 [#allocation9], 4
      %s178 = int_to_ptr.vmem [resolvable:$true] %s177
      %180 = dma.hbm_to_vmem [thread:$0]  %s176, 16, %s178, [#allocation8]
    $region29: #{ttmernet_forward.1} parent=1 // pred_fallthru
      _
    // Predicated region
    $region30: #{ttmernet_forward.1} parent=1 // pred_check
      _
    $region31: #{ttmernet_forward.1} parent=1 // pred_check_branch
      %182 = sbr.rel (0) target = $region33
    $region32: #{ttmernet_forward.1} parent=1 // pred_region
      %184 = vsyncadd [#allocation11], 0
      %s186 = sshll.u32 %s15, 4
      %s187 = int_to_ptr.hbm [resolvable:$true] %s186
      %s188 = sshll.u32 [#allocation10], 4
      %s189 = int_to_ptr.vmem [resolvable:$true] %s188
      %191 = dma.hbm_to_vmem [thread:$0]  %s187, 16, %s189, [#allocation11]
    $region33: #{ttmernet_forward.1} parent=1 // pred_fallthru
      _
    // Predicated region
    $region34: #{ttmernet_forward.1} parent=1 // pred_check
      _
    $region35: #{ttmernet_forward.1} parent=1 // pred_check_branch
      %193 = sbr.rel (0) target = $region37
    $region36: #{ttmernet_forward.1} parent=1 // pred_region
      %195 = vsyncadd [#allocation11], 0
      %s196 = sshll.u32 %s17, 4
      %s197 = int_to_ptr.hbm [resolvable:$true] %s196
      %s198 = sshll.u32 [#allocation12], 4
      %s199 = int_to_ptr.vmem [resolvable:$true] %s198
      %204 = dma.hbm_to_vmem [thread:$0]  %s197, 1024, %s199, [#allocation11], 64, 64, 4
    $region37: #{ttmernet_forward.1} parent=1 // pred_fallthru
      _
    // Predicated region
    $region38: #{ttmernet_forward.1} parent=1 // pred_check
      _
    $region39: #{ttmernet_forward.1} parent=1 // pred_check_branch
      %206 = sbr.rel (0) target = $region41
    $region40: #{ttmernet_forward.1} parent=1 // pred_region
      %208 = vsyncadd [#allocation14], 0
      %s210 = sshll.u32 %s19, 4
      %s211 = int_to_ptr.hbm [resolvable:$true] %s210
      %s212 = sshll.u32 [#allocation13], 4
      %s213 = int_to_ptr.vmem [resolvable:$true] %s212
      %215 = dma.hbm_to_vmem [thread:$0]  %s211, 16, %s213, [#allocation14]
    $region41: #{ttmernet_forward.1} parent=1 // pred_fallthru
      _
    // Predicated region
    $region42: #{ttmernet_forward.1} parent=1 // pred_check
      _
    $region43: #{ttmernet_forward.1} parent=1 // pred_check_branch
      %217 = sbr.rel (0) target = $region45
    $region44: #{ttmernet_forward.1} parent=1 // pred_region
      %219 = vsyncadd [#allocation14], 0
      %s221 = sshll.u32 %s21, 4
      %s222 = int_to_ptr.hbm [resolvable:$true] %s221
      %s223 = sshll.u32 [#allocation15], 4
      %s224 = int_to_ptr.vmem [resolvable:$true] %s223
      %226 = dma.hbm_to_vmem [thread:$0]  %s222, 16, %s224, [#allocation14]
    $region45: #{ttmernet_forward.1} parent=1 // pred_fallthru
      _
    // Predicated region
    $region46: #{ttmernet_forward.1} parent=1 // pred_check
      _
    $region47: #{ttmernet_forward.1} parent=1 // pred_check_branch
      %228 = sbr.rel (0) target = $region49
    $region48: #{ttmernet_forward.1} parent=1 // pred_region
      %230 = vsyncadd [#allocation17], 0
      %s232 = sshll.u32 %s23, 4
      %s233 = int_to_ptr.hbm [resolvable:$true] %s232
      %s234 = sshll.u32 [#allocation16], 4
      %s235 = int_to_ptr.vmem [resolvable:$true] %s234
      %237 = dma.hbm_to_vmem [thread:$0]  %s233, 16, %s235, [#allocation17]
    $region49: #{ttmernet_forward.1} parent=1 // pred_fallthru
      _
    // Predicated region
    $region50: #{ttmernet_forward.1} parent=1 // pred_check
      _
    $region51: #{ttmernet_forward.1} parent=1 // pred_check_branch
      %239 = sbr.rel (0) target = $region53
    $region52: #{ttmernet_forward.1} parent=1 // pred_region
      %241 = vsyncadd [#allocation17], 0
      %s243 = sshll.u32 %s25, 4
      %s244 = int_to_ptr.hbm [resolvable:$true] %s243
      %s245 = sshll.u32 [#allocation18], 4
      %s246 = int_to_ptr.vmem [resolvable:$true] %s245
      %248 = dma.hbm_to_vmem [thread:$0]  %s244, 16, %s246, [#allocation17]
    $region53: #{ttmernet_forward.1} parent=1 // pred_fallthru
      _
    // Predicated region
    $region54: #{ttmernet_forward.1} parent=1 // pred_check
      _
    $region55: #{ttmernet_forward.1} parent=1 // pred_check_branch
      %250 = sbr.rel (0) target = $region57
    $region56: #{ttmernet_forward.1} parent=1 // pred_region
      %252 = vsyncadd [#allocation20], 0
      %s254 = sshll.u32 %s27, 4
      %s255 = int_to_ptr.hbm [resolvable:$true] %s254
      %s256 = sshll.u32 [#allocation19], 4
      %s257 = int_to_ptr.vmem [resolvable:$true] %s256
      %259 = dma.hbm_to_vmem [thread:$0]  %s255, 16, %s257, [#allocation20]
    $region57: #{ttmernet_forward.1} parent=1 // pred_fallthru
      _
    // Predicated region
    $region58: #{ttmernet_forward.1} parent=1 // pred_check
      _
    $region59: #{ttmernet_forward.1} parent=1 // pred_check_branch
      %261 = sbr.rel (0) target = $region61
    $region60: #{ttmernet_forward.1} parent=1 // pred_region
      %263 = vsyncadd [#allocation20], 0
      %s265 = sshll.u32 %s29, 4
      %s266 = int_to_ptr.hbm [resolvable:$true] %s265
      %s267 = sshll.u32 [#allocation21], 4
      %s268 = int_to_ptr.vmem [resolvable:$true] %s267
      %270 = dma.hbm_to_vmem [thread:$0]  %s266, 16, %s268, [#allocation20]
    $region61: #{ttmernet_forward.1} parent=1 // pred_fallthru
      _
    // Predicated region
    $region62: #{ttmernet_forward.1} parent=1 // pred_check
      _
    $region63: #{ttmernet_forward.1} parent=1 // pred_check_branch
      %272 = sbr.rel (0) target = $region65
    $region64: #{ttmernet_forward.1} parent=1 // pred_region
      %274 = vsyncadd [#allocation23], 0
      %s276 = sshll.u32 %s31, 4
      %s277 = int_to_ptr.hbm [resolvable:$true] %s276
      %s278 = sshll.u32 [#allocation22], 4
      %s279 = int_to_ptr.vmem [resolvable:$true] %s278
      %281 = dma.hbm_to_vmem [thread:$0]  %s277, 16, %s279, [#allocation23]
    $region65: #{ttmernet_forward.1} parent=1 // pred_fallthru
      _
    // Predicated region
    $region66: #{ttmernet_forward.1} parent=1 // pred_check
      _
    $region67: #{ttmernet_forward.1} parent=1 // pred_check_branch
      %283 = sbr.rel (0) target = $region69
    $region68: #{ttmernet_forward.1} parent=1 // pred_region
      %285 = vsyncadd [#allocation23], 0
      %s286 = sshll.u32 %s33, 4
      %s287 = int_to_ptr.hbm [resolvable:$true] %s286
      %s288 = sshll.u32 [#allocation24], 4
      %s289 = int_to_ptr.vmem [resolvable:$true] %s288
      %294 = dma.hbm_to_vmem [thread:$0]  %s287, 1024, %s289, [#allocation23], 64, 64, 4
    $region69: #{ttmernet_forward.1} parent=1 // pred_fallthru
      _
    // Predicated region
    $region70: #{ttmernet_forward.1} parent=1 // pred_check
      _
    $region71: #{ttmernet_forward.1} parent=1 // pred_check_branch
      %296 = sbr.rel (0) target = $region73
    $region72: #{ttmernet_forward.1} parent=1 // pred_region
      %298 = vsyncadd [#allocation26], 0
      %s300 = sshll.u32 %s35, 4
      %s301 = int_to_ptr.hbm [resolvable:$true] %s300
      %s302 = sshll.u32 [#allocation25], 4
      %s303 = int_to_ptr.vmem [resolvable:$true] %s302
      %305 = dma.hbm_to_vmem [thread:$0]  %s301, 16, %s303, [#allocation26]
    $region73: #{ttmernet_forward.1} parent=1 // pred_fallthru
      _
    // Predicated region
    $region74: #{ttmernet_forward.1} parent=1 // pred_check
      _
    $region75: #{ttmernet_forward.1} parent=1 // pred_check_branch
      %307 = sbr.rel (0) target = $region77
    $region76: #{ttmernet_forward.1} parent=1 // pred_region
      %309 = vsyncadd [#allocation26], 0
      %s311 = sshll.u32 %s37, 4
      %s312 = int_to_ptr.hbm [resolvable:$true] %s311
      %s313 = sshll.u32 [#allocation27], 4
      %s314 = int_to_ptr.vmem [resolvable:$true] %s313
      %316 = dma.hbm_to_vmem [thread:$0]  %s312, 16, %s314, [#allocation26]
    $region77: #{ttmernet_forward.1} parent=1 // pred_fallthru
      _
    // Predicated region
    $region78: #{ttmernet_forward.1} parent=1 // pred_check
      _
    $region79: #{ttmernet_forward.1} parent=1 // pred_check_branch
      %318 = sbr.rel (0) target = $region81
    $region80: #{ttmernet_forward.1} parent=1 // pred_region
      %320 = vsyncadd [#allocation29], 0
      %s322 = sshll.u32 %s39, 4
      %s323 = int_to_ptr.hbm [resolvable:$true] %s322
      %s324 = sshll.u32 [#allocation28], 4
      %s325 = int_to_ptr.vmem [resolvable:$true] %s324
      %327 = dma.hbm_to_vmem [thread:$0]  %s323, 16, %s325, [#allocation29]
    $region81: #{ttmernet_forward.1} parent=1 // pred_fallthru
      _
    // Predicated region
    $region82: #{ttmernet_forward.1} parent=1 // pred_check
      _
    $region83: #{ttmernet_forward.1} parent=1 // pred_check_branch
      %329 = sbr.rel (0) target = $region85
    $region84: #{ttmernet_forward.1} parent=1 // pred_region
      %331 = vsyncadd [#allocation29], 0
      %s332 = sshll.u32 %s41, 4
      %s333 = int_to_ptr.hbm [resolvable:$true] %s332
      %s334 = sshll.u32 [#allocation30], 4
      %s335 = int_to_ptr.vmem [resolvable:$true] %s334
      %340 = dma.hbm_to_vmem [thread:$0]  %s333, 4096, %s335, [#allocation29], 256, 256, 16
    $region85: #{ttmernet_forward.1} parent=1 // pred_fallthru
      _
    // Predicated region
    $region86: #{ttmernet_forward.1} parent=1 // pred_check
      _
    $region87: #{ttmernet_forward.1} parent=1 // pred_check_branch
      %342 = sbr.rel (0) target = $region89
    $region88: #{ttmernet_forward.1} parent=1 // pred_region
      %344 = vsyncadd [#allocation32], 0
      %s345 = sshll.u32 %s43, 4
      %s346 = int_to_ptr.hbm [resolvable:$true] %s345
      %s347 = sshll.u32 [#allocation31], 4
      %s348 = int_to_ptr.vmem [resolvable:$true] %s347
      %353 = dma.hbm_to_vmem [thread:$0]  %s346, 3072, %s348, [#allocation32], 192, 192, 12
    $region89: #{ttmernet_forward.1} parent=1 // pred_fallthru
      _
    // Predicated region
    $region90: #{ttmernet_forward.1} parent=1 // pred_check
      _
    $region91: #{ttmernet_forward.1} parent=1 // pred_check_branch
      %355 = sbr.rel (0) target = $region93
    $region92: #{ttmernet_forward.1} parent=1 // pred_region
      %357 = vsyncadd [#allocation32], 0
      %s359 = sshll.u32 %s45, 4
      %s360 = int_to_ptr.hbm [resolvable:$true] %s359
      %s361 = sshll.u32 [#allocation33], 4
      %s362 = int_to_ptr.vmem [resolvable:$true] %s361
      %364 = dma.hbm_to_vmem [thread:$0]  %s360, 48, %s362, [#allocation32]
    $region93: #{ttmernet_forward.1} parent=1 // pred_fallthru
      _
    // Predicated region
    $region94: #{ttmernet_forward.1} parent=1 // pred_check
      _
    $region95: #{ttmernet_forward.1} parent=1 // pred_check_branch
      %366 = sbr.rel (0) target = $region97
    $region96: #{ttmernet_forward.1} parent=1 // pred_region
      %368 = vsyncadd [#allocation35], 0
      %s370 = sshll.u32 %s47, 4
      %s371 = int_to_ptr.hbm [resolvable:$true] %s370
      %s372 = sshll.u32 [#allocation34], 4
      %s373 = int_to_ptr.vmem [resolvable:$true] %s372
      %375 = dma.hbm_to_vmem [thread:$0]  %s371, 48, %s373, [#allocation35]
    $region97: #{ttmernet_forward.1} parent=1 // pred_fallthru
      _
    // Predicated region
    $region98: #{ttmernet_forward.1} parent=1 // pred_check
      _
    $region99: #{ttmernet_forward.1} parent=1 // pred_check_branch
      %377 = sbr.rel (0) target = $region101
    $region100: #{ttmernet_forward.1} parent=1 // pred_region
      %379 = vsyncadd [#allocation35], 0
      %s381 = sshll.u32 %s49, 4
      %s382 = int_to_ptr.hbm [resolvable:$true] %s381
      %s383 = sshll.u32 [#allocation36], 4
      %s384 = int_to_ptr.vmem [resolvable:$true] %s383
      %386 = dma.hbm_to_vmem [thread:$0]  %s382, 16, %s384, [#allocation35]
    $region101: #{ttmernet_forward.1} parent=1 // pred_fallthru
      _
    // Predicated region
    $region102: #{ttmernet_forward.1} parent=1 // pred_check
      _
    $region103: #{ttmernet_forward.1} parent=1 // pred_check_branch
      %388 = sbr.rel (0) target = $region105
    $region104: #{ttmernet_forward.1} parent=1 // pred_region
      %390 = vsyncadd [#allocation38], 0
      %s392 = sshll.u32 %s51, 4
      %s393 = int_to_ptr.hbm [resolvable:$true] %s392
      %s394 = sshll.u32 [#allocation37], 4
      %s395 = int_to_ptr.vmem [resolvable:$true] %s394
      %397 = dma.hbm_to_vmem [thread:$0]  %s393, 16, %s395, [#allocation38]
    $region105: #{ttmernet_forward.1} parent=1 // pred_fallthru
      _
    // Predicated region
    $region106: #{ttmernet_forward.1} parent=1 // pred_check
      _
    $region107: #{ttmernet_forward.1} parent=1 // pred_check_branch
      %399 = sbr.rel (0) target = $region109
    $region108: #{ttmernet_forward.1} parent=1 // pred_region
      %401 = vsyncadd [#allocation38], 0
      %s403 = sshll.u32 %s53, 4
      %s404 = int_to_ptr.hbm [resolvable:$true] %s403
      %s405 = sshll.u32 [#allocation39], 4
      %s406 = int_to_ptr.vmem [resolvable:$true] %s405
      %408 = dma.hbm_to_vmem [thread:$0]  %s404, 16, %s406, [#allocation38]
    $region109: #{ttmernet_forward.1} parent=1 // pred_fallthru
      _
    // Predicated region
    $region110: #{ttmernet_forward.1} parent=1 // pred_check
      _
    $region111: #{ttmernet_forward.1} parent=1 // pred_check_branch
      %410 = sbr.rel (0) target = $region113
    $region112: #{ttmernet_forward.1} parent=1 // pred_region
      %412 = vsyncadd [#allocation41], 0
      %s414 = sshll.u32 %s55, 4
      %s415 = int_to_ptr.hbm [resolvable:$true] %s414
      %s416 = sshll.u32 [#allocation40], 4
      %s417 = int_to_ptr.vmem [resolvable:$true] %s416
      %419 = dma.hbm_to_vmem [thread:$0]  %s415, 16, %s417, [#allocation41]
    $region113: #{ttmernet_forward.1} parent=1 // pred_fallthru
      _
    // Predicated region
    $region114: #{ttmernet_forward.1} parent=1 // pred_check
      _
    $region115: #{ttmernet_forward.1} parent=1 // pred_check_branch
      %421 = sbr.rel (0) target = $region117
    $region116: #{ttmernet_forward.1} parent=1 // pred_region
      %423 = vsyncadd [#allocation41], 0
      %s425 = sshll.u32 %s57, 4
      %s426 = int_to_ptr.hbm [resolvable:$true] %s425
      %s427 = sshll.u32 [#allocation42], 4
      %s428 = int_to_ptr.vmem [resolvable:$true] %s427
      %430 = dma.hbm_to_vmem [thread:$0]  %s426, 16, %s428, [#allocation41]
    $region117: #{ttmernet_forward.1} parent=1 // pred_fallthru
      _
    // Predicated region
    $region118: #{ttmernet_forward.1} parent=1 // pred_check
      _
    $region119: #{ttmernet_forward.1} parent=1 // pred_check_branch
      %432 = sbr.rel (0) target = $region121
    $region120: #{ttmernet_forward.1} parent=1 // pred_region
      %434 = vsyncadd [#allocation44], 0
      %s436 = sshll.u32 %s59, 4
      %s437 = int_to_ptr.hbm [resolvable:$true] %s436
      %s438 = sshll.u32 [#allocation43], 4
      %s439 = int_to_ptr.vmem [resolvable:$true] %s438
      %441 = dma.hbm_to_vmem [thread:$0]  %s437, 16, %s439, [#allocation44]
    $region121: #{ttmernet_forward.1} parent=1 // pred_fallthru
      _
    // Predicated region
    $region122: #{ttmernet_forward.1} parent=1 // pred_check
      _
    $region123: #{ttmernet_forward.1} parent=1 // pred_check_branch
      %443 = sbr.rel (0) target = $region125
    $region124: #{ttmernet_forward.1} parent=1 // pred_region
      %445 = vsyncadd [#allocation44], 0
      %s446 = sshll.u32 %s61, 4
      %s447 = int_to_ptr.hbm [resolvable:$true] %s446
      %s448 = sshll.u32 [#allocation45], 4
      %s449 = int_to_ptr.vmem [resolvable:$true] %s448
      %454 = dma.hbm_to_vmem [thread:$0]  %s447, 1024, %s449, [#allocation44], 64, 64, 4
    $region125: #{ttmernet_forward.1} parent=1 // pred_fallthru
      _
    // Predicated region
    $region126: #{ttmernet_forward.1} parent=1 // pred_check
      _
    $region127: #{ttmernet_forward.1} parent=1 // pred_check_branch
      %456 = sbr.rel (0) target = $region129
    $region128: #{ttmernet_forward.1} parent=1 // pred_region
      %458 = vsyncadd [#allocation47], 0
      %s460 = sshll.u32 %s63, 4
      %s461 = int_to_ptr.hbm [resolvable:$true] %s460
      %s462 = sshll.u32 [#allocation46], 4
      %s463 = int_to_ptr.vmem [resolvable:$true] %s462
      %465 = dma.hbm_to_vmem [thread:$0]  %s461, 16, %s463, [#allocation47]
    $region129: #{ttmernet_forward.1} parent=1 // pred_fallthru
      _
    // Predicated region
    $region130: #{ttmernet_forward.1} parent=1 // pred_check
      _
    $region131: #{ttmernet_forward.1} parent=1 // pred_check_branch
      %467 = sbr.rel (0) target = $region133
    $region132: #{ttmernet_forward.1} parent=1 // pred_region
      %469 = vsyncadd [#allocation47], 0
      %s471 = sshll.u32 %s65, 4
      %s472 = int_to_ptr.hbm [resolvable:$true] %s471
      %s473 = sshll.u32 [#allocation48], 4
      %s474 = int_to_ptr.vmem [resolvable:$true] %s473
      %476 = dma.hbm_to_vmem [thread:$0]  %s472, 16, %s474, [#allocation47]
    $region133: #{ttmernet_forward.1} parent=1 // pred_fallthru
      _
    // Predicated region
    $region134: #{ttmernet_forward.1} parent=1 // pred_check
      _
    $region135: #{ttmernet_forward.1} parent=1 // pred_check_branch
      %478 = sbr.rel (0) target = $region137
    $region136: #{ttmernet_forward.1} parent=1 // pred_region
      %480 = vsyncadd [#allocation50], 0
      %s482 = sshll.u32 %s67, 4
      %s483 = int_to_ptr.hbm [resolvable:$true] %s482
      %s484 = sshll.u32 [#allocation49], 4
      %s485 = int_to_ptr.vmem [resolvable:$true] %s484
      %487 = dma.hbm_to_vmem [thread:$0]  %s483, 16, %s485, [#allocation50]
    $region137: #{ttmernet_forward.1} parent=1 // pred_fallthru
      _
    // Predicated region
    $region138: #{ttmernet_forward.1} parent=1 // pred_check
      _
    $region139: #{ttmernet_forward.1} parent=1 // pred_check_branch
      %489 = sbr.rel (0) target = $region141
    $region140: #{ttmernet_forward.1} parent=1 // pred_region
      %491 = vsyncadd [#allocation50], 0
      %s492 = sshll.u32 %s69, 4
      %s493 = int_to_ptr.hbm [resolvable:$true] %s492
      %s494 = sshll.u32 [#allocation51], 4
      %s495 = int_to_ptr.vmem [resolvable:$true] %s494
      %500 = dma.hbm_to_vmem [thread:$0]  %s493, 4096, %s495, [#allocation50], 256, 256, 16
    $region141: #{ttmernet_forward.1} parent=1 // pred_fallthru
      _
    // Predicated region
    $region142: #{ttmernet_forward.1} parent=1 // pred_check
      _
    $region143: #{ttmernet_forward.1} parent=1 // pred_check_branch
      %502 = sbr.rel (0) target = $region145
    $region144: #{ttmernet_forward.1} parent=1 // pred_region
      %504 = vsyncadd [#allocation53], 0
      %s505 = sshll.u32 %s71, 4
      %s506 = int_to_ptr.hbm [resolvable:$true] %s505
      %s507 = sshll.u32 [#allocation52], 4
      %s508 = int_to_ptr.vmem [resolvable:$true] %s507
      %513 = dma.hbm_to_vmem [thread:$0]  %s506, 3072, %s508, [#allocation53], 192, 192, 12
    $region145: #{ttmernet_forward.1} parent=1 // pred_fallthru
      _
    // Predicated region
    $region146: #{ttmernet_forward.1} parent=1 // pred_check
      _
    $region147: #{ttmernet_forward.1} parent=1 // pred_check_branch
      %515 = sbr.rel (0) target = $region149
    $region148: #{ttmernet_forward.1} parent=1 // pred_region
      %517 = vsyncadd [#allocation53], 0
      %s519 = sshll.u32 %s73, 4
      %s520 = int_to_ptr.hbm [resolvable:$true] %s519
      %s521 = sshll.u32 [#allocation54], 4
      %s522 = int_to_ptr.vmem [resolvable:$true] %s521
      %524 = dma.hbm_to_vmem [thread:$0]  %s520, 48, %s522, [#allocation53]
    $region149: #{ttmernet_forward.1} parent=1 // pred_fallthru
      _
    // Predicated region
    $region150: #{ttmernet_forward.1} parent=1 // pred_check
      _
    $region151: #{ttmernet_forward.1} parent=1 // pred_check_branch
      %526 = sbr.rel (0) target = $region153
    $region152: #{ttmernet_forward.1} parent=1 // pred_region
      %528 = vsyncadd [#allocation56], 0
      %s530 = sshll.u32 %s75, 4
      %s531 = int_to_ptr.hbm [resolvable:$true] %s530
      %s532 = sshll.u32 [#allocation55], 4
      %s533 = int_to_ptr.vmem [resolvable:$true] %s532
      %535 = dma.hbm_to_vmem [thread:$0]  %s531, 48, %s533, [#allocation56]
    $region153: #{ttmernet_forward.1} parent=1 // pred_fallthru
      _
    // Predicated region
    $region154: #{ttmernet_forward.1} parent=1 // pred_check
      _
    $region155: #{ttmernet_forward.1} parent=1 // pred_check_branch
      %537 = sbr.rel (0) target = $region157
    $region156: #{ttmernet_forward.1} parent=1 // pred_region
      %539 = vsyncadd [#allocation56], 0
      %s541 = sshll.u32 %s77, 4
      %s542 = int_to_ptr.hbm [resolvable:$true] %s541
      %s543 = sshll.u32 [#allocation57], 4
      %s544 = int_to_ptr.vmem [resolvable:$true] %s543
      %546 = dma.hbm_to_vmem [thread:$0]  %s542, 16, %s544, [#allocation56]
    $region157: #{ttmernet_forward.1} parent=1 // pred_fallthru
      _
    // Predicated region
    $region158: #{ttmernet_forward.1} parent=1 // pred_check
      _
    $region159: #{ttmernet_forward.1} parent=1 // pred_check_branch
      %548 = sbr.rel (0) target = $region161
    $region160: #{ttmernet_forward.1} parent=1 // pred_region
      %550 = vsyncadd [#allocation59], 0
      %s552 = sshll.u32 %s79, 4
      %s553 = int_to_ptr.hbm [resolvable:$true] %s552
      %s554 = sshll.u32 [#allocation58], 4
      %s555 = int_to_ptr.vmem [resolvable:$true] %s554
      %557 = dma.hbm_to_vmem [thread:$0]  %s553, 16, %s555, [#allocation59]
    $region161: #{ttmernet_forward.1} parent=1 // pred_fallthru
      _
    // Predicated region
    $region162: #{ttmernet_forward.1} parent=1 // pred_check
      _
    $region163: #{ttmernet_forward.1} parent=1 // pred_check_branch
      %559 = sbr.rel (0) target = $region165
    $region164: #{ttmernet_forward.1} parent=1 // pred_region
      %561 = vsyncadd [#allocation59], 0
      %s562 = sshll.u32 %s81, 4
      %s563 = int_to_ptr.hbm [resolvable:$true] %s562
      %s564 = sshll.u32 [#allocation60], 4
      %s565 = int_to_ptr.vmem [resolvable:$true] %s564
      %570 = dma.hbm_to_vmem [thread:$0]  %s563, 1024, %s565, [#allocation59], 64, 64, 4
    $region165: #{ttmernet_forward.1} parent=1 // pred_fallthru
      _
    // Predicated region
    $region166: #{ttmernet_forward.1} parent=1 // pred_check
      _
    $region167: #{ttmernet_forward.1} parent=1 // pred_check_branch
      %572 = sbr.rel (0) target = $region169
    $region168: #{ttmernet_forward.1} parent=1 // pred_region
      %574 = vsyncadd [#allocation62], 0
      %s576 = sshll.u32 %s83, 4
      %s577 = int_to_ptr.hbm [resolvable:$true] %s576
      %s578 = sshll.u32 [#allocation61], 4
      %s579 = int_to_ptr.vmem [resolvable:$true] %s578
      %581 = dma.hbm_to_vmem [thread:$0]  %s577, 16, %s579, [#allocation62]
    $region169: #{ttmernet_forward.1} parent=1 // pred_fallthru
      _
    // Predicated region
    $region170: #{ttmernet_forward.1} parent=1 // pred_check
      _
    $region171: #{ttmernet_forward.1} parent=1 // pred_check_branch
      %583 = sbr.rel (0) target = $region173
    $region172: #{ttmernet_forward.1} parent=1 // pred_region
      %585 = vsyncadd [#allocation62], 0
      %s586 = sshll.u32 %s85, 4
      %s587 = int_to_ptr.hbm [resolvable:$true] %s586
      %s588 = sshll.u32 [#allocation63], 4
      %s589 = int_to_ptr.vmem [resolvable:$true] %s588
      %594 = dma.hbm_to_vmem [thread:$0]  %s587, 1024, %s589, [#allocation62], 64, 64, 4
    $region173: #{ttmernet_forward.1} parent=1 // pred_fallthru
      _
    // Predicated region
    $region174: #{ttmernet_forward.1} parent=1 // pred_check
      _
    $region175: #{ttmernet_forward.1} parent=1 // pred_check_branch
      %596 = sbr.rel (0) target = $region177
    $region176: #{ttmernet_forward.1} parent=1 // pred_region
      %598 = vsyncadd [#allocation65], 0
      %s600 = sshll.u32 %s87, 4
      %s601 = int_to_ptr.hbm [resolvable:$true] %s600
      %s602 = sshll.u32 [#allocation64], 4
      %s603 = int_to_ptr.vmem [resolvable:$true] %s602
      %605 = dma.hbm_to_vmem [thread:$0]  %s601, 16, %s603, [#allocation65]
    $region177: #{ttmernet_forward.1} parent=1 // pred_fallthru
      _
    // Predicated region
    $region178: #{ttmernet_forward.1} parent=1 // pred_check
      _
    $region179: #{ttmernet_forward.1} parent=1 // pred_check_branch
      %607 = sbr.rel (0) target = $region181
    $region180: #{ttmernet_forward.1} parent=1 // pred_region
      %609 = dma.done [#allocation3], 512
    $region181: #{ttmernet_forward.1} parent=1 // pred_fallthru
      _
    // Predicated region
    $region182: #{ttmernet_forward.1} parent=1 // pred_check
      _
    $region183: #{ttmernet_forward.1} parent=1 // pred_check_branch
      %611 = sbr.rel (0) target = $region185
    $region184: #{ttmernet_forward.1} parent=1 // pred_region
      %613 = dma.done [#allocation5], 256
    $region185: #{ttmernet_forward.1} parent=1 // pred_fallthru
      _
    // Predicated region
    $region186: #{ttmernet_forward.1} parent=1 // pred_check
      _
    $region187: #{ttmernet_forward.1} parent=1 // pred_check_branch
      %615 = sbr.rel (0) target = $region189
    $region188: #{ttmernet_forward.1} parent=1 // pred_region
      %617 = dma.done [#allocation5], 1024
    $region189: #{ttmernet_forward.1} parent=1 // pred_fallthru
      _
    // Predicated region
    $region190: #{ttmernet_forward.1} parent=1 // pred_check
      _
    $region191: #{ttmernet_forward.1} parent=1 // pred_check_branch
      %619 = sbr.rel (0) target = $region193
    $region192: #{ttmernet_forward.1} parent=1 // pred_region
      %621 = dma.done [#allocation8], 16
    $region193: #{ttmernet_forward.1} parent=1 // pred_fallthru
      _
    // Predicated region
    $region194: #{ttmernet_forward.1} parent=1 // pred_check
      _
    $region195: #{ttmernet_forward.1} parent=1 // pred_check_branch
      %623 = sbr.rel (0) target = $region197
    $region196: #{ttmernet_forward.1} parent=1 // pred_region
      %625 = dma.done [#allocation8], 16
    $region197: #{ttmernet_forward.1} parent=1 // pred_fallthru
      _
    // Predicated region
    $region198: #{ttmernet_forward.1} parent=1 // pred_check
      _
    $region199: #{ttmernet_forward.1} parent=1 // pred_check_branch
      %627 = sbr.rel (0) target = $region201
    $region200: #{ttmernet_forward.1} parent=1 // pred_region
      %629 = dma.done [#allocation11], 16
    $region201: #{ttmernet_forward.1} parent=1 // pred_fallthru
      _
    // Predicated region
    $region202: #{ttmernet_forward.1} parent=1 // pred_check
      _
    $region203: #{ttmernet_forward.1} parent=1 // pred_check_branch
      %631 = sbr.rel (0) target = $region205
    $region204: #{ttmernet_forward.1} parent=1 // pred_region
      %633 = dma.done [#allocation11], 1024
    $region205: #{ttmernet_forward.1} parent=1 // pred_fallthru
      _
    // Predicated region
    $region206: #{ttmernet_forward.1} parent=1 // pred_check
      _
    $region207: #{ttmernet_forward.1} parent=1 // pred_check_branch
      %635 = sbr.rel (0) target = $region209
    $region208: #{ttmernet_forward.1} parent=1 // pred_region
      %637 = dma.done [#allocation14], 16
    $region209: #{ttmernet_forward.1} parent=1 // pred_fallthru
      _
    // Predicated region
    $region210: #{ttmernet_forward.1} parent=1 // pred_check
      _
    $region211: #{ttmernet_forward.1} parent=1 // pred_check_branch
      %639 = sbr.rel (0) target = $region213
    $region212: #{ttmernet_forward.1} parent=1 // pred_region
      %641 = dma.done [#allocation14], 16
    $region213: #{ttmernet_forward.1} parent=1 // pred_fallthru
      _
    // Predicated region
    $region214: #{ttmernet_forward.1} parent=1 // pred_check
      _
    $region215: #{ttmernet_forward.1} parent=1 // pred_check_branch
      %643 = sbr.rel (0) target = $region217
    $region216: #{ttmernet_forward.1} parent=1 // pred_region
      %645 = dma.done [#allocation17], 16
    $region217: #{ttmernet_forward.1} parent=1 // pred_fallthru
      _
    // Predicated region
    $region218: #{ttmernet_forward.1} parent=1 // pred_check
      _
    $region219: #{ttmernet_forward.1} parent=1 // pred_check_branch
      %647 = sbr.rel (0) target = $region221
    $region220: #{ttmernet_forward.1} parent=1 // pred_region
      %649 = dma.done [#allocation17], 16
    $region221: #{ttmernet_forward.1} parent=1 // pred_fallthru
      _
    // Predicated region
    $region222: #{ttmernet_forward.1} parent=1 // pred_check
      _
    $region223: #{ttmernet_forward.1} parent=1 // pred_check_branch
      %651 = sbr.rel (0) target = $region225
    $region224: #{ttmernet_forward.1} parent=1 // pred_region
      %653 = dma.done [#allocation20], 16
    $region225: #{ttmernet_forward.1} parent=1 // pred_fallthru
      _
    // Predicated region
    $region226: #{ttmernet_forward.1} parent=1 // pred_check
      _
    $region227: #{ttmernet_forward.1} parent=1 // pred_check_branch
      %655 = sbr.rel (0) target = $region229
    $region228: #{ttmernet_forward.1} parent=1 // pred_region
      %657 = dma.done [#allocation20], 16
    $region229: #{ttmernet_forward.1} parent=1 // pred_fallthru
      _
    // Predicated region
    $region230: #{ttmernet_forward.1} parent=1 // pred_check
      _
    $region231: #{ttmernet_forward.1} parent=1 // pred_check_branch
      %659 = sbr.rel (0) target = $region233
    $region232: #{ttmernet_forward.1} parent=1 // pred_region
      %661 = dma.done [#allocation23], 16
    $region233: #{ttmernet_forward.1} parent=1 // pred_fallthru
      _
    // Predicated region
    $region234: #{ttmernet_forward.1} parent=1 // pred_check
      _
    $region235: #{ttmernet_forward.1} parent=1 // pred_check_branch
      %663 = sbr.rel (0) target = $region237
    $region236: #{ttmernet_forward.1} parent=1 // pred_region
      %665 = dma.done [#allocation23], 1024
    $region237: #{ttmernet_forward.1} parent=1 // pred_fallthru
      _
    // Predicated region
    $region238: #{ttmernet_forward.1} parent=1 // pred_check
      _
    $region239: #{ttmernet_forward.1} parent=1 // pred_check_branch
      %667 = sbr.rel (0) target = $region241
    $region240: #{ttmernet_forward.1} parent=1 // pred_region
      %669 = dma.done [#allocation26], 16
    $region241: #{ttmernet_forward.1} parent=1 // pred_fallthru
      _
    // Predicated region
    $region242: #{ttmernet_forward.1} parent=1 // pred_check
      _
    $region243: #{ttmernet_forward.1} parent=1 // pred_check_branch
      %671 = sbr.rel (0) target = $region245
    $region244: #{ttmernet_forward.1} parent=1 // pred_region
      %673 = dma.done [#allocation26], 16
    $region245: #{ttmernet_forward.1} parent=1 // pred_fallthru
      _
    // Predicated region
    $region246: #{ttmernet_forward.1} parent=1 // pred_check
      _
    $region247: #{ttmernet_forward.1} parent=1 // pred_check_branch
      %675 = sbr.rel (0) target = $region249
    $region248: #{ttmernet_forward.1} parent=1 // pred_region
      %677 = dma.done [#allocation29], 16
    $region249: #{ttmernet_forward.1} parent=1 // pred_fallthru
      _
    // Predicated region
    $region250: #{ttmernet_forward.1} parent=1 // pred_check
      _
    $region251: #{ttmernet_forward.1} parent=1 // pred_check_branch
      %679 = sbr.rel (0) target = $region253
    $region252: #{ttmernet_forward.1} parent=1 // pred_region
      %681 = dma.done [#allocation29], 4096
    $region253: #{ttmernet_forward.1} parent=1 // pred_fallthru
      _
    // Predicated region
    $region254: #{ttmernet_forward.1} parent=1 // pred_check
      _
    $region255: #{ttmernet_forward.1} parent=1 // pred_check_branch
      %683 = sbr.rel (0) target = $region257
    $region256: #{ttmernet_forward.1} parent=1 // pred_region
      %685 = dma.done [#allocation32], 3072
    $region257: #{ttmernet_forward.1} parent=1 // pred_fallthru
      _
    // Predicated region
    $region258: #{ttmernet_forward.1} parent=1 // pred_check
      _
    $region259: #{ttmernet_forward.1} parent=1 // pred_check_branch
      %687 = sbr.rel (0) target = $region261
    $region260: #{ttmernet_forward.1} parent=1 // pred_region
      %689 = dma.done [#allocation32], 48
    $region261: #{ttmernet_forward.1} parent=1 // pred_fallthru
      _
    // Predicated region
    $region262: #{ttmernet_forward.1} parent=1 // pred_check
      _
    $region263: #{ttmernet_forward.1} parent=1 // pred_check_branch
      %691 = sbr.rel (0) target = $region265
    $region264: #{ttmernet_forward.1} parent=1 // pred_region
      %693 = dma.done [#allocation35], 48
    $region265: #{ttmernet_forward.1} parent=1 // pred_fallthru
      _
    // Predicated region
    $region266: #{ttmernet_forward.1} parent=1 // pred_check
      _
    $region267: #{ttmernet_forward.1} parent=1 // pred_check_branch
      %695 = sbr.rel (0) target = $region269
    $region268: #{ttmernet_forward.1} parent=1 // pred_region
      %697 = dma.done [#allocation35], 16
    $region269: #{ttmernet_forward.1} parent=1 // pred_fallthru
      _
    // Predicated region
    $region270: #{ttmernet_forward.1} parent=1 // pred_check
      _
    $region271: #{ttmernet_forward.1} parent=1 // pred_check_branch
      %699 = sbr.rel (0) target = $region273
    $region272: #{ttmernet_forward.1} parent=1 // pred_region
      %701 = dma.done [#allocation38], 16
    $region273: #{ttmernet_forward.1} parent=1 // pred_fallthru
      _
    // Predicated region
    $region274: #{ttmernet_forward.1} parent=1 // pred_check
      _
    $region275: #{ttmernet_forward.1} parent=1 // pred_check_branch
      %703 = sbr.rel (0) target = $region277
    $region276: #{ttmernet_forward.1} parent=1 // pred_region
      %705 = dma.done [#allocation38], 16
    $region277: #{ttmernet_forward.1} parent=1 // pred_fallthru
      _
    // Predicated region
    $region278: #{ttmernet_forward.1} parent=1 // pred_check
      _
    $region279: #{ttmernet_forward.1} parent=1 // pred_check_branch
      %707 = sbr.rel (0) target = $region281
    $region280: #{ttmernet_forward.1} parent=1 // pred_region
      %709 = dma.done [#allocation41], 16
    $region281: #{ttmernet_forward.1} parent=1 // pred_fallthru
      _
    // Predicated region
    $region282: #{ttmernet_forward.1} parent=1 // pred_check
      _
    $region283: #{ttmernet_forward.1} parent=1 // pred_check_branch
      %711 = sbr.rel (0) target = $region285
    $region284: #{ttmernet_forward.1} parent=1 // pred_region
      %713 = dma.done [#allocation41], 16
    $region285: #{ttmernet_forward.1} parent=1 // pred_fallthru
      _
    // Predicated region
    $region286: #{ttmernet_forward.1} parent=1 // pred_check
      _
    $region287: #{ttmernet_forward.1} parent=1 // pred_check_branch
      %715 = sbr.rel (0) target = $region289
    $region288: #{ttmernet_forward.1} parent=1 // pred_region
      %717 = dma.done [#allocation44], 16
    $region289: #{ttmernet_forward.1} parent=1 // pred_fallthru
      _
    // Predicated region
    $region290: #{ttmernet_forward.1} parent=1 // pred_check
      _
    $region291: #{ttmernet_forward.1} parent=1 // pred_check_branch
      %719 = sbr.rel (0) target = $region293
    $region292: #{ttmernet_forward.1} parent=1 // pred_region
      %721 = dma.done [#allocation44], 1024
    $region293: #{ttmernet_forward.1} parent=1 // pred_fallthru
      _
    // Predicated region
    $region294: #{ttmernet_forward.1} parent=1 // pred_check
      _
    $region295: #{ttmernet_forward.1} parent=1 // pred_check_branch
      %723 = sbr.rel (0) target = $region297
    $region296: #{ttmernet_forward.1} parent=1 // pred_region
      %725 = dma.done [#allocation47], 16
    $region297: #{ttmernet_forward.1} parent=1 // pred_fallthru
      _
    // Predicated region
    $region298: #{ttmernet_forward.1} parent=1 // pred_check
      _
    $region299: #{ttmernet_forward.1} parent=1 // pred_check_branch
      %727 = sbr.rel (0) target = $region301
    $region300: #{ttmernet_forward.1} parent=1 // pred_region
      %729 = dma.done [#allocation47], 16
    $region301: #{ttmernet_forward.1} parent=1 // pred_fallthru
      _
    // Predicated region
    $region302: #{ttmernet_forward.1} parent=1 // pred_check
      _
    $region303: #{ttmernet_forward.1} parent=1 // pred_check_branch
      %731 = sbr.rel (0) target = $region305
    $region304: #{ttmernet_forward.1} parent=1 // pred_region
      %733 = dma.done [#allocation50], 16
    $region305: #{ttmernet_forward.1} parent=1 // pred_fallthru
      _
    // Predicated region
    $region306: #{ttmernet_forward.1} parent=1 // pred_check
      _
    $region307: #{ttmernet_forward.1} parent=1 // pred_check_branch
      %735 = sbr.rel (0) target = $region309
    $region308: #{ttmernet_forward.1} parent=1 // pred_region
      %737 = dma.done [#allocation50], 4096
    $region309: #{ttmernet_forward.1} parent=1 // pred_fallthru
      _
    // Predicated region
    $region310: #{ttmernet_forward.1} parent=1 // pred_check
      _
    $region311: #{ttmernet_forward.1} parent=1 // pred_check_branch
      %739 = sbr.rel (0) target = $region313
    $region312: #{ttmernet_forward.1} parent=1 // pred_region
      %741 = dma.done [#allocation53], 3072
    $region313: #{ttmernet_forward.1} parent=1 // pred_fallthru
      _
    // Predicated region
    $region314: #{ttmernet_forward.1} parent=1 // pred_check
      _
    $region315: #{ttmernet_forward.1} parent=1 // pred_check_branch
      %743 = sbr.rel (0) target = $region317
    $region316: #{ttmernet_forward.1} parent=1 // pred_region
      %745 = dma.done [#allocation53], 48
    $region317: #{ttmernet_forward.1} parent=1 // pred_fallthru
      _
    // Predicated region
    $region318: #{ttmernet_forward.1} parent=1 // pred_check
      _
    $region319: #{ttmernet_forward.1} parent=1 // pred_check_branch
      %747 = sbr.rel (0) target = $region321
    $region320: #{ttmernet_forward.1} parent=1 // pred_region
      %749 = dma.done [#allocation56], 48
    $region321: #{ttmernet_forward.1} parent=1 // pred_fallthru
      _
    // Predicated region
    $region322: #{ttmernet_forward.1} parent=1 // pred_check
      _
    $region323: #{ttmernet_forward.1} parent=1 // pred_check_branch
      %751 = sbr.rel (0) target = $region325
    $region324: #{ttmernet_forward.1} parent=1 // pred_region
      %753 = dma.done [#allocation56], 16
    $region325: #{ttmernet_forward.1} parent=1 // pred_fallthru
      _
    // Predicated region
    $region326: #{ttmernet_forward.1} parent=1 // pred_check
      _
    $region327: #{ttmernet_forward.1} parent=1 // pred_check_branch
      %755 = sbr.rel (0) target = $region329
    $region328: #{ttmernet_forward.1} parent=1 // pred_region
      %757 = dma.done [#allocation59], 16
    $region329: #{ttmernet_forward.1} parent=1 // pred_fallthru
      _
    // Predicated region
    $region330: #{ttmernet_forward.1} parent=1 // pred_check
      _
    $region331: #{ttmernet_forward.1} parent=1 // pred_check_branch
      %759 = sbr.rel (0) target = $region333
    $region332: #{ttmernet_forward.1} parent=1 // pred_region
      %761 = dma.done [#allocation59], 1024
    $region333: #{ttmernet_forward.1} parent=1 // pred_fallthru
      _
    // Predicated region
    $region334: #{ttmernet_forward.1} parent=1 // pred_check
      _
    $region335: #{ttmernet_forward.1} parent=1 // pred_check_branch
      %763 = sbr.rel (0) target = $region337
    $region336: #{ttmernet_forward.1} parent=1 // pred_region
      %765 = dma.done [#allocation62], 16
    $region337: #{ttmernet_forward.1} parent=1 // pred_fallthru
      _
    // Predicated region
    $region338: #{ttmernet_forward.1} parent=1 // pred_check
      _
    $region339: #{ttmernet_forward.1} parent=1 // pred_check_branch
      %767 = sbr.rel (0) target = $region341
    $region340: #{ttmernet_forward.1} parent=1 // pred_region
      %769 = dma.done [#allocation62], 1024
    $region341: #{ttmernet_forward.1} parent=1 // pred_fallthru
      _
    // Predicated region
    $region342: #{ttmernet_forward.1} parent=1 // pred_check
      _
    $region343: #{ttmernet_forward.1} parent=1 // pred_check_branch
      %771 = sbr.rel (0) target = $region345
    $region344: #{ttmernet_forward.1} parent=1 // pred_region
      %773 = dma.done [#allocation65], 16
    $region345: #{ttmernet_forward.1} parent=1 // pred_fallthru
      _
    %v774 = vld [vmem:[%s1] sm:$0xff]
    %v775 = vld [vmem:[%s1 + $0x8] sm:$0xff]
    %v776 = vld [vmem:[%s1 + $0x10] sm:$0xff]
    %v777 = vld [vmem:[%s1 + $0x18] sm:$0xff]
    %v778 = vld [vmem:[#allocation2] sm:$0xff]
    %v779 = vld [vmem:[#allocation2 + $0x8] sm:$0xff]
    %v780 = vld [vmem:[#allocation2 + $0x10] sm:$0xff]
    %v781 = vld [vmem:[#allocation2 + $0x18] sm:$0xff]
    %v782 = vld [vmem:[#allocation6] sm:$0xf]
    %v783 = vld [vmem:[#allocation6 + $0x4] sm:$0xf]
    %v784 = vld [vmem:[#allocation6 + $0x8] sm:$0xf]
    %v785 = vld [vmem:[#allocation6 + $0xc] sm:$0xf]
    %v786 = vld [vmem:[#allocation6 + $0x10] sm:$0xf]
    %v787 = vld [vmem:[#allocation6 + $0x14] sm:$0xf]
    %v788 = vld [vmem:[#allocation6 + $0x18] sm:$0xf]
    %v789 = vld [vmem:[#allocation6 + $0x1c] sm:$0xf]
    %v790 = vld [vmem:[#allocation6 + $0x20] sm:$0xf]
    %v791 = vld [vmem:[#allocation6 + $0x24] sm:$0xf]
    %v792 = vld [vmem:[#allocation6 + $0x28] sm:$0xf]
    %v793 = vld [vmem:[#allocation6 + $0x2c] sm:$0xf]
    %v794 = vld [vmem:[#allocation6 + $0x30] sm:$0xf]
    %v795 = vld [vmem:[#allocation6 + $0x34] sm:$0xf]
    %v796 = vld [vmem:[#allocation6 + $0x38] sm:$0xf]
    %v797 = vld [vmem:[#allocation6 + $0x3c] sm:$0xf]
    %v798 = vld [vmem:[#allocation7] sm:$0x1]
    %v799 = vld [vmem:[#allocation9] sm:$0x1]
    %v800 = vld [vmem:[#allocation10] sm:$0x1]
    %v801 = vpack.c.bf16 %v779, %v778
    %v802 = vpack.c.bf16 %v781, %v780
    %v804 = vperm.slane %v798, 0
    %v822 = vunpack.c.l.b16 %v782
    %v823 = vunpack.c.l.b16 %v783
    %v824 = vunpack.c.l.b16 %v784
    %v825 = vunpack.c.l.b16 %v785
    %v826 = vunpack.c.l.b16 %v786
    %v827 = vunpack.c.l.b16 %v787
    %v828 = vunpack.c.l.b16 %v788
    %v829 = vunpack.c.l.b16 %v789
    %v830 = vunpack.c.l.b16 %v790
    %v831 = vunpack.c.l.b16 %v791
    %v832 = vunpack.c.l.b16 %v792
    %v833 = vunpack.c.l.b16 %v793
    %v834 = vunpack.c.l.b16 %v794
    %v835 = vunpack.c.l.b16 %v795
    %v836 = vunpack.c.l.b16 %v796
    %v837 = vunpack.c.l.b16 %v797
    %v838 = vpack.c.b16 %v823, %v822
    %v839 = vpack.c.b16 %v825, %v824
    %v840 = vpack.c.b16 %v827, %v826
    %v841 = vpack.c.b16 %v829, %v828
    %v842 = vpack.c.b16 %v831, %v830
    %v843 = vpack.c.b16 %v833, %v832
    %v844 = vpack.c.b16 %v835, %v834
    %v845 = vpack.c.b16 %v837, %v836
    %854 = vmatpush.bf16.msra.mxu0 %v845
    %855 = vmatpush.bf16.msra.mxu0 %v844
    %856 = vmatpush.bf16.msra.mxu0 %v843
    %857 = vmatpush.bf16.msra.mxu0 %v842
    %858 = vmatpush.bf16.msra.mxu0 %v841
    %859 = vmatpush.bf16.msra.mxu0 %v840
    %860 = vmatpush.bf16.msra.mxu0 %v839
    %861 = vmatpush.bf16.msra.mxu0 %v838
    %862 = vmatmul.bf16.gmra.mxu0 %v801
    %v863 = vpop.f32.mrf.mxu0
    %v864 = vadd.f32 %v804, %v863
    %v865 = vpop.f32.mrf.mxu0
    %v866 = vadd.f32 %v804, %v865
    %867 = vmatmul.bf16.gmra.mxu0 %v802
    %v868 = vpop.f32.mrf.mxu0
    %v869 = vadd.f32 %v804, %v868
    %v870 = vpop.f32.mrf.mxu0
    %v871 = vadd.f32 %v804, %v870
    %872 = vdwg.mxu0
    %vm873 = vcmask 261120
    %v875 = vsel %vm873, %v774, 0
    %v878 = vsel %vm873, %v775, 0
    %v881 = vsel %vm873, %v776, 0
    %v884 = vsel %vm873, %v777, 0
    %886 = vmatpush.msra.mxu0 0.0
    %887 = vmatpush.msra.mxu0 0.0
    %888 = vmatpush.msra.mxu0 0.0
    %889 = vmatpush.msra.mxu0 0.0
    %890 = vmatpush.msra.mxu0 0.0
    %891 = vmatpush.msra.mxu0 0.0
    %892 = vmatpush.msra.mxu0 0.0
    %893 = vmatpush.msra.mxu0 0.0
    %894 = vmatpush.msra.mxu0 0.0
    %895 = vmatpush.msra.mxu0 0.0
    %896 = vmatpush.msra.mxu0 0.0
    %897 = vmatpush.msra.mxu0 0.0
    %898 = vmatpush.msra.mxu0 %v871
    %899 = vmatpush.msra.mxu0 %v869
    %900 = vmatpush.msra.mxu0 %v866
    %901 = vmatpush.msra.mxu0 %v864
    %902 = vmatmul.f32.gmra.mxu0 %v875
    %v903 = vpop.f32.mrf.mxu0
    %v904 = vadd.f32 0.0, %v903
    %905 = vmatmul.f32.gmra.mxu0 %v878
    %v906 = vpop.f32.mrf.mxu0
    %v907 = vadd.f32 0.0, %v906
    %908 = vmatmul.f32.gmra.mxu0 %v881
    %v909 = vpop.f32.mrf.mxu0
    %v910 = vadd.f32 0.0, %v909
    %911 = vmatmul.f32.gmra.mxu0 %v884
    %v912 = vpop.f32.mrf.mxu0
    %v913 = vadd.f32 0.0, %v912
    %914 = vdwg.mxu0
    %v916 = vperm.slane %v799, 0
    %v918 = vmul.f32 %v904, %v916
    %v919 = vmul.f32 %v907, %v916
    %v920 = vmul.f32 %v910, %v916
    %v921 = vmul.f32 %v913, %v916
    %v923 = vperm.slane %v800, 0
    %v925 = vadd.f32 %v918, %v923
    %v926 = vadd.f32 %v919, %v923
    %v927 = vadd.f32 %v920, %v923
    %v928 = vadd.f32 %v921, %v923
    %v929 = vmax.f32 %v925, 0.0
    %v930 = vmax.f32 %v926, 0.0
    %v931 = vmax.f32 %v927, 0.0
    %v932 = vmax.f32 %v928, 0.0
    %v933 = vld [vmem:[#allocation12] sm:$0xf]
    %v934 = vld [vmem:[#allocation12 + $0x4] sm:$0xf]
    %v935 = vld [vmem:[#allocation12 + $0x8] sm:$0xf]
    %v936 = vld [vmem:[#allocation12 + $0xc] sm:$0xf]
    %v937 = vld [vmem:[#allocation12 + $0x10] sm:$0xf]
    %v938 = vld [vmem:[#allocation12 + $0x14] sm:$0xf]
    %v939 = vld [vmem:[#allocation12 + $0x18] sm:$0xf]
    %v940 = vld [vmem:[#allocation12 + $0x1c] sm:$0xf]
    %v941 = vld [vmem:[#allocation12 + $0x20] sm:$0xf]
    %v942 = vld [vmem:[#allocation12 + $0x24] sm:$0xf]
    %v943 = vld [vmem:[#allocation12 + $0x28] sm:$0xf]
    %v944 = vld [vmem:[#allocation12 + $0x2c] sm:$0xf]
    %v945 = vld [vmem:[#allocation12 + $0x30] sm:$0xf]
    %v946 = vld [vmem:[#allocation12 + $0x34] sm:$0xf]
    %v947 = vld [vmem:[#allocation12 + $0x38] sm:$0xf]
    %v948 = vld [vmem:[#allocation12 + $0x3c] sm:$0xf]
    %v949 = vld [vmem:[#allocation13] sm:$0x1]
    %v950 = vld [vmem:[#allocation15] sm:$0x1]
    %v951 = vld [vmem:[#allocation16] sm:$0x1]
    %v952 = vpack.c.bf16 %v930, %v929
    %v953 = vpack.c.bf16 %v932, %v931
    %v955 = vperm.slane %v949, 0
    %v973 = vunpack.c.l.b16 %v933
    %v974 = vunpack.c.l.b16 %v934
    %v975 = vunpack.c.l.b16 %v935
    %v976 = vunpack.c.l.b16 %v936
    %v977 = vunpack.c.l.b16 %v937
    %v978 = vunpack.c.l.b16 %v938
    %v979 = vunpack.c.l.b16 %v939
    %v980 = vunpack.c.l.b16 %v940
    %v981 = vunpack.c.l.b16 %v941
    %v982 = vunpack.c.l.b16 %v942
    %v983 = vunpack.c.l.b16 %v943
    %v984 = vunpack.c.l.b16 %v944
    %v985 = vunpack.c.l.b16 %v945
    %v986 = vunpack.c.l.b16 %v946
    %v987 = vunpack.c.l.b16 %v947
    %v988 = vunpack.c.l.b16 %v948
    %v989 = vpack.c.b16 %v974, %v973
    %v990 = vpack.c.b16 %v976, %v975
    %v991 = vpack.c.b16 %v978, %v977
    %v992 = vpack.c.b16 %v980, %v979
    %v993 = vpack.c.b16 %v982, %v981
    %v994 = vpack.c.b16 %v984, %v983
    %v995 = vpack.c.b16 %v986, %v985
    %v996 = vpack.c.b16 %v988, %v987
    %1005 = vmatpush.bf16.msra.mxu0 %v996
    %1006 = vmatpush.bf16.msra.mxu0 %v995
    %1007 = vmatpush.bf16.msra.mxu0 %v994
    %1008 = vmatpush.bf16.msra.mxu0 %v993
    %1009 = vmatpush.bf16.msra.mxu0 %v992
    %1010 = vmatpush.bf16.msra.mxu0 %v991
    %1011 = vmatpush.bf16.msra.mxu0 %v990
    %1012 = vmatpush.bf16.msra.mxu0 %v989
    %1013 = vmatmul.bf16.gmra.mxu0 %v952
    %v1014 = vpop.f32.mrf.mxu0
    %v1015 = vadd.f32 %v955, %v1014
    %v1016 = vpop.f32.mrf.mxu0
    %v1017 = vadd.f32 %v955, %v1016
    %1018 = vmatmul.bf16.gmra.mxu0 %v953
    %v1019 = vpop.f32.mrf.mxu0
    %v1020 = vadd.f32 %v955, %v1019
    %v1021 = vpop.f32.mrf.mxu0
    %v1022 = vadd.f32 %v955, %v1021
    %1023 = vdwg.mxu0
    %1024 = vmatpush.msra.mxu0 0.0
    %1025 = vmatpush.msra.mxu0 0.0
    %1026 = vmatpush.msra.mxu0 0.0
    %1027 = vmatpush.msra.mxu0 0.0
    %1028 = vmatpush.msra.mxu0 0.0
    %1029 = vmatpush.msra.mxu0 0.0
    %1030 = vmatpush.msra.mxu0 0.0
    %1031 = vmatpush.msra.mxu0 0.0
    %1032 = vmatpush.msra.mxu0 0.0
    %1033 = vmatpush.msra.mxu0 0.0
    %1034 = vmatpush.msra.mxu0 0.0
    %1035 = vmatpush.msra.mxu0 0.0
    %1036 = vmatpush.msra.mxu0 %v1022
    %1037 = vmatpush.msra.mxu0 %v1020
    %1038 = vmatpush.msra.mxu0 %v1017
    %1039 = vmatpush.msra.mxu0 %v1015
    %1040 = vmatmul.f32.gmra.mxu0 %v875
    %v1041 = vpop.f32.mrf.mxu0
    %v1042 = vadd.f32 0.0, %v1041
    %1043 = vmatmul.f32.gmra.mxu0 %v878
    %v1044 = vpop.f32.mrf.mxu0
    %v1045 = vadd.f32 0.0, %v1044
    %1046 = vmatmul.f32.gmra.mxu0 %v881
    %v1047 = vpop.f32.mrf.mxu0
    %v1048 = vadd.f32 0.0, %v1047
    %1049 = vmatmul.f32.gmra.mxu0 %v884
    %v1050 = vpop.f32.mrf.mxu0
    %v1051 = vadd.f32 0.0, %v1050
    %1052 = vdwg.mxu0
    %v1054 = vperm.slane %v950, 0
    %v1056 = vmul.f32 %v1042, %v1054
    %v1057 = vmul.f32 %v1045, %v1054
    %v1058 = vmul.f32 %v1048, %v1054
    %v1059 = vmul.f32 %v1051, %v1054
    %v1061 = vperm.slane %v951, 0
    %v1063 = vadd.f32 %v1056, %v1061
    %v1064 = vadd.f32 %v1057, %v1061
    %v1065 = vadd.f32 %v1058, %v1061
    %v1066 = vadd.f32 %v1059, %v1061
    %v1067 = vmax.f32 %v1063, 0.0
    %v1068 = vmax.f32 %v1064, 0.0
    %v1069 = vmax.f32 %v1065, 0.0
    %v1070 = vmax.f32 %v1066, 0.0
    %v1071 = vld [vmem:[#allocation4] sm:$0xff]
    %v1072 = vld [vmem:[#allocation4 + $0x8] sm:$0xff]
    %v1073 = vld [vmem:[#allocation18] sm:$0x1]
    %v1074 = vld [vmem:[#allocation19] sm:$0x1]
    %v1075 = vld [vmem:[#allocation21] sm:$0x1]
    %v1076 = vld [vmem:[#allocation22] sm:$0x1]
    %v1077 = vld [vmem:[#allocation24] sm:$0xf]
    %v1078 = vld [vmem:[#allocation24 + $0x4] sm:$0xf]
    %v1079 = vld [vmem:[#allocation24 + $0x8] sm:$0xf]
    %v1080 = vld [vmem:[#allocation24 + $0xc] sm:$0xf]
    %v1081 = vld [vmem:[#allocation24 + $0x10] sm:$0xf]
    %v1082 = vld [vmem:[#allocation24 + $0x14] sm:$0xf]
    %v1083 = vld [vmem:[#allocation24 + $0x18] sm:$0xf]
    %v1084 = vld [vmem:[#allocation24 + $0x1c] sm:$0xf]
    %v1085 = vld [vmem:[#allocation24 + $0x20] sm:$0xf]
    %v1086 = vld [vmem:[#allocation24 + $0x24] sm:$0xf]
    %v1087 = vld [vmem:[#allocation24 + $0x28] sm:$0xf]
    %v1088 = vld [vmem:[#allocation24 + $0x2c] sm:$0xf]
    %v1089 = vld [vmem:[#allocation24 + $0x30] sm:$0xf]
    %v1090 = vld [vmem:[#allocation24 + $0x34] sm:$0xf]
    %v1091 = vld [vmem:[#allocation24 + $0x38] sm:$0xf]
    %v1092 = vld [vmem:[#allocation24 + $0x3c] sm:$0xf]
    %v1093 = vld [vmem:[#allocation25] sm:$0x1]
    %v1094 = vld [vmem:[#allocation27] sm:$0x1]
    %v1095 = vld [vmem:[#allocation28] sm:$0x1]
    %v1096 = vld [vmem:[#allocation30] sm:$0xff]
    %v1097 = vld [vmem:[#allocation30 + $0x8] sm:$0xff]
    %v1098 = vld [vmem:[#allocation30 + $0x10] sm:$0xff]
    %v1099 = vld [vmem:[#allocation30 + $0x18] sm:$0xff]
    %v1100 = vld [vmem:[#allocation30 + $0x20] sm:$0xff]
    %v1101 = vld [vmem:[#allocation30 + $0x28] sm:$0xff]
    %v1102 = vld [vmem:[#allocation30 + $0x30] sm:$0xff]
    %v1103 = vld [vmem:[#allocation30 + $0x38] sm:$0xff]
    %v1104 = vld [vmem:[#allocation30 + $0x40] sm:$0xff]
    %v1105 = vld [vmem:[#allocation30 + $0x48] sm:$0xff]
    %v1106 = vld [vmem:[#allocation30 + $0x50] sm:$0xff]
    %v1107 = vld [vmem:[#allocation30 + $0x58] sm:$0xff]
    %v1108 = vld [vmem:[#allocation30 + $0x60] sm:$0xff]
    %v1109 = vld [vmem:[#allocation30 + $0x68] sm:$0xff]
    %v1110 = vld [vmem:[#allocation30 + $0x70] sm:$0xff]
    %v1111 = vld [vmem:[#allocation30 + $0x78] sm:$0xff]
    %v1112 = vld [vmem:[#allocation30 + $0x80] sm:$0xff]
    %v1113 = vld [vmem:[#allocation30 + $0x88] sm:$0xff]
    %v1114 = vld [vmem:[#allocation30 + $0x90] sm:$0xff]
    %v1115 = vld [vmem:[#allocation30 + $0x98] sm:$0xff]
    %v1116 = vld [vmem:[#allocation30 + $0xa0] sm:$0xff]
    %v1117 = vld [vmem:[#allocation30 + $0xa8] sm:$0xff]
    %v1118 = vld [vmem:[#allocation30 + $0xb0] sm:$0xff]
    %v1119 = vld [vmem:[#allocation30 + $0xb8] sm:$0xff]
    %v1120 = vld [vmem:[#allocation30 + $0xc0] sm:$0xff]
    %v1121 = vld [vmem:[#allocation30 + $0xc8] sm:$0xff]
    %v1122 = vld [vmem:[#allocation30 + $0xd0] sm:$0xff]
    %v1123 = vld [vmem:[#allocation30 + $0xd8] sm:$0xff]
    %v1124 = vld [vmem:[#allocation30 + $0xe0] sm:$0xff]
    %v1125 = vld [vmem:[#allocation30 + $0xe8] sm:$0xff]
    %v1126 = vld [vmem:[#allocation30 + $0xf0] sm:$0xff]
    %v1127 = vld [vmem:[#allocation30 + $0xf8] sm:$0xff]
    %v1128 = vld [vmem:[#allocation31] sm:$0xff]
    %v1129 = vld [vmem:[#allocation31 + $0x8] sm:$0xf]
    %v1130 = vld [vmem:[#allocation31 + $0xc] sm:$0xff]
    %v1131 = vld [vmem:[#allocation31 + $0x14] sm:$0xf]
    %v1132 = vld [vmem:[#allocation31 + $0x18] sm:$0xff]
    %v1133 = vld [vmem:[#allocation31 + $0x20] sm:$0xf]
    %v1134 = vld [vmem:[#allocation31 + $0x24] sm:$0xff]
    %v1135 = vld [vmem:[#allocation31 + $0x2c] sm:$0xf]
    %v1136 = vld [vmem:[#allocation31 + $0x30] sm:$0xff]
    %v1137 = vld [vmem:[#allocation31 + $0x38] sm:$0xf]
    %v1138 = vld [vmem:[#allocation31 + $0x3c] sm:$0xff]
    %v1139 = vld [vmem:[#allocation31 + $0x44] sm:$0xf]
    %v1140 = vld [vmem:[#allocation31 + $0x48] sm:$0xff]
    %v1141 = vld [vmem:[#allocation31 + $0x50] sm:$0xf]
    %v1142 = vld [vmem:[#allocation31 + $0x54] sm:$0xff]
    %v1143 = vld [vmem:[#allocation31 + $0x5c] sm:$0xf]
    %v1144 = vld [vmem:[#allocation31 + $0x60] sm:$0xff]
    %v1145 = vld [vmem:[#allocation31 + $0x68] sm:$0xf]
    %v1146 = vld [vmem:[#allocation31 + $0x6c] sm:$0xff]
    %v1147 = vld [vmem:[#allocation31 + $0x74] sm:$0xf]
    %v1148 = vld [vmem:[#allocation31 + $0x78] sm:$0xff]
    %v1149 = vld [vmem:[#allocation31 + $0x80] sm:$0xf]
    %v1150 = vld [vmem:[#allocation31 + $0x84] sm:$0xff]
    %v1151 = vld [vmem:[#allocation31 + $0x8c] sm:$0xf]
    %v1152 = vld [vmem:[#allocation31 + $0x90] sm:$0xff]
    %v1153 = vld [vmem:[#allocation31 + $0x98] sm:$0xf]
    %v1154 = vld [vmem:[#allocation31 + $0x9c] sm:$0xff]
    %v1155 = vld [vmem:[#allocation31 + $0xa4] sm:$0xf]
    %v1156 = vld [vmem:[#allocation31 + $0xa8] sm:$0xff]
    %v1157 = vld [vmem:[#allocation31 + $0xb0] sm:$0xf]
    %v1158 = vld [vmem:[#allocation31 + $0xb4] sm:$0xff]
    %v1159 = vld [vmem:[#allocation31 + $0xbc] sm:$0xf]
    %v1160 = vld [vmem:[#allocation33] sm:$0x7]
    %v1161 = vld [vmem:[#allocation34] sm:$0x7]
    %v1162 = vld [vmem:[#allocation36] sm:$0x1]
    %v1163 = vld [vmem:[#allocation37] sm:$0x1]
    %v1165 = vperm.slane %v1073, 0
    %v1167 = vmul.f32 %v1067, %v1165
    %v1168 = vmul.f32 %v1068, %v1165
    %v1169 = vmul.f32 %v1069, %v1165
    %v1170 = vmul.f32 %v1070, %v1165
    %v1172 = vperm.slane %v1074, 0
    %v1174 = vadd.f32 %v1167, %v1172
    %v1175 = vadd.f32 %v1168, %v1172
    %v1176 = vadd.f32 %v1169, %v1172
    %v1177 = vadd.f32 %v1170, %v1172
    %v1179 = vsel %vm873, %v1071, 0
    %v1182 = vsel %vm873, %v1072, 0
    %1184 = vmatpush.msra.mxu0 0.0
    %1185 = vmatpush.msra.mxu0 0.0
    %1186 = vmatpush.msra.mxu0 0.0
    %1187 = vmatpush.msra.mxu0 0.0
    %1188 = vmatpush.msra.mxu0 0.0
    %1189 = vmatpush.msra.mxu0 0.0
    %1190 = vmatpush.msra.mxu0 0.0
    %1191 = vmatpush.msra.mxu0 0.0
    %1192 = vmatpush.msra.mxu0 0.0
    %1193 = vmatpush.msra.mxu0 0.0
    %1194 = vmatpush.msra.mxu0 0.0
    %1195 = vmatpush.msra.mxu0 0.0
    %1196 = vmatpush.msra.mxu0 %v1177
    %1197 = vmatpush.msra.mxu0 %v1176
    %1198 = vmatpush.msra.mxu0 %v1175
    %1199 = vmatpush.msra.mxu0 %v1174
    %1200 = vmatmul.f32.gmra.mxu0 %v1179
    %v1201 = vpop.f32.mrf.mxu0
    %v1202 = vadd.f32 0.0, %v1201
    %1203 = vmatmul.f32.gmra.mxu0 %v1182
    %v1204 = vpop.f32.mrf.mxu0
    %v1205 = vadd.f32 0.0, %v1204
    %1206 = vdwg.mxu0
    %v1207 = vmax.f32 %v1202, 0.0
    %v1208 = vmax.f32 %v1205, 0.0
    %v1210 = vperm.slane %v1075, 0
    %v1212 = vmul.f32 %v1207, %v1210
    %v1213 = vmul.f32 %v1208, %v1210
    %v1215 = vperm.slane %v1076, 0
    %v1217 = vadd.f32 %v1212, %v1215
    %v1218 = vadd.f32 %v1213, %v1215
    %v1219 = vpack.c.bf16 %v1175, %v1174
    %v1220 = vpack.c.bf16 %v1177, %v1176
    %v1237 = vunpack.c.l.b16 %v1077
    %v1238 = vunpack.c.l.b16 %v1078
    %v1239 = vunpack.c.l.b16 %v1079
    %v1240 = vunpack.c.l.b16 %v1080
    %v1241 = vunpack.c.l.b16 %v1081
    %v1242 = vunpack.c.l.b16 %v1082
    %v1243 = vunpack.c.l.b16 %v1083
    %v1244 = vunpack.c.l.b16 %v1084
    %v1245 = vunpack.c.l.b16 %v1085
    %v1246 = vunpack.c.l.b16 %v1086
    %v1247 = vunpack.c.l.b16 %v1087
    %v1248 = vunpack.c.l.b16 %v1088
    %v1249 = vunpack.c.l.b16 %v1089
    %v1250 = vunpack.c.l.b16 %v1090
    %v1251 = vunpack.c.l.b16 %v1091
    %v1252 = vunpack.c.l.b16 %v1092
    %v1253 = vpack.c.b16 %v1238, %v1237
    %v1254 = vpack.c.b16 %v1240, %v1239
    %v1255 = vpack.c.b16 %v1242, %v1241
    %v1256 = vpack.c.b16 %v1244, %v1243
    %v1257 = vpack.c.b16 %v1246, %v1245
    %v1258 = vpack.c.b16 %v1248, %v1247
    %v1259 = vpack.c.b16 %v1250, %v1249
    %v1260 = vpack.c.b16 %v1252, %v1251
    %1269 = vmatpush.bf16.msra.mxu0 %v1260
    %1270 = vmatpush.bf16.msra.mxu0 %v1259
    %1271 = vmatpush.bf16.msra.mxu0 %v1258
    %1272 = vmatpush.bf16.msra.mxu0 %v1257
    %1273 = vmatpush.bf16.msra.mxu0 %v1256
    %1274 = vmatpush.bf16.msra.mxu0 %v1255
    %1275 = vmatpush.bf16.msra.mxu0 %v1254
    %1276 = vmatpush.bf16.msra.mxu0 %v1253
    %1277 = vmatmul.bf16.gmra.mxu0 %v1219
    %v1278 = vpop.f32.mrf.mxu0
    %v1279 = vadd.f32 0.0, %v1278
    %v1280 = vpop.f32.mrf.mxu0
    %v1281 = vadd.f32 0.0, %v1280
    %1282 = vmatmul.bf16.gmra.mxu0 %v1220
    %v1283 = vpop.f32.mrf.mxu0
    %v1284 = vadd.f32 0.0, %v1283
    %v1285 = vpop.f32.mrf.mxu0
    %v1286 = vadd.f32 0.0, %v1285
    %1287 = vdwg.mxu0
    %v1288 = vpack.c.bf16 %v1218, %v1217
    %v1321 = vunpack.c.l.b16 %v1096
    %v1322 = vunpack.c.h.b16 %v1096
    %v1323 = vunpack.c.l.b16 %v1097
    %v1324 = vunpack.c.h.b16 %v1097
    %v1325 = vunpack.c.l.b16 %v1098
    %v1326 = vunpack.c.h.b16 %v1098
    %v1327 = vunpack.c.l.b16 %v1099
    %v1328 = vunpack.c.h.b16 %v1099
    %v1329 = vunpack.c.l.b16 %v1100
    %v1330 = vunpack.c.h.b16 %v1100
    %v1331 = vunpack.c.l.b16 %v1101
    %v1332 = vunpack.c.h.b16 %v1101
    %v1333 = vunpack.c.l.b16 %v1102
    %v1334 = vunpack.c.h.b16 %v1102
    %v1335 = vunpack.c.l.b16 %v1103
    %v1336 = vunpack.c.h.b16 %v1103
    %v1337 = vunpack.c.l.b16 %v1104
    %v1338 = vunpack.c.h.b16 %v1104
    %v1339 = vunpack.c.l.b16 %v1105
    %v1340 = vunpack.c.h.b16 %v1105
    %v1341 = vunpack.c.l.b16 %v1106
    %v1342 = vunpack.c.h.b16 %v1106
    %v1343 = vunpack.c.l.b16 %v1107
    %v1344 = vunpack.c.h.b16 %v1107
    %v1345 = vunpack.c.l.b16 %v1108
    %v1346 = vunpack.c.h.b16 %v1108
    %v1347 = vunpack.c.l.b16 %v1109
    %v1348 = vunpack.c.h.b16 %v1109
    %v1349 = vunpack.c.l.b16 %v1110
    %v1350 = vunpack.c.h.b16 %v1110
    %v1351 = vunpack.c.l.b16 %v1111
    %v1352 = vunpack.c.h.b16 %v1111
    %v1353 = vunpack.c.l.b16 %v1112
    %v1354 = vunpack.c.h.b16 %v1112
    %v1355 = vunpack.c.l.b16 %v1113
    %v1356 = vunpack.c.h.b16 %v1113
    %v1357 = vunpack.c.l.b16 %v1114
    %v1358 = vunpack.c.h.b16 %v1114
    %v1359 = vunpack.c.l.b16 %v1115
    %v1360 = vunpack.c.h.b16 %v1115
    %v1361 = vunpack.c.l.b16 %v1116
    %v1362 = vunpack.c.h.b16 %v1116
    %v1363 = vunpack.c.l.b16 %v1117
    %v1364 = vunpack.c.h.b16 %v1117
    %v1365 = vunpack.c.l.b16 %v1118
    %v1366 = vunpack.c.h.b16 %v1118
    %v1367 = vunpack.c.l.b16 %v1119
    %v1368 = vunpack.c.h.b16 %v1119
    %v1369 = vunpack.c.l.b16 %v1120
    %v1370 = vunpack.c.h.b16 %v1120
    %v1371 = vunpack.c.l.b16 %v1121
    %v1372 = vunpack.c.h.b16 %v1121
    %v1373 = vunpack.c.l.b16 %v1122
    %v1374 = vunpack.c.h.b16 %v1122
    %v1375 = vunpack.c.l.b16 %v1123
    %v1376 = vunpack.c.h.b16 %v1123
    %v1377 = vunpack.c.l.b16 %v1124
    %v1378 = vunpack.c.h.b16 %v1124
    %v1379 = vunpack.c.l.b16 %v1125
    %v1380 = vunpack.c.h.b16 %v1125
    %v1381 = vunpack.c.l.b16 %v1126
    %v1382 = vunpack.c.h.b16 %v1126
    %v1383 = vunpack.c.l.b16 %v1127
    %v1384 = vunpack.c.h.b16 %v1127
    %v1385 = vpack.c.b16 %v1325, %v1321
    %v1386 = vpack.c.b16 %v1326, %v1322
    %v1387 = vpack.c.b16 %v1327, %v1323
    %v1388 = vpack.c.b16 %v1328, %v1324
    %v1389 = vpack.c.b16 %v1333, %v1329
    %v1390 = vpack.c.b16 %v1334, %v1330
    %v1391 = vpack.c.b16 %v1335, %v1331
    %v1392 = vpack.c.b16 %v1336, %v1332
    %v1393 = vpack.c.b16 %v1341, %v1337
    %v1394 = vpack.c.b16 %v1342, %v1338
    %v1395 = vpack.c.b16 %v1343, %v1339
    %v1396 = vpack.c.b16 %v1344, %v1340
    %v1397 = vpack.c.b16 %v1349, %v1345
    %v1398 = vpack.c.b16 %v1350, %v1346
    %v1399 = vpack.c.b16 %v1351, %v1347
    %v1400 = vpack.c.b16 %v1352, %v1348
    %v1401 = vpack.c.b16 %v1357, %v1353
    %v1402 = vpack.c.b16 %v1358, %v1354
    %v1403 = vpack.c.b16 %v1359, %v1355
    %v1404 = vpack.c.b16 %v1360, %v1356
    %v1405 = vpack.c.b16 %v1365, %v1361
    %v1406 = vpack.c.b16 %v1366, %v1362
    %v1407 = vpack.c.b16 %v1367, %v1363
    %v1408 = vpack.c.b16 %v1368, %v1364
    %v1409 = vpack.c.b16 %v1373, %v1369
    %v1410 = vpack.c.b16 %v1374, %v1370
    %v1411 = vpack.c.b16 %v1375, %v1371
    %v1412 = vpack.c.b16 %v1376, %v1372
    %v1413 = vpack.c.b16 %v1381, %v1377
    %v1414 = vpack.c.b16 %v1382, %v1378
    %v1415 = vpack.c.b16 %v1383, %v1379
    %v1416 = vpack.c.b16 %v1384, %v1380
    %1449 = vmatpush.bf16.msra.mxu0 %v1413
    %1450 = vmatpush.bf16.msra.mxu0 %v1409
    %1451 = vmatpush.bf16.msra.mxu0 %v1405
    %1452 = vmatpush.bf16.msra.mxu0 %v1401
    %1453 = vmatpush.bf16.msra.mxu0 %v1397
    %1454 = vmatpush.bf16.msra.mxu0 %v1393
    %1455 = vmatpush.bf16.msra.mxu0 %v1389
    %1456 = vmatpush.bf16.msra.mxu0 %v1385
    %1457 = vmatmul.bf16.gmra.mxu0 %v1288
    %v1458 = vpop.f32.mrf.mxu0
    %v1459 = vadd.f32 0.0, %v1458
    %v1460 = vpop.f32.mrf.mxu0
    %v1461 = vadd.f32 0.0, %v1460
    %1462 = vdwg.mxu0
    %1463 = vmatpush.bf16.msra.mxu0 %v1414
    %1464 = vmatpush.bf16.msra.mxu0 %v1410
    %1465 = vmatpush.bf16.msra.mxu0 %v1406
    %1466 = vmatpush.bf16.msra.mxu0 %v1402
    %1467 = vmatpush.bf16.msra.mxu0 %v1398
    %1468 = vmatpush.bf16.msra.mxu0 %v1394
    %1469 = vmatpush.bf16.msra.mxu0 %v1390
    %1470 = vmatpush.bf16.msra.mxu0 %v1386
    %1471 = vmatmul.bf16.gmra.mxu0 %v1288
    %v1472 = vpop.f32.mrf.mxu0
    %v1473 = vadd.f32 0.0, %v1472
    %v1474 = vpop.f32.mrf.mxu0
    %v1475 = vadd.f32 0.0, %v1474
    %1476 = vdwg.mxu0
    %1477 = vmatpush.bf16.msra.mxu0 %v1415
    %1478 = vmatpush.bf16.msra.mxu0 %v1411
    %1479 = vmatpush.bf16.msra.mxu0 %v1407
    %1480 = vmatpush.bf16.msra.mxu0 %v1403
    %1481 = vmatpush.bf16.msra.mxu0 %v1399
    %1482 = vmatpush.bf16.msra.mxu0 %v1395
    %1483 = vmatpush.bf16.msra.mxu0 %v1391
    %1484 = vmatpush.bf16.msra.mxu0 %v1387
    %1485 = vmatmul.bf16.gmra.mxu0 %v1288
    %v1486 = vpop.f32.mrf.mxu0
    %v1487 = vadd.f32 0.0, %v1486
    %v1488 = vpop.f32.mrf.mxu0
    %v1489 = vadd.f32 0.0, %v1488
    %1490 = vdwg.mxu0
    %1491 = vmatpush.bf16.msra.mxu0 %v1416
    %1492 = vmatpush.bf16.msra.mxu0 %v1412
    %1493 = vmatpush.bf16.msra.mxu0 %v1408
    %1494 = vmatpush.bf16.msra.mxu0 %v1404
    %1495 = vmatpush.bf16.msra.mxu0 %v1400
    %1496 = vmatpush.bf16.msra.mxu0 %v1396
    %1497 = vmatpush.bf16.msra.mxu0 %v1392
    %1498 = vmatpush.bf16.msra.mxu0 %v1388
    %1499 = vmatmul.bf16.gmra.mxu0 %v1288
    %v1500 = vpop.f32.mrf.mxu0
    %v1501 = vadd.f32 0.0, %v1500
    %v1502 = vpop.f32.mrf.mxu0
    %v1503 = vadd.f32 0.0, %v1502
    %1504 = vdwg.mxu0
    %v1506 = vperm.slane %v1161, 0
    %v1507 = vperm.slane %v1161, 1
    %v1508 = vperm.slane %v1161, 2
    %v1512 = vadd.f32 %v1473, %v1506
    %v1513 = vadd.f32 %v1487, %v1507
    %v1514 = vadd.f32 %v1501, %v1508
    %v1515 = vadd.f32 %v1475, %v1506
    %v1516 = vadd.f32 %v1489, %v1507
    %v1517 = vadd.f32 %v1503, %v1508
    %v1519 = vperm.slane %v1094, 0
    %v1521 = vmul.f32 %v1459, %v1519
    %v1522 = vmul.f32 %v1461, %v1519
    %1523 = vadd.xlane.f32.xlu0 %v1521
    %v1524 = vpop.xlane.xlu0 %1523
    %1525 = vadd.xlane.f32.xlu0 %v1522
    %v1526 = vpop.xlane.xlu0 %1525
    %1527 = vmatpush.xpose.msra.mxu0 0.0
    %1528 = vmatpush.xpose.msra.mxu0 0.0
    %1529 = vmatpush.xpose.msra.mxu0 0.0
    %1530 = vmatpush.xpose.msra.mxu0 0.0
    %1531 = vmatpush.xpose.msra.mxu0 0.0
    %1532 = vmatpush.xpose.msra.mxu0 0.0
    %1533 = vmatpush.xpose.msra.mxu0 0.0
    %1534 = vmatpush.xpose.msra.mxu0 0.0
    %1535 = vmatpush.xpose.msra.mxu0 0.0
    %1536 = vmatpush.xpose.msra.mxu0 0.0
    %1537 = vmatpush.xpose.msra.mxu0 0.0
    %1538 = vmatpush.xpose.msra.mxu0 0.0
    %1539 = vmatpush.xpose.msra.mxu0 %v1286
    %1540 = vmatpush.xpose.msra.mxu0 %v1284
    %1541 = vmatpush.xpose.msra.mxu0 %v1281
    %1542 = vmatpush.xpose.msra.mxu0 %v1279
    %1543 = vmatmul.f32.gmra.mxu0 %v1093
    %v1544 = vpop.f32.mrf.mxu0
    %v1545 = vadd.f32 0.0, %v1544
    %1546 = vdwg.mxu0
    %v1547 = vperm.slane %v1545, 0
    %v1548 = vadd.f32 %v1524, %v1547
    %v1549 = vadd.f32 %v1526, %v1547
    %vm1550 = vcmp.gt.f32.partialorder %v1548, 0.0
    %vm1551 = vcmp.gt.f32.partialorder %v1549, 0.0
    %v1552 = vmul.f32 %v1548, 0.01
    %v1553 = vmul.f32 %v1549, 0.01
    %v1554 = vsel %vm1550, %v1548, %v1552
    %v1555 = vsel %vm1551, %v1549, %v1553
    %vm1556 = vcmp.gt.f32.partialorder %v1071, 0.0
    %vm1557 = vcmp.gt.f32.partialorder %v1072, 0.0
    %v1558 = vsel %vm1556, %v1554, -1e+30
    %v1559 = vsel %vm1557, %v1555, -1e+30
    %v1560 = vsel %vm873, %v1558, -inf
    %1561 = vmax.xlane.f32.xlu0 %v1560
    %v1562 = vpop.xlane.xlu0 %1561
    %v1563 = vsel %vm873, %v1559, -inf
    %1564 = vmax.xlane.f32.xlu0 %v1563
    %v1565 = vpop.xlane.xlu0 %1564
    %v1566 = vsub.f32 %v1558, %v1562
    %v1567 = vsub.f32 %v1559, %v1565
    %v1568 = vmul.f32 %v1566, 1.442695
    %v1569 = vpow.pop %v1568
    %v1570 = vmul.f32 %v1567, 1.442695
    %v1571 = vpow.pop %v1570
    %v1572 = vmul.f32 %v1569, %v1071
    %v1573 = vmul.f32 %v1571, %v1072
    %v1574 = vsel %vm873, %v1572, 0.0
    %1575 = vadd.xlane.f32.xlu0 %v1574
    %v1576 = vpop.xlane.xlu0 %1575
    %v1577 = vsel %vm873, %v1573, 0.0
    %1578 = vadd.xlane.f32.xlu0 %v1577
    %v1579 = vpop.xlane.xlu0 %1578
    %v1580 = vmax.f32 %v1576, 1e-30
    %v1581 = vmax.f32 %v1579, 1e-30
    %v1582 = vrcp.pop %v1580
    %v1583 = vrcp.pop %v1581
    %v1584 = vmul.f32 %v1572, %v1582
    %v1585 = vmul.f32 %v1573, %v1583
    %v1587 = vperm.slane %v1095, 0
    %v1590 = vsel %vm873, %v1584, 0
    %v1593 = vsel %vm873, %v1585, 0
    %1595 = vmatpush.msra.mxu0 0.0
    %1596 = vmatpush.msra.mxu0 0.0
    %1597 = vmatpush.msra.mxu0 0.0
    %1598 = vmatpush.msra.mxu0 0.0
    %1599 = vmatpush.msra.mxu0 0.0
    %1600 = vmatpush.msra.mxu0 0.0
    %1601 = vmatpush.msra.mxu0 0.0
    %1602 = vmatpush.msra.mxu0 0.0
    %1603 = vmatpush.msra.mxu0 0.0
    %1604 = vmatpush.msra.mxu0 0.0
    %1605 = vmatpush.msra.mxu0 0.0
    %1606 = vmatpush.msra.mxu0 0.0
    %1607 = vmatpush.msra.mxu0 %v1286
    %1608 = vmatpush.msra.mxu0 %v1284
    %1609 = vmatpush.msra.mxu0 %v1281
    %1610 = vmatpush.msra.mxu0 %v1279
    %1611 = vmatmul.f32.gmra.mxu0 %v1590
    %v1612 = vpop.f32.mrf.mxu0
    %v1613 = vadd.f32 %v1587, %v1612
    %1614 = vmatmul.f32.gmra.mxu0 %v1593
    %v1615 = vpop.f32.mrf.mxu0
    %v1616 = vadd.f32 %v1587, %v1615
    %1617 = vdwg.mxu0
    %vm1618 = vcmp.gt.f32.partialorder %v1613, 0.0
    %vm1619 = vcmp.gt.f32.partialorder %v1616, 0.0
    %v1620 = vmin.f32 %v1613, 0.0
    %v1621 = vmin.f32 %v1616, 0.0
    %v1622 = vmul.f32 %v1620, 1.442695
    %v1623 = vpow.pop %v1622
    %v1624 = vmul.f32 %v1621, 1.442695
    %v1625 = vpow.pop %v1624
    %v1626 = vsub.f32 %v1623, 1.0
    %v1627 = vsub.f32 %v1625, 1.0
    %v1628 = vsel %vm1618, %v1613, %v1626
    %v1629 = vsel %vm1619, %v1616, %v1627
    %v1630 = vpack.c.bf16 %v1629, %v1628
    %v1632 = vperm.slane %v1160, 0
    %v1633 = vperm.slane %v1160, 1
    %v1634 = vperm.slane %v1160, 2
    %v1670 = vunpack.c.l.b16 %v1128
    %v1671 = vunpack.c.h.b16 %v1128
    %v1672 = vunpack.c.l.b16 %v1129
    %v1673 = vunpack.c.l.b16 %v1130
    %v1674 = vunpack.c.h.b16 %v1130
    %v1675 = vunpack.c.l.b16 %v1131
    %v1676 = vunpack.c.l.b16 %v1132
    %v1677 = vunpack.c.h.b16 %v1132
    %v1678 = vunpack.c.l.b16 %v1133
    %v1679 = vunpack.c.l.b16 %v1134
    %v1680 = vunpack.c.h.b16 %v1134
    %v1681 = vunpack.c.l.b16 %v1135
    %v1682 = vunpack.c.l.b16 %v1136
    %v1683 = vunpack.c.h.b16 %v1136
    %v1684 = vunpack.c.l.b16 %v1137
    %v1685 = vunpack.c.l.b16 %v1138
    %v1686 = vunpack.c.h.b16 %v1138
    %v1687 = vunpack.c.l.b16 %v1139
    %v1688 = vunpack.c.l.b16 %v1140
    %v1689 = vunpack.c.h.b16 %v1140
    %v1690 = vunpack.c.l.b16 %v1141
    %v1691 = vunpack.c.l.b16 %v1142
    %v1692 = vunpack.c.h.b16 %v1142
    %v1693 = vunpack.c.l.b16 %v1143
    %v1694 = vunpack.c.l.b16 %v1144
    %v1695 = vunpack.c.h.b16 %v1144
    %v1696 = vunpack.c.l.b16 %v1145
    %v1697 = vunpack.c.l.b16 %v1146
    %v1698 = vunpack.c.h.b16 %v1146
    %v1699 = vunpack.c.l.b16 %v1147
    %v1700 = vunpack.c.l.b16 %v1148
    %v1701 = vunpack.c.h.b16 %v1148
    %v1702 = vunpack.c.l.b16 %v1149
    %v1703 = vunpack.c.l.b16 %v1150
    %v1704 = vunpack.c.h.b16 %v1150
    %v1705 = vunpack.c.l.b16 %v1151
    %v1706 = vunpack.c.l.b16 %v1152
    %v1707 = vunpack.c.h.b16 %v1152
    %v1708 = vunpack.c.l.b16 %v1153
    %v1709 = vunpack.c.l.b16 %v1154
    %v1710 = vunpack.c.h.b16 %v1154
    %v1711 = vunpack.c.l.b16 %v1155
    %v1712 = vunpack.c.l.b16 %v1156
    %v1713 = vunpack.c.h.b16 %v1156
    %v1714 = vunpack.c.l.b16 %v1157
    %v1715 = vunpack.c.l.b16 %v1158
    %v1716 = vunpack.c.h.b16 %v1158
    %v1717 = vunpack.c.l.b16 %v1159
    %v1718 = vpack.c.b16 %v1673, %v1670
    %v1719 = vpack.c.b16 %v1674, %v1671
    %v1720 = vpack.c.b16 %v1675, %v1672
    %v1721 = vpack.c.b16 %v1679, %v1676
    %v1722 = vpack.c.b16 %v1680, %v1677
    %v1723 = vpack.c.b16 %v1681, %v1678
    %v1724 = vpack.c.b16 %v1685, %v1682
    %v1725 = vpack.c.b16 %v1686, %v1683
    %v1726 = vpack.c.b16 %v1687, %v1684
    %v1727 = vpack.c.b16 %v1691, %v1688
    %v1728 = vpack.c.b16 %v1692, %v1689
    %v1729 = vpack.c.b16 %v1693, %v1690
    %v1730 = vpack.c.b16 %v1697, %v1694
    %v1731 = vpack.c.b16 %v1698, %v1695
    %v1732 = vpack.c.b16 %v1699, %v1696
    %v1733 = vpack.c.b16 %v1703, %v1700
    %v1734 = vpack.c.b16 %v1704, %v1701
    %v1735 = vpack.c.b16 %v1705, %v1702
    %v1736 = vpack.c.b16 %v1709, %v1706
    %v1737 = vpack.c.b16 %v1710, %v1707
    %v1738 = vpack.c.b16 %v1711, %v1708
    %v1739 = vpack.c.b16 %v1715, %v1712
    %v1740 = vpack.c.b16 %v1716, %v1713
    %v1741 = vpack.c.b16 %v1717, %v1714
    %1766 = vmatpush.bf16.msra.mxu0 %v1739
    %1767 = vmatpush.bf16.msra.mxu0 %v1736
    %1768 = vmatpush.bf16.msra.mxu0 %v1733
    %1769 = vmatpush.bf16.msra.mxu0 %v1730
    %1770 = vmatpush.bf16.msra.mxu0 %v1727
    %1771 = vmatpush.bf16.msra.mxu0 %v1724
    %1772 = vmatpush.bf16.msra.mxu0 %v1721
    %1773 = vmatpush.bf16.msra.mxu0 %v1718
    %1774 = vmatmul.bf16.gmra.mxu0 %v1630
    %v1775 = vpop.f32.mrf.mxu0
    %v1776 = vadd.f32 %v1632, %v1775
    %v1777 = vpop.f32.mrf.mxu0
    %v1778 = vadd.f32 %v1632, %v1777
    %1779 = vdwg.mxu0
    %1780 = vmatpush.bf16.msra.mxu0 %v1740
    %1781 = vmatpush.bf16.msra.mxu0 %v1737
    %1782 = vmatpush.bf16.msra.mxu0 %v1734
    %1783 = vmatpush.bf16.msra.mxu0 %v1731
    %1784 = vmatpush.bf16.msra.mxu0 %v1728
    %1785 = vmatpush.bf16.msra.mxu0 %v1725
    %1786 = vmatpush.bf16.msra.mxu0 %v1722
    %1787 = vmatpush.bf16.msra.mxu0 %v1719
    %1788 = vmatmul.bf16.gmra.mxu0 %v1630
    %v1789 = vpop.f32.mrf.mxu0
    %v1790 = vadd.f32 %v1633, %v1789
    %v1791 = vpop.f32.mrf.mxu0
    %v1792 = vadd.f32 %v1633, %v1791
    %1793 = vdwg.mxu0
    %1794 = vmatpush.bf16.msra.mxu0 %v1741
    %1795 = vmatpush.bf16.msra.mxu0 %v1738
    %1796 = vmatpush.bf16.msra.mxu0 %v1735
    %1797 = vmatpush.bf16.msra.mxu0 %v1732
    %1798 = vmatpush.bf16.msra.mxu0 %v1729
    %1799 = vmatpush.bf16.msra.mxu0 %v1726
    %1800 = vmatpush.bf16.msra.mxu0 %v1723
    %1801 = vmatpush.bf16.msra.mxu0 %v1720
    %1802 = vmatmul.bf16.gmra.mxu0 %v1630
    %v1803 = vpop.f32.mrf.mxu0
    %v1804 = vadd.f32 %v1634, %v1803
    %v1805 = vpop.f32.mrf.mxu0
    %v1806 = vadd.f32 %v1634, %v1805
    %1807 = vdwg.mxu0
    %v1808 = vadd.f32 %v1776, %v1512
    %v1809 = vadd.f32 %v1778, %v1515
    %v1810 = vxor.u32 %v1808, 2147483648
    %v1811 = vxor.u32 %v1809, 2147483648
    %v1812 = vmul.f32 %v1810, 1.442695
    %v1813 = vpow.pop %v1812
    %v1814 = vmul.f32 %v1811, 1.442695
    %v1815 = vpow.pop %v1814
    %v1816 = vadd.f32 %v1813, 1.0
    %v1817 = vadd.f32 %v1815, 1.0
    %v1818 = vrcp.pop %v1816
    %v1819 = vmul.f32 %v1816, %v1818
    %v1820 = vsub.f32 1.0, %v1819
    %v1821 = vmul.f32 %v1818, %v1820
    %v1822 = vadd.f32 %v1818, %v1821
    %vm1823 = vweird.f32 %v1816
    %vm1824 = vweird.f32 %v1818
    %vm1825 = vmor %vm1823, %vm1824
    %v1826 = vsel %vm1825, %v1818, %v1822
    %v1827 = vand.u32 2147483647, %v1816
    %vm1828 = vcmp.eq.f32.partialorder %v1827, 8.507059e+37
    %v1829 = vand.u32 %v1816, 2147483648
    %v1830 = vor.u32 1.1754944e-38, %v1829
    %v1831 = vsel %vm1828, %v1830, %v1826
    %v1832 = vmul.f32 1.0, %v1831
    %v1833 = vrcp.pop %v1817
    %v1834 = vmul.f32 %v1817, %v1833
    %v1835 = vsub.f32 1.0, %v1834
    %v1836 = vmul.f32 %v1833, %v1835
    %v1837 = vadd.f32 %v1833, %v1836
    %vm1838 = vweird.f32 %v1817
    %vm1839 = vweird.f32 %v1833
    %vm1840 = vmor %vm1838, %vm1839
    %v1841 = vsel %vm1840, %v1833, %v1837
    %v1842 = vand.u32 2147483647, %v1817
    %vm1843 = vcmp.eq.f32.partialorder %v1842, 8.507059e+37
    %v1844 = vand.u32 %v1817, 2147483648
    %v1845 = vor.u32 1.1754944e-38, %v1844
    %v1846 = vsel %vm1843, %v1845, %v1841
    %v1847 = vmul.f32 1.0, %v1846
    %v1848 = vadd.f32 %v1790, %v1513
    %v1849 = vadd.f32 %v1792, %v1516
    %v1850 = vxor.u32 %v1848, 2147483648
    %v1851 = vxor.u32 %v1849, 2147483648
    %v1852 = vmul.f32 %v1850, 1.442695
    %v1853 = vpow.pop %v1852
    %v1854 = vmul.f32 %v1851, 1.442695
    %v1855 = vpow.pop %v1854
    %v1856 = vadd.f32 %v1853, 1.0
    %v1857 = vadd.f32 %v1855, 1.0
    %v1858 = vrcp.pop %v1856
    %v1859 = vmul.f32 %v1856, %v1858
    %v1860 = vsub.f32 1.0, %v1859
    %v1861 = vmul.f32 %v1858, %v1860
    %v1862 = vadd.f32 %v1858, %v1861
    %vm1863 = vweird.f32 %v1856
    %vm1864 = vweird.f32 %v1858
    %vm1865 = vmor %vm1863, %vm1864
    %v1866 = vsel %vm1865, %v1858, %v1862
    %v1867 = vand.u32 2147483647, %v1856
    %vm1868 = vcmp.eq.f32.partialorder %v1867, 8.507059e+37
    %v1869 = vand.u32 %v1856, 2147483648
    %v1870 = vor.u32 1.1754944e-38, %v1869
    %v1871 = vsel %vm1868, %v1870, %v1866
    %v1872 = vmul.f32 1.0, %v1871
    %v1873 = vrcp.pop %v1857
    %v1874 = vmul.f32 %v1857, %v1873
    %v1875 = vsub.f32 1.0, %v1874
    %v1876 = vmul.f32 %v1873, %v1875
    %v1877 = vadd.f32 %v1873, %v1876
    %vm1878 = vweird.f32 %v1857
    %vm1879 = vweird.f32 %v1873
    %vm1880 = vmor %vm1878, %vm1879
    %v1881 = vsel %vm1880, %v1873, %v1877
    %v1882 = vand.u32 2147483647, %v1857
    %vm1883 = vcmp.eq.f32.partialorder %v1882, 8.507059e+37
    %v1884 = vand.u32 %v1857, 2147483648
    %v1885 = vor.u32 1.1754944e-38, %v1884
    %v1886 = vsel %vm1883, %v1885, %v1881
    %v1887 = vmul.f32 1.0, %v1886
    %v1888 = vmul.f32 %v1832, %v1514
    %v1889 = vmul.f32 %v1847, %v1517
    %v1890 = vadd.f32 %v1804, %v1888
    %v1891 = vadd.f32 %v1806, %v1889
    %v1892 = vtanh.pop %v1890
    %v1893 = vtanh.pop %v1891
    %v1894 = vsub.f32 1.0, %v1872
    %v1895 = vsub.f32 1.0, %v1887
    %v1896 = vmul.f32 %v1894, %v1892
    %v1897 = vmul.f32 %v1895, %v1893
    %v1898 = vmul.f32 %v1872, %v1217
    %v1899 = vmul.f32 %v1887, %v1218
    %v1900 = vadd.f32 %v1896, %v1898
    %v1901 = vadd.f32 %v1897, %v1899
    %v1902 = vmax.f32 %v1900, 0.0
    %v1903 = vmax.f32 %v1901, 0.0
    %v1905 = vperm.slane %v1162, 0
    %v1907 = vmul.f32 %v1902, %v1905
    %v1908 = vmul.f32 %v1903, %v1905
    %v1910 = vperm.slane %v1163, 0
    %v1912 = vadd.f32 %v1907, %v1910
    %v1913 = vadd.f32 %v1908, %v1910
    %v1914 = vld [vmem:[%s7] sm:$0xff]
    %v1915 = vld [vmem:[#allocation39] sm:$0x1]
    %v1916 = vld [vmem:[#allocation40] sm:$0x1]
    %v1917 = vld [vmem:[#allocation42] sm:$0x1]
    %v1918 = vld [vmem:[#allocation43] sm:$0x1]
    %v1919 = vld [vmem:[#allocation45] sm:$0xf]
    %v1920 = vld [vmem:[#allocation45 + $0x4] sm:$0xf]
    %v1921 = vld [vmem:[#allocation45 + $0x8] sm:$0xf]
    %v1922 = vld [vmem:[#allocation45 + $0xc] sm:$0xf]
    %v1923 = vld [vmem:[#allocation45 + $0x10] sm:$0xf]
    %v1924 = vld [vmem:[#allocation45 + $0x14] sm:$0xf]
    %v1925 = vld [vmem:[#allocation45 + $0x18] sm:$0xf]
    %v1926 = vld [vmem:[#allocation45 + $0x1c] sm:$0xf]
    %v1927 = vld [vmem:[#allocation45 + $0x20] sm:$0xf]
    %v1928 = vld [vmem:[#allocation45 + $0x24] sm:$0xf]
    %v1929 = vld [vmem:[#allocation45 + $0x28] sm:$0xf]
    %v1930 = vld [vmem:[#allocation45 + $0x2c] sm:$0xf]
    %v1931 = vld [vmem:[#allocation45 + $0x30] sm:$0xf]
    %v1932 = vld [vmem:[#allocation45 + $0x34] sm:$0xf]
    %v1933 = vld [vmem:[#allocation45 + $0x38] sm:$0xf]
    %v1934 = vld [vmem:[#allocation45 + $0x3c] sm:$0xf]
    %v1935 = vld [vmem:[#allocation46] sm:$0x1]
    %v1936 = vld [vmem:[#allocation48] sm:$0x1]
    %v1937 = vld [vmem:[#allocation49] sm:$0x1]
    %v1938 = vld [vmem:[#allocation51] sm:$0xff]
    %v1939 = vld [vmem:[#allocation51 + $0x8] sm:$0xff]
    %v1940 = vld [vmem:[#allocation51 + $0x10] sm:$0xff]
    %v1941 = vld [vmem:[#allocation51 + $0x18] sm:$0xff]
    %v1942 = vld [vmem:[#allocation51 + $0x20] sm:$0xff]
    %v1943 = vld [vmem:[#allocation51 + $0x28] sm:$0xff]
    %v1944 = vld [vmem:[#allocation51 + $0x30] sm:$0xff]
    %v1945 = vld [vmem:[#allocation51 + $0x38] sm:$0xff]
    %v1946 = vld [vmem:[#allocation51 + $0x40] sm:$0xff]
    %v1947 = vld [vmem:[#allocation51 + $0x48] sm:$0xff]
    %v1948 = vld [vmem:[#allocation51 + $0x50] sm:$0xff]
    %v1949 = vld [vmem:[#allocation51 + $0x58] sm:$0xff]
    %v1950 = vld [vmem:[#allocation51 + $0x60] sm:$0xff]
    %v1951 = vld [vmem:[#allocation51 + $0x68] sm:$0xff]
    %v1952 = vld [vmem:[#allocation51 + $0x70] sm:$0xff]
    %v1953 = vld [vmem:[#allocation51 + $0x78] sm:$0xff]
    %v1954 = vld [vmem:[#allocation51 + $0x80] sm:$0xff]
    %v1955 = vld [vmem:[#allocation51 + $0x88] sm:$0xff]
    %v1956 = vld [vmem:[#allocation51 + $0x90] sm:$0xff]
    %v1957 = vld [vmem:[#allocation51 + $0x98] sm:$0xff]
    %v1958 = vld [vmem:[#allocation51 + $0xa0] sm:$0xff]
    %v1959 = vld [vmem:[#allocation51 + $0xa8] sm:$0xff]
    %v1960 = vld [vmem:[#allocation51 + $0xb0] sm:$0xff]
    %v1961 = vld [vmem:[#allocation51 + $0xb8] sm:$0xff]
    %v1962 = vld [vmem:[#allocation51 + $0xc0] sm:$0xff]
    %v1963 = vld [vmem:[#allocation51 + $0xc8] sm:$0xff]
    %v1964 = vld [vmem:[#allocation51 + $0xd0] sm:$0xff]
    %v1965 = vld [vmem:[#allocation51 + $0xd8] sm:$0xff]
    %v1966 = vld [vmem:[#allocation51 + $0xe0] sm:$0xff]
    %v1967 = vld [vmem:[#allocation51 + $0xe8] sm:$0xff]
    %v1968 = vld [vmem:[#allocation51 + $0xf0] sm:$0xff]
    %v1969 = vld [vmem:[#allocation51 + $0xf8] sm:$0xff]
    %v1970 = vld [vmem:[#allocation52] sm:$0xff]
    %v1971 = vld [vmem:[#allocation52 + $0x8] sm:$0xf]
    %v1972 = vld [vmem:[#allocation52 + $0xc] sm:$0xff]
    %v1973 = vld [vmem:[#allocation52 + $0x14] sm:$0xf]
    %v1974 = vld [vmem:[#allocation52 + $0x18] sm:$0xff]
    %v1975 = vld [vmem:[#allocation52 + $0x20] sm:$0xf]
    %v1976 = vld [vmem:[#allocation52 + $0x24] sm:$0xff]
    %v1977 = vld [vmem:[#allocation52 + $0x2c] sm:$0xf]
    %v1978 = vld [vmem:[#allocation52 + $0x30] sm:$0xff]
    %v1979 = vld [vmem:[#allocation52 + $0x38] sm:$0xf]
    %v1980 = vld [vmem:[#allocation52 + $0x3c] sm:$0xff]
    %v1981 = vld [vmem:[#allocation52 + $0x44] sm:$0xf]
    %v1982 = vld [vmem:[#allocation52 + $0x48] sm:$0xff]
    %v1983 = vld [vmem:[#allocation52 + $0x50] sm:$0xf]
    %v1984 = vld [vmem:[#allocation52 + $0x54] sm:$0xff]
    %v1985 = vld [vmem:[#allocation52 + $0x5c] sm:$0xf]
    %v1986 = vld [vmem:[#allocation52 + $0x60] sm:$0xff]
    %v1987 = vld [vmem:[#allocation52 + $0x68] sm:$0xf]
    %v1988 = vld [vmem:[#allocation52 + $0x6c] sm:$0xff]
    %v1989 = vld [vmem:[#allocation52 + $0x74] sm:$0xf]
    %v1990 = vld [vmem:[#allocation52 + $0x78] sm:$0xff]
    %v1991 = vld [vmem:[#allocation52 + $0x80] sm:$0xf]
    %v1992 = vld [vmem:[#allocation52 + $0x84] sm:$0xff]
    %v1993 = vld [vmem:[#allocation52 + $0x8c] sm:$0xf]
    %v1994 = vld [vmem:[#allocation52 + $0x90] sm:$0xff]
    %v1995 = vld [vmem:[#allocation52 + $0x98] sm:$0xf]
    %v1996 = vld [vmem:[#allocation52 + $0x9c] sm:$0xff]
    %v1997 = vld [vmem:[#allocation52 + $0xa4] sm:$0xf]
    %v1998 = vld [vmem:[#allocation52 + $0xa8] sm:$0xff]
    %v1999 = vld [vmem:[#allocation52 + $0xb0] sm:$0xf]
    %v2000 = vld [vmem:[#allocation52 + $0xb4] sm:$0xff]
    %v2001 = vld [vmem:[#allocation52 + $0xbc] sm:$0xf]
    %v2002 = vld [vmem:[#allocation54] sm:$0x7]
    %v2003 = vld [vmem:[#allocation55] sm:$0x7]
    %v2004 = vld [vmem:[#allocation57] sm:$0x1]
    %v2005 = vld [vmem:[#allocation58] sm:$0x1]
    %v2007 = vperm.slane %v1915, 0
    %v2009 = vmul.f32 %v1912, %v2007
    %v2010 = vmul.f32 %v1913, %v2007
    %v2012 = vperm.slane %v1916, 0
    %v2014 = vadd.f32 %v2009, %v2012
    %v2015 = vadd.f32 %v2010, %v2012
    %vm2016 = vcmask 130048
    %v2018 = vsel %vm2016, %v1914, 0
    %2020 = vmatpush.msra.mxu0 0.0
    %2021 = vmatpush.msra.mxu0 0.0
    %2022 = vmatpush.msra.mxu0 0.0
    %2023 = vmatpush.msra.mxu0 0.0
    %2024 = vmatpush.msra.mxu0 0.0
    %2025 = vmatpush.msra.mxu0 0.0
    %2026 = vmatpush.msra.mxu0 0.0
    %2027 = vmatpush.msra.mxu0 0.0
    %2028 = vmatpush.msra.mxu0 0.0
    %2029 = vmatpush.msra.mxu0 0.0
    %2030 = vmatpush.msra.mxu0 0.0
    %2031 = vmatpush.msra.mxu0 0.0
    %2032 = vmatpush.msra.mxu0 0.0
    %2033 = vmatpush.msra.mxu0 0.0
    %2034 = vmatpush.msra.mxu0 %v2015
    %2035 = vmatpush.msra.mxu0 %v2014
    %2036 = vmatmul.f32.gmra.mxu0 %v2018
    %v2037 = vpop.f32.mrf.mxu0
    %v2038 = vadd.f32 0.0, %v2037
    %2039 = vdwg.mxu0
    %v2040 = vmax.f32 %v2038, 0.0
    %v2042 = vperm.slane %v1917, 0
    %v2044 = vmul.f32 %v2040, %v2042
    %v2046 = vperm.slane %v1918, 0
    %v2048 = vadd.f32 %v2044, %v2046
    %v2049 = vpack.c.bf16 %v2015, %v2014
    %v2066 = vunpack.c.l.b16 %v1919
    %v2067 = vunpack.c.l.b16 %v1920
    %v2068 = vunpack.c.l.b16 %v1921
    %v2069 = vunpack.c.l.b16 %v1922
    %v2070 = vunpack.c.l.b16 %v1923
    %v2071 = vunpack.c.l.b16 %v1924
    %v2072 = vunpack.c.l.b16 %v1925
    %v2073 = vunpack.c.l.b16 %v1926
    %v2074 = vunpack.c.l.b16 %v1927
    %v2075 = vunpack.c.l.b16 %v1928
    %v2076 = vunpack.c.l.b16 %v1929
    %v2077 = vunpack.c.l.b16 %v1930
    %v2078 = vunpack.c.l.b16 %v1931
    %v2079 = vunpack.c.l.b16 %v1932
    %v2080 = vunpack.c.l.b16 %v1933
    %v2081 = vunpack.c.l.b16 %v1934
    %v2082 = vpack.c.b16 %v2067, %v2066
    %v2083 = vpack.c.b16 %v2069, %v2068
    %v2084 = vpack.c.b16 %v2071, %v2070
    %v2085 = vpack.c.b16 %v2073, %v2072
    %v2086 = vpack.c.b16 %v2075, %v2074
    %v2087 = vpack.c.b16 %v2077, %v2076
    %v2088 = vpack.c.b16 %v2079, %v2078
    %v2089 = vpack.c.b16 %v2081, %v2080
    %2098 = vmatpush.bf16.msra.mxu0 %v2089
    %2099 = vmatpush.bf16.msra.mxu0 %v2088
    %2100 = vmatpush.bf16.msra.mxu0 %v2087
    %2101 = vmatpush.bf16.msra.mxu0 %v2086
    %2102 = vmatpush.bf16.msra.mxu0 %v2085
    %2103 = vmatpush.bf16.msra.mxu0 %v2084
    %2104 = vmatpush.bf16.msra.mxu0 %v2083
    %2105 = vmatpush.bf16.msra.mxu0 %v2082
    %2106 = vmatmul.bf16.gmra.mxu0 %v2049
    %v2107 = vpop.f32.mrf.mxu0
    %v2108 = vadd.f32 0.0, %v2107
    %v2109 = vpop.f32.mrf.mxu0
    %v2110 = vadd.f32 0.0, %v2109
    %2111 = vdwg.mxu0
    %v2112 = vpack.c.bf16 %v2048, %v2048
    %v2145 = vunpack.c.l.b16 %v1938
    %v2146 = vunpack.c.h.b16 %v1938
    %v2147 = vunpack.c.l.b16 %v1939
    %v2148 = vunpack.c.h.b16 %v1939
    %v2149 = vunpack.c.l.b16 %v1940
    %v2150 = vunpack.c.h.b16 %v1940
    %v2151 = vunpack.c.l.b16 %v1941
    %v2152 = vunpack.c.h.b16 %v1941
    %v2153 = vunpack.c.l.b16 %v1942
    %v2154 = vunpack.c.h.b16 %v1942
    %v2155 = vunpack.c.l.b16 %v1943
    %v2156 = vunpack.c.h.b16 %v1943
    %v2157 = vunpack.c.l.b16 %v1944
    %v2158 = vunpack.c.h.b16 %v1944
    %v2159 = vunpack.c.l.b16 %v1945
    %v2160 = vunpack.c.h.b16 %v1945
    %v2161 = vunpack.c.l.b16 %v1946
    %v2162 = vunpack.c.h.b16 %v1946
    %v2163 = vunpack.c.l.b16 %v1947
    %v2164 = vunpack.c.h.b16 %v1947
    %v2165 = vunpack.c.l.b16 %v1948
    %v2166 = vunpack.c.h.b16 %v1948
    %v2167 = vunpack.c.l.b16 %v1949
    %v2168 = vunpack.c.h.b16 %v1949
    %v2169 = vunpack.c.l.b16 %v1950
    %v2170 = vunpack.c.h.b16 %v1950
    %v2171 = vunpack.c.l.b16 %v1951
    %v2172 = vunpack.c.h.b16 %v1951
    %v2173 = vunpack.c.l.b16 %v1952
    %v2174 = vunpack.c.h.b16 %v1952
    %v2175 = vunpack.c.l.b16 %v1953
    %v2176 = vunpack.c.h.b16 %v1953
    %v2177 = vunpack.c.l.b16 %v1954
    %v2178 = vunpack.c.h.b16 %v1954
    %v2179 = vunpack.c.l.b16 %v1955
    %v2180 = vunpack.c.h.b16 %v1955
    %v2181 = vunpack.c.l.b16 %v1956
    %v2182 = vunpack.c.h.b16 %v1956
    %v2183 = vunpack.c.l.b16 %v1957
    %v2184 = vunpack.c.h.b16 %v1957
    %v2185 = vunpack.c.l.b16 %v1958
    %v2186 = vunpack.c.h.b16 %v1958
    %v2187 = vunpack.c.l.b16 %v1959
    %v2188 = vunpack.c.h.b16 %v1959
    %v2189 = vunpack.c.l.b16 %v1960
    %v2190 = vunpack.c.h.b16 %v1960
    %v2191 = vunpack.c.l.b16 %v1961
    %v2192 = vunpack.c.h.b16 %v1961
    %v2193 = vunpack.c.l.b16 %v1962
    %v2194 = vunpack.c.h.b16 %v1962
    %v2195 = vunpack.c.l.b16 %v1963
    %v2196 = vunpack.c.h.b16 %v1963
    %v2197 = vunpack.c.l.b16 %v1964
    %v2198 = vunpack.c.h.b16 %v1964
    %v2199 = vunpack.c.l.b16 %v1965
    %v2200 = vunpack.c.h.b16 %v1965
    %v2201 = vunpack.c.l.b16 %v1966
    %v2202 = vunpack.c.h.b16 %v1966
    %v2203 = vunpack.c.l.b16 %v1967
    %v2204 = vunpack.c.h.b16 %v1967
    %v2205 = vunpack.c.l.b16 %v1968
    %v2206 = vunpack.c.h.b16 %v1968
    %v2207 = vunpack.c.l.b16 %v1969
    %v2208 = vunpack.c.h.b16 %v1969
    %v2209 = vpack.c.b16 %v2149, %v2145
    %v2210 = vpack.c.b16 %v2150, %v2146
    %v2211 = vpack.c.b16 %v2151, %v2147
    %v2212 = vpack.c.b16 %v2152, %v2148
    %v2213 = vpack.c.b16 %v2157, %v2153
    %v2214 = vpack.c.b16 %v2158, %v2154
    %v2215 = vpack.c.b16 %v2159, %v2155
    %v2216 = vpack.c.b16 %v2160, %v2156
    %v2217 = vpack.c.b16 %v2165, %v2161
    %v2218 = vpack.c.b16 %v2166, %v2162
    %v2219 = vpack.c.b16 %v2167, %v2163
    %v2220 = vpack.c.b16 %v2168, %v2164
    %v2221 = vpack.c.b16 %v2173, %v2169
    %v2222 = vpack.c.b16 %v2174, %v2170
    %v2223 = vpack.c.b16 %v2175, %v2171
    %v2224 = vpack.c.b16 %v2176, %v2172
    %v2225 = vpack.c.b16 %v2181, %v2177
    %v2226 = vpack.c.b16 %v2182, %v2178
    %v2227 = vpack.c.b16 %v2183, %v2179
    %v2228 = vpack.c.b16 %v2184, %v2180
    %v2229 = vpack.c.b16 %v2189, %v2185
    %v2230 = vpack.c.b16 %v2190, %v2186
    %v2231 = vpack.c.b16 %v2191, %v2187
    %v2232 = vpack.c.b16 %v2192, %v2188
    %v2233 = vpack.c.b16 %v2197, %v2193
    %v2234 = vpack.c.b16 %v2198, %v2194
    %v2235 = vpack.c.b16 %v2199, %v2195
    %v2236 = vpack.c.b16 %v2200, %v2196
    %v2237 = vpack.c.b16 %v2205, %v2201
    %v2238 = vpack.c.b16 %v2206, %v2202
    %v2239 = vpack.c.b16 %v2207, %v2203
    %v2240 = vpack.c.b16 %v2208, %v2204
    %2273 = vmatpush.bf16.msra.mxu0 %v2237
    %2274 = vmatpush.bf16.msra.mxu0 %v2233
    %2275 = vmatpush.bf16.msra.mxu0 %v2229
    %2276 = vmatpush.bf16.msra.mxu0 %v2225
    %2277 = vmatpush.bf16.msra.mxu0 %v2221
    %2278 = vmatpush.bf16.msra.mxu0 %v2217
    %2279 = vmatpush.bf16.msra.mxu0 %v2213
    %2280 = vmatpush.bf16.msra.mxu0 %v2209
    %2281 = vmatmul.bf16.gmra.mxu0 %v2112
    %v2282 = vpop.f32.mrf.mxu0
    %v2283 = vadd.f32 0.0, %v2282
    %v2284 = vpop.f32.mrf.mxu0
    %2285 = vdwg.mxu0
    %2286 = vmatpush.bf16.msra.mxu0 %v2238
    %2287 = vmatpush.bf16.msra.mxu0 %v2234
    %2288 = vmatpush.bf16.msra.mxu0 %v2230
    %2289 = vmatpush.bf16.msra.mxu0 %v2226
    %2290 = vmatpush.bf16.msra.mxu0 %v2222
    %2291 = vmatpush.bf16.msra.mxu0 %v2218
    %2292 = vmatpush.bf16.msra.mxu0 %v2214
    %2293 = vmatpush.bf16.msra.mxu0 %v2210
    %2294 = vmatmul.bf16.gmra.mxu0 %v2112
    %v2295 = vpop.f32.mrf.mxu0
    %v2296 = vadd.f32 0.0, %v2295
    %v2297 = vpop.f32.mrf.mxu0
    %2298 = vdwg.mxu0
    %2299 = vmatpush.bf16.msra.mxu0 %v2239
    %2300 = vmatpush.bf16.msra.mxu0 %v2235
    %2301 = vmatpush.bf16.msra.mxu0 %v2231
    %2302 = vmatpush.bf16.msra.mxu0 %v2227
    %2303 = vmatpush.bf16.msra.mxu0 %v2223
    %2304 = vmatpush.bf16.msra.mxu0 %v2219
    %2305 = vmatpush.bf16.msra.mxu0 %v2215
    %2306 = vmatpush.bf16.msra.mxu0 %v2211
    %2307 = vmatmul.bf16.gmra.mxu0 %v2112
    %v2308 = vpop.f32.mrf.mxu0
    %v2309 = vadd.f32 0.0, %v2308
    %v2310 = vpop.f32.mrf.mxu0
    %2311 = vdwg.mxu0
    %2312 = vmatpush.bf16.msra.mxu0 %v2240
    %2313 = vmatpush.bf16.msra.mxu0 %v2236
    %2314 = vmatpush.bf16.msra.mxu0 %v2232
    %2315 = vmatpush.bf16.msra.mxu0 %v2228
    %2316 = vmatpush.bf16.msra.mxu0 %v2224
    %2317 = vmatpush.bf16.msra.mxu0 %v2220
    %2318 = vmatpush.bf16.msra.mxu0 %v2216
    %2319 = vmatpush.bf16.msra.mxu0 %v2212
    %2320 = vmatmul.bf16.gmra.mxu0 %v2112
    %v2321 = vpop.f32.mrf.mxu0
    %v2322 = vadd.f32 0.0, %v2321
    %v2323 = vpop.f32.mrf.mxu0
    %2324 = vdwg.mxu0
    %v2326 = vperm.slane %v2003, 0
    %v2327 = vperm.slane %v2003, 1
    %v2328 = vperm.slane %v2003, 2
    %v2332 = vadd.f32 %v2296, %v2326
    %v2333 = vadd.f32 %v2309, %v2327
    %v2334 = vadd.f32 %v2322, %v2328
    %v2336 = vperm.slane %v1936, 0
    %v2338 = vmul.f32 %v2283, %v2336
    %2339 = vadd.xlane.f32.xlu0 %v2338
    %v2340 = vpop.xlane.xlu0 %2339
    %2341 = vmatpush.xpose.msra.mxu0 0.0
    %2342 = vmatpush.xpose.msra.mxu0 0.0
    %2343 = vmatpush.xpose.msra.mxu0 0.0
    %2344 = vmatpush.xpose.msra.mxu0 0.0
    %2345 = vmatpush.xpose.msra.mxu0 0.0
    %2346 = vmatpush.xpose.msra.mxu0 0.0
    %2347 = vmatpush.xpose.msra.mxu0 0.0
    %2348 = vmatpush.xpose.msra.mxu0 0.0
    %2349 = vmatpush.xpose.msra.mxu0 0.0
    %2350 = vmatpush.xpose.msra.mxu0 0.0
    %2351 = vmatpush.xpose.msra.mxu0 0.0
    %2352 = vmatpush.xpose.msra.mxu0 0.0
    %2353 = vmatpush.xpose.msra.mxu0 0.0
    %2354 = vmatpush.xpose.msra.mxu0 0.0
    %2355 = vmatpush.xpose.msra.mxu0 %v2110
    %2356 = vmatpush.xpose.msra.mxu0 %v2108
    %2357 = vmatmul.f32.gmra.mxu0 %v1935
    %v2358 = vpop.f32.mrf.mxu0
    %v2359 = vadd.f32 0.0, %v2358
    %2360 = vdwg.mxu0
    %v2361 = vperm.slane %v2359, 0
    %v2362 = vadd.f32 %v2340, %v2361
    %vm2363 = vcmp.gt.f32.partialorder %v2362, 0.0
    %v2364 = vmul.f32 %v2362, 0.01
    %v2365 = vsel %vm2363, %v2362, %v2364
    %vm2366 = vcmp.gt.f32.partialorder %v1914, 0.0
    %v2367 = vsel %vm2366, %v2365, -1e+30
    %v2368 = vsel %vm2016, %v2367, -inf
    %2369 = vmax.xlane.f32.xlu0 %v2368
    %v2370 = vpop.xlane.xlu0 %2369
    %v2371 = vsub.f32 %v2367, %v2370
    %v2372 = vmul.f32 %v2371, 1.442695
    %v2373 = vpow.pop %v2372
    %v2374 = vmul.f32 %v2373, %v1914
    %v2375 = vsel %vm2016, %v2374, 0.0
    %2376 = vadd.xlane.f32.xlu0 %v2375
    %v2377 = vpop.xlane.xlu0 %2376
    %v2378 = vmax.f32 %v2377, 1e-30
    %v2379 = vrcp.pop %v2378
    %v2380 = vmul.f32 %v2374, %v2379
    %v2382 = vperm.slane %v1937, 0
    %v2385 = vsel %vm2016, %v2380, 0
    %2387 = vmatpush.msra.mxu0 0.0
    %2388 = vmatpush.msra.mxu0 0.0
    %2389 = vmatpush.msra.mxu0 0.0
    %2390 = vmatpush.msra.mxu0 0.0
    %2391 = vmatpush.msra.mxu0 0.0
    %2392 = vmatpush.msra.mxu0 0.0
    %2393 = vmatpush.msra.mxu0 0.0
    %2394 = vmatpush.msra.mxu0 0.0
    %2395 = vmatpush.msra.mxu0 0.0
    %2396 = vmatpush.msra.mxu0 0.0
    %2397 = vmatpush.msra.mxu0 0.0
    %2398 = vmatpush.msra.mxu0 0.0
    %2399 = vmatpush.msra.mxu0 0.0
    %2400 = vmatpush.msra.mxu0 0.0
    %2401 = vmatpush.msra.mxu0 %v2110
    %2402 = vmatpush.msra.mxu0 %v2108
    %2403 = vmatmul.f32.gmra.mxu0 %v2385
    %v2404 = vpop.f32.mrf.mxu0
    %v2405 = vadd.f32 %v2382, %v2404
    %2406 = vdwg.mxu0
    %vm2407 = vcmp.gt.f32.partialorder %v2405, 0.0
    %v2408 = vmin.f32 %v2405, 0.0
    %v2409 = vmul.f32 %v2408, 1.442695
    %v2410 = vpow.pop %v2409
    %v2411 = vsub.f32 %v2410, 1.0
    %v2412 = vsel %vm2407, %v2405, %v2411
    %v2413 = vpack.c.bf16 %v2412, %v2412
    %v2415 = vperm.slane %v2002, 0
    %v2416 = vperm.slane %v2002, 1
    %v2417 = vperm.slane %v2002, 2
    %v2453 = vunpack.c.l.b16 %v1970
    %v2454 = vunpack.c.h.b16 %v1970
    %v2455 = vunpack.c.l.b16 %v1971
    %v2456 = vunpack.c.l.b16 %v1972
    %v2457 = vunpack.c.h.b16 %v1972
    %v2458 = vunpack.c.l.b16 %v1973
    %v2459 = vunpack.c.l.b16 %v1974
    %v2460 = vunpack.c.h.b16 %v1974
    %v2461 = vunpack.c.l.b16 %v1975
    %v2462 = vunpack.c.l.b16 %v1976
    %v2463 = vunpack.c.h.b16 %v1976
    %v2464 = vunpack.c.l.b16 %v1977
    %v2465 = vunpack.c.l.b16 %v1978
    %v2466 = vunpack.c.h.b16 %v1978
    %v2467 = vunpack.c.l.b16 %v1979
    %v2468 = vunpack.c.l.b16 %v1980
    %v2469 = vunpack.c.h.b16 %v1980
    %v2470 = vunpack.c.l.b16 %v1981
    %v2471 = vunpack.c.l.b16 %v1982
    %v2472 = vunpack.c.h.b16 %v1982
    %v2473 = vunpack.c.l.b16 %v1983
    %v2474 = vunpack.c.l.b16 %v1984
    %v2475 = vunpack.c.h.b16 %v1984
    %v2476 = vunpack.c.l.b16 %v1985
    %v2477 = vunpack.c.l.b16 %v1986
    %v2478 = vunpack.c.h.b16 %v1986
    %v2479 = vunpack.c.l.b16 %v1987
    %v2480 = vunpack.c.l.b16 %v1988
    %v2481 = vunpack.c.h.b16 %v1988
    %v2482 = vunpack.c.l.b16 %v1989
    %v2483 = vunpack.c.l.b16 %v1990
    %v2484 = vunpack.c.h.b16 %v1990
    %v2485 = vunpack.c.l.b16 %v1991
    %v2486 = vunpack.c.l.b16 %v1992
    %v2487 = vunpack.c.h.b16 %v1992
    %v2488 = vunpack.c.l.b16 %v1993
    %v2489 = vunpack.c.l.b16 %v1994
    %v2490 = vunpack.c.h.b16 %v1994
    %v2491 = vunpack.c.l.b16 %v1995
    %v2492 = vunpack.c.l.b16 %v1996
    %v2493 = vunpack.c.h.b16 %v1996
    %v2494 = vunpack.c.l.b16 %v1997
    %v2495 = vunpack.c.l.b16 %v1998
    %v2496 = vunpack.c.h.b16 %v1998
    %v2497 = vunpack.c.l.b16 %v1999
    %v2498 = vunpack.c.l.b16 %v2000
    %v2499 = vunpack.c.h.b16 %v2000
    %v2500 = vunpack.c.l.b16 %v2001
    %v2501 = vpack.c.b16 %v2456, %v2453
    %v2502 = vpack.c.b16 %v2457, %v2454
    %v2503 = vpack.c.b16 %v2458, %v2455
    %v2504 = vpack.c.b16 %v2462, %v2459
    %v2505 = vpack.c.b16 %v2463, %v2460
    %v2506 = vpack.c.b16 %v2464, %v2461
    %v2507 = vpack.c.b16 %v2468, %v2465
    %v2508 = vpack.c.b16 %v2469, %v2466
    %v2509 = vpack.c.b16 %v2470, %v2467
    %v2510 = vpack.c.b16 %v2474, %v2471
    %v2511 = vpack.c.b16 %v2475, %v2472
    %v2512 = vpack.c.b16 %v2476, %v2473
    %v2513 = vpack.c.b16 %v2480, %v2477
    %v2514 = vpack.c.b16 %v2481, %v2478
    %v2515 = vpack.c.b16 %v2482, %v2479
    %v2516 = vpack.c.b16 %v2486, %v2483
    %v2517 = vpack.c.b16 %v2487, %v2484
    %v2518 = vpack.c.b16 %v2488, %v2485
    %v2519 = vpack.c.b16 %v2492, %v2489
    %v2520 = vpack.c.b16 %v2493, %v2490
    %v2521 = vpack.c.b16 %v2494, %v2491
    %v2522 = vpack.c.b16 %v2498, %v2495
    %v2523 = vpack.c.b16 %v2499, %v2496
    %v2524 = vpack.c.b16 %v2500, %v2497
    %2549 = vmatpush.bf16.msra.mxu0 %v2522
    %2550 = vmatpush.bf16.msra.mxu0 %v2519
    %2551 = vmatpush.bf16.msra.mxu0 %v2516
    %2552 = vmatpush.bf16.msra.mxu0 %v2513
    %2553 = vmatpush.bf16.msra.mxu0 %v2510
    %2554 = vmatpush.bf16.msra.mxu0 %v2507
    %2555 = vmatpush.bf16.msra.mxu0 %v2504
    %2556 = vmatpush.bf16.msra.mxu0 %v2501
    %2557 = vmatmul.bf16.gmra.mxu0 %v2413
    %v2558 = vpop.f32.mrf.mxu0
    %v2559 = vadd.f32 %v2415, %v2558
    %v2560 = vpop.f32.mrf.mxu0
    %2561 = vdwg.mxu0
    %2562 = vmatpush.bf16.msra.mxu0 %v2523
    %2563 = vmatpush.bf16.msra.mxu0 %v2520
    %2564 = vmatpush.bf16.msra.mxu0 %v2517
    %2565 = vmatpush.bf16.msra.mxu0 %v2514
    %2566 = vmatpush.bf16.msra.mxu0 %v2511
    %2567 = vmatpush.bf16.msra.mxu0 %v2508
    %2568 = vmatpush.bf16.msra.mxu0 %v2505
    %2569 = vmatpush.bf16.msra.mxu0 %v2502
    %2570 = vmatmul.bf16.gmra.mxu0 %v2413
    %v2571 = vpop.f32.mrf.mxu0
    %v2572 = vadd.f32 %v2416, %v2571
    %v2573 = vpop.f32.mrf.mxu0
    %2574 = vdwg.mxu0
    %2575 = vmatpush.bf16.msra.mxu0 %v2524
    %2576 = vmatpush.bf16.msra.mxu0 %v2521
    %2577 = vmatpush.bf16.msra.mxu0 %v2518
    %2578 = vmatpush.bf16.msra.mxu0 %v2515
    %2579 = vmatpush.bf16.msra.mxu0 %v2512
    %2580 = vmatpush.bf16.msra.mxu0 %v2509
    %2581 = vmatpush.bf16.msra.mxu0 %v2506
    %2582 = vmatpush.bf16.msra.mxu0 %v2503
    %2583 = vmatmul.bf16.gmra.mxu0 %v2413
    %v2584 = vpop.f32.mrf.mxu0
    %v2585 = vadd.f32 %v2417, %v2584
    %v2586 = vpop.f32.mrf.mxu0
    %2587 = vdwg.mxu0
    %v2588 = vadd.f32 %v2559, %v2332
    %v2589 = vxor.u32 %v2588, 2147483648
    %v2590 = vmul.f32 %v2589, 1.442695
    %v2591 = vpow.pop %v2590
    %v2592 = vadd.f32 %v2591, 1.0
    %v2593 = vrcp.pop %v2592
    %v2594 = vmul.f32 %v2592, %v2593
    %v2595 = vsub.f32 1.0, %v2594
    %v2596 = vmul.f32 %v2593, %v2595
    %v2597 = vadd.f32 %v2593, %v2596
    %vm2598 = vweird.f32 %v2592
    %vm2599 = vweird.f32 %v2593
    %vm2600 = vmor %vm2598, %vm2599
    %v2601 = vsel %vm2600, %v2593, %v2597
    %v2602 = vand.u32 2147483647, %v2592
    %vm2603 = vcmp.eq.f32.partialorder %v2602, 8.507059e+37
    %v2604 = vand.u32 %v2592, 2147483648
    %v2605 = vor.u32 1.1754944e-38, %v2604
    %v2606 = vsel %vm2603, %v2605, %v2601
    %v2607 = vmul.f32 1.0, %v2606
    %v2608 = vadd.f32 %v2572, %v2333
    %v2609 = vxor.u32 %v2608, 2147483648
    %v2610 = vmul.f32 %v2609, 1.442695
    %v2611 = vpow.pop %v2610
    %v2612 = vadd.f32 %v2611, 1.0
    %v2613 = vrcp.pop %v2612
    %v2614 = vmul.f32 %v2612, %v2613
    %v2615 = vsub.f32 1.0, %v2614
    %v2616 = vmul.f32 %v2613, %v2615
    %v2617 = vadd.f32 %v2613, %v2616
    %vm2618 = vweird.f32 %v2612
    %vm2619 = vweird.f32 %v2613
    %vm2620 = vmor %vm2618, %vm2619
    %v2621 = vsel %vm2620, %v2613, %v2617
    %v2622 = vand.u32 2147483647, %v2612
    %vm2623 = vcmp.eq.f32.partialorder %v2622, 8.507059e+37
    %v2624 = vand.u32 %v2612, 2147483648
    %v2625 = vor.u32 1.1754944e-38, %v2624
    %v2626 = vsel %vm2623, %v2625, %v2621
    %v2627 = vmul.f32 1.0, %v2626
    %v2628 = vmul.f32 %v2607, %v2334
    %v2629 = vadd.f32 %v2585, %v2628
    %v2630 = vtanh.pop %v2629
    %v2631 = vsub.f32 1.0, %v2627
    %v2632 = vmul.f32 %v2631, %v2630
    %v2633 = vmul.f32 %v2627, %v2048
    %v2634 = vadd.f32 %v2632, %v2633
    %v2635 = vmax.f32 %v2634, 0.0
    %v2637 = vperm.slane %v2004, 0
    %v2639 = vmul.f32 %v2635, %v2637
    %v2641 = vperm.slane %v2005, 0
    %v2643 = vadd.f32 %v2639, %v2641
    %v2644 = vld [vmem:[#allocation60] sm:$0xf]
    %v2645 = vld [vmem:[#allocation60 + $0x4] sm:$0xf]
    %v2646 = vld [vmem:[#allocation60 + $0x8] sm:$0xf]
    %v2647 = vld [vmem:[#allocation60 + $0xc] sm:$0xf]
    %v2648 = vld [vmem:[#allocation60 + $0x10] sm:$0xf]
    %v2649 = vld [vmem:[#allocation60 + $0x14] sm:$0xf]
    %v2650 = vld [vmem:[#allocation60 + $0x18] sm:$0xf]
    %v2651 = vld [vmem:[#allocation60 + $0x1c] sm:$0xf]
    %v2652 = vld [vmem:[#allocation60 + $0x20] sm:$0xf]
    %v2653 = vld [vmem:[#allocation60 + $0x24] sm:$0xf]
    %v2654 = vld [vmem:[#allocation60 + $0x28] sm:$0xf]
    %v2655 = vld [vmem:[#allocation60 + $0x2c] sm:$0xf]
    %v2656 = vld [vmem:[#allocation60 + $0x30] sm:$0xf]
    %v2657 = vld [vmem:[#allocation60 + $0x34] sm:$0xf]
    %v2658 = vld [vmem:[#allocation60 + $0x38] sm:$0xf]
    %v2659 = vld [vmem:[#allocation60 + $0x3c] sm:$0xf]
    %v2660 = vld [vmem:[#allocation61] sm:$0x1]
    %v2661 = vpack.c.bf16 %v2643, %v2643
    %v2663 = vperm.slane %v2660, 0
    %v2681 = vunpack.c.l.b16 %v2644
    %v2682 = vunpack.c.l.b16 %v2645
    %v2683 = vunpack.c.l.b16 %v2646
    %v2684 = vunpack.c.l.b16 %v2647
    %v2685 = vunpack.c.l.b16 %v2648
    %v2686 = vunpack.c.l.b16 %v2649
    %v2687 = vunpack.c.l.b16 %v2650
    %v2688 = vunpack.c.l.b16 %v2651
    %v2689 = vunpack.c.l.b16 %v2652
    %v2690 = vunpack.c.l.b16 %v2653
    %v2691 = vunpack.c.l.b16 %v2654
    %v2692 = vunpack.c.l.b16 %v2655
    %v2693 = vunpack.c.l.b16 %v2656
    %v2694 = vunpack.c.l.b16 %v2657
    %v2695 = vunpack.c.l.b16 %v2658
    %v2696 = vunpack.c.l.b16 %v2659
    %v2697 = vpack.c.b16 %v2682, %v2681
    %v2698 = vpack.c.b16 %v2684, %v2683
    %v2699 = vpack.c.b16 %v2686, %v2685
    %v2700 = vpack.c.b16 %v2688, %v2687
    %v2701 = vpack.c.b16 %v2690, %v2689
    %v2702 = vpack.c.b16 %v2692, %v2691
    %v2703 = vpack.c.b16 %v2694, %v2693
    %v2704 = vpack.c.b16 %v2696, %v2695
    %2713 = vmatpush.bf16.msra.mxu0 %v2704
    %2714 = vmatpush.bf16.msra.mxu0 %v2703
    %2715 = vmatpush.bf16.msra.mxu0 %v2702
    %2716 = vmatpush.bf16.msra.mxu0 %v2701
    %2717 = vmatpush.bf16.msra.mxu0 %v2700
    %2718 = vmatpush.bf16.msra.mxu0 %v2699
    %2719 = vmatpush.bf16.msra.mxu0 %v2698
    %2720 = vmatpush.bf16.msra.mxu0 %v2697
    %2721 = vmatmul.bf16.gmra.mxu0 %v2661
    %v2722 = vpop.f32.mrf.mxu0
    %v2723 = vadd.f32 %v2663, %v2722
    %v2724 = vpop.f32.mrf.mxu0
    %2725 = vdwg.mxu0
    %v2726 = vmax.f32 %v2723, 0.0
    %v2727 = vld [vmem:[#allocation63] sm:$0xf]
    %v2728 = vld [vmem:[#allocation63 + $0x4] sm:$0xf]
    %v2729 = vld [vmem:[#allocation63 + $0x8] sm:$0xf]
    %v2730 = vld [vmem:[#allocation63 + $0xc] sm:$0xf]
    %v2731 = vld [vmem:[#allocation63 + $0x10] sm:$0xf]
    %v2732 = vld [vmem:[#allocation63 + $0x14] sm:$0xf]
    %v2733 = vld [vmem:[#allocation63 + $0x18] sm:$0xf]
    %v2734 = vld [vmem:[#allocation63 + $0x1c] sm:$0xf]
    %v2735 = vld [vmem:[#allocation63 + $0x20] sm:$0xf]
    %v2736 = vld [vmem:[#allocation63 + $0x24] sm:$0xf]
    %v2737 = vld [vmem:[#allocation63 + $0x28] sm:$0xf]
    %v2738 = vld [vmem:[#allocation63 + $0x2c] sm:$0xf]
    %v2739 = vld [vmem:[#allocation63 + $0x30] sm:$0xf]
    %v2740 = vld [vmem:[#allocation63 + $0x34] sm:$0xf]
    %v2741 = vld [vmem:[#allocation63 + $0x38] sm:$0xf]
    %v2742 = vld [vmem:[#allocation63 + $0x3c] sm:$0xf]
    %v2743 = vld [vmem:[#allocation64] sm:$0x1]
    %v2744 = vpack.c.bf16 %v2726, %v2726
    %v2746 = vperm.slane %v2743, 0
    %v2764 = vunpack.c.l.b16 %v2727
    %v2765 = vunpack.c.l.b16 %v2728
    %v2766 = vunpack.c.l.b16 %v2729
    %v2767 = vunpack.c.l.b16 %v2730
    %v2768 = vunpack.c.l.b16 %v2731
    %v2769 = vunpack.c.l.b16 %v2732
    %v2770 = vunpack.c.l.b16 %v2733
    %v2771 = vunpack.c.l.b16 %v2734
    %v2772 = vunpack.c.l.b16 %v2735
    %v2773 = vunpack.c.l.b16 %v2736
    %v2774 = vunpack.c.l.b16 %v2737
    %v2775 = vunpack.c.l.b16 %v2738
    %v2776 = vunpack.c.l.b16 %v2739
    %v2777 = vunpack.c.l.b16 %v2740
    %v2778 = vunpack.c.l.b16 %v2741
    %v2779 = vunpack.c.l.b16 %v2742
    %v2780 = vpack.c.b16 %v2765, %v2764
    %v2781 = vpack.c.b16 %v2767, %v2766
    %v2782 = vpack.c.b16 %v2769, %v2768
    %v2783 = vpack.c.b16 %v2771, %v2770
    %v2784 = vpack.c.b16 %v2773, %v2772
    %v2785 = vpack.c.b16 %v2775, %v2774
    %v2786 = vpack.c.b16 %v2777, %v2776
    %v2787 = vpack.c.b16 %v2779, %v2778
    %2796 = vmatpush.bf16.msra.mxu0 %v2787
    %2797 = vmatpush.bf16.msra.mxu0 %v2786
    %2798 = vmatpush.bf16.msra.mxu0 %v2785
    %2799 = vmatpush.bf16.msra.mxu0 %v2784
    %2800 = vmatpush.bf16.msra.mxu0 %v2783
    %2801 = vmatpush.bf16.msra.mxu0 %v2782
    %2802 = vmatpush.bf16.msra.mxu0 %v2781
    %2803 = vmatpush.bf16.msra.mxu0 %v2780
    %2804 = vmatmul.bf16.gmra.mxu0 %v2744
    %v2805 = vpop.f32.mrf.mxu0
    %v2806 = vadd.f32 %v2746, %v2805
    %v2807 = vpop.f32.mrf.mxu0
    %2808 = vdwg.mxu0
    %2809 = vst [vmem:[%s89] sm:$0xff] %v2806
    // Predicated region
    $region346: #{ttmernet_forward.1} parent=1 // pred_check
      _
    $region347: #{ttmernet_forward.1} parent=1 // pred_check_branch
      %2811 = sbr.rel (0) target = $region349
    $region348: #{ttmernet_forward.1} parent=1 // pred_region
      _
    $region349: #{ttmernet_forward.1} parent=1 // pred_fallthru
      _
    // Predicated region
    $region350: #{ttmernet_forward.1} parent=1 // pred_check
      _
    $region351: #{ttmernet_forward.1} parent=1 // pred_check_branch
      %2813 = sbr.rel (0) target = $region353
    $region352: #{ttmernet_forward.1} parent=1 // pred_region
      _
    $region353: #{ttmernet_forward.1} parent=1 // pred_fallthru
      _
    %2814 = vsyncpa [#allocation3], 1
    %2815 = vsyncpa [#allocation5], 1
    %2816 = vsyncpa [#allocation8], 1
    %2817 = vsyncpa [#allocation11], 1
    %2818 = vsyncpa [#allocation14], 1
    %2819 = vsyncpa [#allocation17], 1
    %2820 = vsyncpa [#allocation20], 1
    %2821 = vsyncpa [#allocation23], 1
    %2822 = vsyncpa [#allocation26], 1
    %2823 = vsyncpa [#allocation29], 1
    %2824 = vsyncpa [#allocation32], 1
    %2825 = vsyncpa [#allocation35], 1
    %2826 = vsyncpa [#allocation38], 1
    %2827 = vsyncpa [#allocation41], 1
    %2828 = vsyncpa [#allocation44], 1
    %2829 = vsyncpa [#allocation47], 1
    %2830 = vsyncpa [#allocation50], 1
    %2831 = vsyncpa [#allocation53], 1
    %2832 = vsyncpa [#allocation56], 1
    %2833 = vsyncpa [#allocation59], 1
    %2834 = vsyncpa [#allocation62], 1
    %2835 = vsyncpa [#allocation65], 1

</llo_original>
